<compile_context>
chip_gen: v5e
topology: v5e:2x2
jax: 0.10.0
libtpu: 0.0.40
codegen_flags: <defaults>
</compile_context>

<pallas_src>
import functools

import numpy as np
import jax
import jax.numpy as jnp
from jax.experimental import pallas as pl
from jax.experimental.pallas import tpu as pltpu


# -----------------------------------------------------------------------------
# Fused kernel: block-diag feature transform + all metapaths + metapath fusion + fc.
# -----------------------------------------------------------------------------
def magnn_nc_mb_kernel(x_ref, w_ref, idx_ref, rot_ref, attn_ref, dm_ref, dmt_ref,
                       samed_ref, sel_ref, valid_ref, headexp_ref, tileexp_ref,
                       w1t_ref, b1_ref, w2_ref, wfct_ref, bfc_ref,
                       h_ref, hfc_ref, *,
                       num_metapaths, l_true, e_max, l_max, n_pad,
                       hidden_dim, use_bf16, leaky_slope):
    f32 = jnp.float32
    cdt = jnp.bfloat16 if use_bf16 else jnp.float32
    D = hidden_dim
    E = e_max
    neg = jnp.float32(-1e30)

    # ---- stage 0: all node-type projections as ONE block-diagonal matmul (bias column folded in)
    feat = jnp.dot(x_ref[...].astype(cdt), w_ref[...].astype(cdt),
                   preferred_element_type=f32)                                   # (N_pad, D) split
    # TODO(synk): feat_drop / attn_drop (nn.Dropout) are identity here (eval mode).
    feat_c = feat.astype(cdt)

    # ---- stage 1: ONE one-hot gather matmul for every (metapath, position, edge)
    rows = num_metapaths * l_max * e_max
    oh = (idx_ref[...] == jax.lax.broadcasted_iota(jnp.int32, (rows, n_pad), 1)).astype(cdt)
    g_all = jnp.dot(oh, feat_c, preferred_element_type=f32)                      # (rows, D)

    headexp = headexp_ref[...].astype(cdt)                                       # (H, HD)
    tileexp = tileexp_ref[...].astype(cdt)                                       # (D, HD)

    mp_outs = []
    for p in range(num_metapaths):
        L = l_true[p]
        base = p * l_max * e_max

        # -- stage 2: RotatE0 rotation + mean as L tiny (E,D)@(D,D) matmuls (rot pre-scaled by 1/L)
        hid = jnp.zeros((E, D), f32)
        for i in range(L):
            blk = g_all[base + i * E:base + (i + 1) * E, :]
            hid = hid + jnp.dot(blk.astype(cdt), rot_ref[p, i].astype(cdt),
                                preferred_element_type=f32)                      # (E, D) split

        # -- stage 3: per-head attention logits + LeakyReLU (MAGNN default alpha=0.01)
        logits = jnp.dot(hid.astype(cdt), attn_ref[p].astype(cdt),
                         preferred_element_type=f32)                             # (E, H)
        logits = jnp.where(logits > 0, logits, leaky_slope * logits)

        # -- stage 4: edge softmax over incoming edges of each destination (all heads at once)
        valid = valid_ref[p]                                                     # (E, 1) 0/1
        maskadd = (dmt_ref[p] - 1.0) * jnp.float32(1e30)                         # (Ng, E) 0 / -1e30
        masked = logits[None, :, :] + maskadd[:, :, None]                        # (Ng, E, H)
        nmax = jnp.max(masked, axis=1)                                           # (Ng, H)
        emax = jnp.dot(dm_ref[p], nmax, preferred_element_type=f32)              # (E, H)
        shifted = jnp.where(valid > 0, logits - emax, neg)
        exp_l = jnp.exp(shifted)                                                 # (E, H)
        denom = jnp.dot(samed_ref[p].astype(cdt), exp_l.astype(cdt),
                        preferred_element_type=f32)                              # (E, H)
        att = exp_l / (denom + (1.0 - valid))                                    # exact (parity)

        # -- stage 5: per-head weighted features via 0/1 expanders, one lane-dense aggregation
        att_hd = jnp.dot(att.astype(cdt), headexp, preferred_element_type=f32)   # (E, HD)
        hid_hd = jnp.dot(hid.astype(cdt), tileexp, preferred_element_type=f32)   # (E, HD)
        agg = jnp.dot(sel_ref[p].astype(cdt), (att_hd * hid_hd).astype(cdt),
                      preferred_element_type=f32)                                # (T, HD)
        # F.elu (mask negatives before exp to avoid overflow on the positive branch)
        mp_outs.append(jnp.where(agg > 0, agg, jnp.exp(jnp.minimum(agg, 0.0)) - 1.0))

    # ---- metapath-level attention (fc1 -> tanh -> mean -> fc2 -> softmax) + weighted sum + fc
    w1t = w1t_ref[...].astype(cdt)
    b1 = b1_ref[...]
    w2 = w2_ref[...]
    scores = []
    for p in range(num_metapaths):
        f1 = jnp.tanh(jnp.dot(mp_outs[p].astype(cdt), w1t, preferred_element_type=f32) + b1)
        f1m = jnp.mean(f1, axis=0, keepdims=True)                                # (1, A)
        scores.append(jnp.sum(f1m * w2, axis=1, keepdims=True))                  # (1, 1)
    m = scores[0]
    for s in scores[1:]:
        m = jnp.maximum(m, s)
    exps = [jnp.exp(s - m) for s in scores]
    tot = exps[0]
    for e in exps[1:]:
        tot = tot + e

    h = jnp.zeros_like(mp_outs[0])
    for p in range(num_metapaths):
        h = h + (exps[p] / tot) * mp_outs[p]
    h_ref[...] = h
    hfc_ref[...] = (jnp.dot(h.astype(cdt), wfct_ref[...].astype(cdt),
                            preferred_element_type=f32) + bfc_ref[...])


# -----------------------------------------------------------------------------
# Wrapper: host-side prep (node-id remap, block-diag projection, rotation matrices,
# graph-structure 0/1 matrices, split-layout weight permutations, padding).
# -----------------------------------------------------------------------------
def magnn_nc_mb_forward(features_list, type_mask, graphs, params, etypes_list,
                        hidden_dim, out_dim, num_heads, attn_vec_dim, use_bf16=False):
    """graphs: per metapath (edge_metapath_indices (E,L), dst (E,), target_idx (T,), num_graph_nodes)."""
    f32 = jnp.float32
    D = hidden_dim
    Dh = D // 2
    H = num_heads
    HD = H * D
    P = len(graphs)
    NT = len(features_list)
    type_mask = np.asarray(type_mask)
    N = int(type_mask.shape[0])
    T = int(np.asarray(graphs[0][2]).shape[0])

    # split-layout permutations: split index -> PyTorch interleaved index (weight-side only)
    dperm = np.concatenate([2 * np.arange(Dh), 2 * np.arange(Dh) + 1]).astype(np.int32)
    iperm_hd = np.concatenate([h * D + dperm for h in range(H)]).astype(np.int32)
    perm_hd = np.argsort(iperm_hd).astype(np.int32)

    # ---- node-id remap to per-type 8-aligned contiguous blocks + ONE block-diagonal projection
    ft_dims = [int(np.asarray(f).shape[1]) for f in features_list]
    ft_max = max(ft_dims)
    kblk = ft_max + 1                                  # features + constant-1 bias column
    new_id = np.zeros((N,), np.int32)
    nt_counts, nt_pads = [], []
    off = 0
    for t in range(NT):
        ids = np.where(type_mask == t)[0]
        nt = int(ids.shape[0])
        assert nt == int(np.asarray(features_list[t]).shape[0])
        ntp = int(np.ceil(nt / 8.0)) * 8
        new_id[ids] = off + np.arange(nt, dtype=np.int32)
        nt_counts.append(nt)
        nt_pads.append(ntp)
        off += ntp
    n_pad = off

    x_blocks, w_rows = [], []
    for t in range(NT):
        nt, ntp, ft = nt_counts[t], nt_pads[t], ft_dims[t]
        xt = jnp.asarray(features_list[t], f32)
        xt = jnp.pad(xt, ((0, ntp - nt), (0, ft_max - ft)))
        ones = jnp.concatenate([jnp.ones((nt, 1), f32), jnp.zeros((ntp - nt, 1), f32)], axis=0)
        blockt = jnp.concatenate([xt, ones], axis=1)                     # (ntp, kblk)
        left = jnp.zeros((ntp, kblk * t), f32)
        right = jnp.zeros((ntp, kblk * (NT - 1 - t)), f32)
        x_blocks.append(jnp.concatenate([left, blockt, right], axis=1))
        w = jnp.asarray(params['fc_W'][t], f32)                          # (hidden, F_t)
        b = jnp.asarray(params['fc_b'][t], f32)                          # (hidden,)
        wt_split = jnp.transpose(w)[:, dperm]                            # (F_t, D) split columns
        wt_split = jnp.pad(wt_split, ((0, ft_max - ft), (0, 0)))
        w_rows.append(jnp.concatenate([wt_split, b[dperm].reshape(1, D)], axis=0))
    x_blk = jnp.concatenate(x_blocks, axis=0)                            # (n_pad, NT*kblk)
    w_blk = jnp.concatenate(w_rows, axis=0)                              # (NT*kblk, D)

    # RotatE0: normalize r_vec, expand to per-edge-type rotations (conjugate pairs)
    r = jnp.asarray(params['r_vec'], f32)                                # (num_edge_type//2, Dh, 2)
    norm = jnp.sqrt(jnp.sum(r * r, axis=2, keepdims=True))
    r = r / jnp.maximum(norm, 1e-12)
    r_full = jnp.stack([r, r], axis=1)
    r_full = r_full.at[:, 1, :, 1].multiply(-1.0)
    r_full = r_full.reshape(-1, Dh, 2)                                   # (num_edge_type, Dh, 2)

    e_true = [int(np.asarray(g[0]).shape[0]) for g in graphs]
    l_true = [int(np.asarray(g[0]).shape[1]) for g in graphs]
    e_max = int(max(int(np.ceil(e / 8.0)) * 8 for e in e_true))
    l_max = int(max(l_true))
    ng_max = int(max(int(g[3]) for g in graphs))

    idx_all = np.full((P, l_max * e_max), -1, np.int32)
    dm_all = np.zeros((P, e_max, ng_max), np.float32)
    dmt_all = np.zeros((P, ng_max, e_max), np.float32)
    samed_all = np.zeros((P, e_max, e_max), np.float32)
    sel_all = np.zeros((P, T, e_max), np.float32)
    valid_all = np.zeros((P, e_max, 1), np.float32)
    rot_list, attn_list = [], []
    for p in range(P):
        idx, dst, tgt, _ = graphs[p]
        idx = np.asarray(idx).astype(np.int64)
        dst = np.asarray(dst).astype(np.int64)
        tgt = np.asarray(tgt).astype(np.int64)
        E, L = idx.shape

        blk = np.full((l_max, e_max), -1, np.int32)
        blk[:L, :E] = new_id[idx].T                                      # remapped global node ids
        idx_all[p] = blk.reshape(-1)

        dm = np.zeros((e_max, ng_max), np.float32)
        dm[np.arange(E), dst] = 1.0
        dm_all[p] = dm
        dmt_all[p] = dm.T
        samed_all[p] = dm @ dm.T                                         # same-destination (E,E)
        sel = np.zeros((T, e_max), np.float32)
        sel[:, :E] = (dst[None, :] == tgt[:, None]).astype(np.float32)
        sel_all[p] = sel
        valid_all[p, :E, 0] = 1.0

        # cumulative rotation per position (identity at last position) -> (D,D) split matrices
        rot_re = [None] * L
        rot_im = [None] * L
        rot_re[L - 1] = jnp.ones((Dh,), f32)
        rot_im[L - 1] = jnp.zeros((Dh,), f32)
        for i in range(L - 2, -1, -1):
            et = etypes_list[p][i]
            if et is None:
                rot_re[i], rot_im[i] = rot_re[i + 1], rot_im[i + 1]
            else:
                c, s = r_full[et, :, 0], r_full[et, :, 1]
                rot_re[i] = rot_re[i + 1] * c - rot_im[i + 1] * s
                rot_im[i] = rot_re[i + 1] * s + rot_im[i + 1] * c
        inv_l = 1.0 / float(L)
        mats = []
        for i in range(l_max):
            if i < L:
                c = rot_re[i] * inv_l
                s = rot_im[i] * inv_l
                top = jnp.concatenate([jnp.diag(c), jnp.diag(s)], axis=1)
                bot = jnp.concatenate([jnp.diag(-s), jnp.diag(c)], axis=1)
                mats.append(jnp.concatenate([top, bot], axis=0))          # (D, D)
            else:
                mats.append(jnp.zeros((D, D), f32))
        rot_list.append(jnp.stack(mats, axis=0))                          # (Lmax, D, D)

        attn = jnp.asarray(params['attn'][p], f32)                        # (1, H, D)
        attn_list.append(jnp.transpose(attn[0])[dperm, :])                # (D, H) split rows

    rot_all = jnp.stack(rot_list, axis=0)                                 # (P, Lmax, D, D)
    attn_all = jnp.stack(attn_list, axis=0)                               # (P, D, H)

    # constant expanders: head broadcast (H, HD) and hidden tile (D, HD)
    headexp = np.zeros((H, HD), np.float32)
    for h in range(H):
        headexp[h, h * D:(h + 1) * D] = 1.0
    tileexp = np.tile(np.eye(D, dtype=np.float32), (1, H))                # (D, HD)

    w1t_split = jnp.transpose(jnp.asarray(params['W1'], f32))[iperm_hd, :]     # (HD, A)
    b1 = jnp.asarray(params['b1'], f32).reshape(1, -1)
    w2 = jnp.asarray(params['W2'], f32).reshape(1, -1)
    wfct_split = jnp.transpose(jnp.asarray(params['Wfc'], f32))[iperm_hd, :]   # (HD, out_dim)
    bfc = jnp.asarray(params['bfc'], f32).reshape(1, -1)

    args = [x_blk, w_blk, jnp.asarray(idx_all.reshape(P * l_max * e_max, 1)),
            rot_all, attn_all,
            jnp.asarray(dm_all), jnp.asarray(dmt_all), jnp.asarray(samed_all),
            jnp.asarray(sel_all), jnp.asarray(valid_all),
            jnp.asarray(headexp), jnp.asarray(tileexp),
            w1t_split, b1, w2, wfct_split, bfc]

    vmem = pl.BlockSpec(memory_space=pltpu.MemorySpace.VMEM)
    kernel = functools.partial(
        magnn_nc_mb_kernel,
        num_metapaths=P, l_true=tuple(l_true), e_max=e_max, l_max=l_max, n_pad=n_pad,
        hidden_dim=D, use_bf16=use_bf16, leaky_slope=0.01)

    h_split, h_fc = pl.pallas_call(
        kernel,
        out_shape=(jax.ShapeDtypeStruct((T, HD), f32),
                   jax.ShapeDtypeStruct((T, out_dim), f32)),
        in_specs=[vmem] * len(args),
        out_specs=(vmem, vmem),
        compiler_params=pltpu.CompilerParams(vmem_limit_bytes=32 * 1024 * 1024),
    )(*args)

    # single activation-side permutation back to PyTorch interleaved column order
    h = jnp.take(h_split, jnp.asarray(perm_hd), axis=1)
    return h_fc, h


if __name__ == "__main__":
    key = jax.random.PRNGKey(0)
    ks = jax.random.split(key, 24)

    # MAGNN_nc_mb config (rnn_type='RotatE0')
    num_metapaths = 2
    num_edge_type = 4
    etypes_list = [[0, 1], [2, 3, 0]]
    feats_dim_list = [24, 20, 12]
    hidden_dim = 32
    out_dim = 16
    num_heads = 4
    attn_vec_dim = 32

    nodes_per_type = [16, 14, 10]
    num_all_nodes = sum(nodes_per_type)
    num_targets = 8
    edges_per_mp = [24, 32]
    graph_nodes_per_mp = [12, 16]

    D, Dh, H = hidden_dim, hidden_dim // 2, num_heads
    HD = H * D

    def xavier(k, shape, gain=1.414):
        fan_out = shape[0]
        fan_in = int(np.prod(shape[1:]))
        std = gain * float(np.sqrt(2.0 / (fan_in + fan_out)))
        return (std * jax.random.normal(k, shape)).astype(jnp.float32)

    type_mask = np.concatenate([np.full((n,), t, np.int32)
                                for t, n in enumerate(nodes_per_type)])
    features_list = [jax.random.normal(ks[t], (nodes_per_type[t], feats_dim_list[t]),
                                       dtype=jnp.float32) for t in range(len(nodes_per_type))]

    params = {
        'fc_W': [xavier(ks[3 + t], (hidden_dim, feats_dim_list[t])) for t in range(3)],
        'fc_b': [jnp.zeros((hidden_dim,), jnp.float32) for _ in range(3)],
        'r_vec': xavier(ks[6], (num_edge_type // 2, Dh, 2)),
        'attn': [xavier(ks[7], (1, H, D)), xavier(ks[8], (1, H, D))],
        'W1': xavier(ks[9], (attn_vec_dim, HD)),
        'b1': jnp.zeros((attn_vec_dim,), jnp.float32),
        'W2': xavier(ks[10], (1, attn_vec_dim)),
        'Wfc': xavier(ks[11], (out_dim, HD)),
        'bfc': jnp.zeros((out_dim,), jnp.float32),
    }

    graphs = []
    for p in range(num_metapaths):
        L = len(etypes_list[p]) + 1
        E = edges_per_mp[p]
        Ng = graph_nodes_per_mp[p]
        idx = jax.random.randint(ks[12 + 3 * p], (E, L), 0, num_all_nodes, dtype=jnp.int32)
        dst = jax.random.randint(ks[13 + 3 * p], (E,), 0, Ng, dtype=jnp.int32)
        tgt = jax.random.randint(ks[14 + 3 * p], (num_targets,), 0, Ng, dtype=jnp.int32)
        graphs.append((idx, dst, tgt, Ng))

    logits, h = magnn_nc_mb_forward(features_list, type_mask, graphs, params, etypes_list,
                                    hidden_dim, out_dim, num_heads, attn_vec_dim)
    jax.block_until_ready((logits, h))
    assert h.shape == (num_targets, HD) and logits.shape == (num_targets, out_dim)
    assert np.all(np.isfinite(np.asarray(h))) and np.all(np.isfinite(np.asarray(logits)))
    print("KERNEL_OK")
</pallas_src>

<mosaic_0001>
module attributes {stable_mosaic.version = 11 : i64} {
  func.func @magnn_nc_mb_kernel(%arg0: memref<48x75xf32, #tpu.memory_space<vmem>>, %arg1: memref<75x32xf32, #tpu.memory_space<vmem>>, %arg2: memref<256x1xi32, #tpu.memory_space<vmem>>, %arg3: memref<2x4x32x32xf32, #tpu.memory_space<vmem>>, %arg4: memref<2x32x4xf32, #tpu.memory_space<vmem>>, %arg5: memref<2x32x16xf32, #tpu.memory_space<vmem>>, %arg6: memref<2x16x32xf32, #tpu.memory_space<vmem>>, %arg7: memref<2x32x32xf32, #tpu.memory_space<vmem>>, %arg8: memref<2x8x32xf32, #tpu.memory_space<vmem>>, %arg9: memref<2x32x1xf32, #tpu.memory_space<vmem>>, %arg10: memref<4x128xf32, #tpu.memory_space<vmem>>, %arg11: memref<32x128xf32, #tpu.memory_space<vmem>>, %arg12: memref<128x32xf32, #tpu.memory_space<vmem>>, %arg13: memref<1x32xf32, #tpu.memory_space<vmem>>, %arg14: memref<1x32xf32, #tpu.memory_space<vmem>>, %arg15: memref<128x16xf32, #tpu.memory_space<vmem>>, %arg16: memref<1x16xf32, #tpu.memory_space<vmem>>, %arg17: memref<8x128xf32, #tpu.memory_space<vmem>>, %arg18: memref<8x16xf32, #tpu.memory_space<vmem>>) attributes {dimension_semantics = [], scalar_prefetch = 0 : i64, scratch_operands = 0 : i64, tpu.core_type = #tpu.core_type<tc>} {
    %c0 = arith.constant 0 : index
    %c0_0 = arith.constant 0 : index
    %0 = vector.load %arg0[%c0, %c0_0] : memref<48x75xf32, #tpu.memory_space<vmem>>, vector<48x75xf32>
    %c0_1 = arith.constant 0 : index
    %c0_2 = arith.constant 0 : index
    %1 = vector.load %arg1[%c0_1, %c0_2] : memref<75x32xf32, #tpu.memory_space<vmem>>, vector<75x32xf32>
    %cst = arith.constant dense<0.000000e+00> : vector<48x32xf32>
    %2 = tpu.matmul %0, %1, %cst {dimension_numbers = #tpu.dot_dimension_numbers<[1], [0], [0], [1], [0, 0, 1, 1], [], []>} : vector<48x75xf32>, vector<75x32xf32>, vector<48x32xf32> -> vector<48x32xf32>
    %c0_3 = arith.constant 0 : index
    %c0_4 = arith.constant 0 : index
    %3 = vector.load %arg2[%c0_3, %c0_4] : memref<256x1xi32, #tpu.memory_space<vmem>>, vector<256x1xi32>
    %4 = tpu.iota {dimensions = array<i32: 1>} : vector<256x48xi32>
    %5 = vector.broadcast %3 : vector<256x1xi32> to vector<256x48xi32>
    %6 = arith.cmpi eq, %5, %4 : vector<256x48xi32>
    %7 = arith.extui %6 : vector<256x48xi1> to vector<256x48xi32>
    %8 = arith.sitofp %7 : vector<256x48xi32> to vector<256x48xf32>
    %cst_5 = arith.constant dense<0.000000e+00> : vector<256x32xf32>
    %9 = tpu.matmul %8, %2, %cst_5 {dimension_numbers = #tpu.dot_dimension_numbers<[1], [0], [0], [1], [0, 0, 1, 1], [], []>} : vector<256x48xf32>, vector<48x32xf32>, vector<256x32xf32> -> vector<256x32xf32>
    %c0_6 = arith.constant 0 : index
    %c0_7 = arith.constant 0 : index
    %10 = vector.load %arg10[%c0_6, %c0_7] : memref<4x128xf32, #tpu.memory_space<vmem>>, vector<4x128xf32>
    %c0_8 = arith.constant 0 : index
    %c0_9 = arith.constant 0 : index
    %11 = vector.load %arg11[%c0_8, %c0_9] : memref<32x128xf32, #tpu.memory_space<vmem>>, vector<32x128xf32>
    %cst_10 = arith.constant 0.000000e+00 : f32
    %12 = vector.broadcast %cst_10 : f32 to vector<32x32xf32>
    %13 = vector.extract_strided_slice %9 {offsets = [0, 0], sizes = [32, 32], strides = [1, 1]} : vector<256x32xf32> to vector<32x32xf32>
    %c0_11 = arith.constant 0 : index
    %c0_12 = arith.constant 0 : index
    %c0_13 = arith.constant 0 : index
    %c0_14 = arith.constant 0 : index
    %14 = vector.load %arg3[%c0_11, %c0_12, %c0_13, %c0_14] : memref<2x4x32x32xf32, #tpu.memory_space<vmem>>, vector<1x1x32x32xf32>
    %15 = vector.shape_cast %14 : vector<1x1x32x32xf32> to vector<32x32xf32>
    %cst_15 = arith.constant dense<0.000000e+00> : vector<32x32xf32>
    %16 = tpu.matmul %13, %15, %cst_15 {dimension_numbers = #tpu.dot_dimension_numbers<[1], [0], [0], [1], [0, 0, 1, 1], [], []>} : vector<32x32xf32>, vector<32x32xf32>, vector<32x32xf32> -> vector<32x32xf32>
    %17 = arith.addf %12, %16 : vector<32x32xf32>
    %18 = vector.extract_strided_slice %9 {offsets = [32, 0], sizes = [32, 32], strides = [1, 1]} : vector<256x32xf32> to vector<32x32xf32>
    %c0_16 = arith.constant 0 : index
    %c1 = arith.constant 1 : index
    %c0_17 = arith.constant 0 : index
    %c0_18 = arith.constant 0 : index
    %19 = vector.load %arg3[%c0_16, %c1, %c0_17, %c0_18] : memref<2x4x32x32xf32, #tpu.memory_space<vmem>>, vector<1x1x32x32xf32>
    %20 = vector.shape_cast %19 : vector<1x1x32x32xf32> to vector<32x32xf32>
    %cst_19 = arith.constant dense<0.000000e+00> : vector<32x32xf32>
    %21 = tpu.matmul %18, %20, %cst_19 {dimension_numbers = #tpu.dot_dimension_numbers<[1], [0], [0], [1], [0, 0, 1, 1], [], []>} : vector<32x32xf32>, vector<32x32xf32>, vector<32x32xf32> -> vector<32x32xf32>
    %22 = arith.addf %17, %21 : vector<32x32xf32>
    %23 = vector.extract_strided_slice %9 {offsets = [64, 0], sizes = [32, 32], strides = [1, 1]} : vector<256x32xf32> to vector<32x32xf32>
    %c0_20 = arith.constant 0 : index
    %c2 = arith.constant 2 : index
    %c0_21 = arith.constant 0 : index
    %c0_22 = arith.constant 0 : index
    %24 = vector.load %arg3[%c0_20, %c2, %c0_21, %c0_22] : memref<2x4x32x32xf32, #tpu.memory_space<vmem>>, vector<1x1x32x32xf32>
    %25 = vector.shape_cast %24 : vector<1x1x32x32xf32> to vector<32x32xf32>
    %cst_23 = arith.constant dense<0.000000e+00> : vector<32x32xf32>
    %26 = tpu.matmul %23, %25, %cst_23 {dimension_numbers = #tpu.dot_dimension_numbers<[1], [0], [0], [1], [0, 0, 1, 1], [], []>} : vector<32x32xf32>, vector<32x32xf32>, vector<32x32xf32> -> vector<32x32xf32>
    %27 = arith.addf %22, %26 : vector<32x32xf32>
    %c0_24 = arith.constant 0 : index
    %c0_25 = arith.constant 0 : index
    %c0_26 = arith.constant 0 : index
    %28 = vector.load %arg4[%c0_24, %c0_25, %c0_26] : memref<2x32x4xf32, #tpu.memory_space<vmem>>, vector<1x32x4xf32>
    %29 = vector.shape_cast %28 : vector<1x32x4xf32> to vector<32x4xf32>
    %cst_27 = arith.constant dense<0.000000e+00> : vector<32x4xf32>
    %30 = tpu.matmul %27, %29, %cst_27 {dimension_numbers = #tpu.dot_dimension_numbers<[1], [0], [0], [1], [0, 0, 1, 1], [], []>} : vector<32x32xf32>, vector<32x4xf32>, vector<32x4xf32> -> vector<32x4xf32>
    %cst_28 = arith.constant 0.000000e+00 : f32
    %31 = vector.broadcast %cst_28 : f32 to vector<32x4xf32>
    %32 = arith.cmpf ogt, %30, %31 : vector<32x4xf32>
    %cst_29 = arith.constant 0.00999999977 : f32
    %33 = vector.broadcast %cst_29 : f32 to vector<32x4xf32>
    %34 = arith.mulf %33, %30 : vector<32x4xf32>
    %35 = arith.select %32, %30, %34 : vector<32x4xi1>, vector<32x4xf32>
    %c0_30 = arith.constant 0 : index
    %c0_31 = arith.constant 0 : index
    %c0_32 = arith.constant 0 : index
    %36 = vector.load %arg9[%c0_30, %c0_31, %c0_32] : memref<2x32x1xf32, #tpu.memory_space<vmem>>, vector<1x32x1xf32>
    %37 = vector.shape_cast %36 : vector<1x32x1xf32> to vector<32x1xf32>
    %c0_33 = arith.constant 0 : index
    %c0_34 = arith.constant 0 : index
    %c0_35 = arith.constant 0 : index
    %38 = vector.load %arg6[%c0_33, %c0_34, %c0_35] : memref<2x16x32xf32, #tpu.memory_space<vmem>>, vector<1x16x32xf32>
    %39 = vector.shape_cast %38 : vector<1x16x32xf32> to vector<16x32xf32>
    %cst_36 = arith.constant 1.000000e+00 : f32
    %40 = vector.broadcast %cst_36 : f32 to vector<16x32xf32>
    %41 = arith.subf %39, %40 : vector<16x32xf32>
    %cst_37 = arith.constant 1.000000e+30 : f32
    %42 = vector.broadcast %cst_37 : f32 to vector<16x32xf32>
    %43 = arith.mulf %41, %42 : vector<16x32xf32>
    %44 = vector.shape_cast %35 : vector<32x4xf32> to vector<1x32x4xf32>
    %45 = vector.shape_cast %43 : vector<16x32xf32> to vector<16x32x1xf32>
    %46 = vector.broadcast %44 : vector<1x32x4xf32> to vector<16x32x4xf32>
    %47 = vector.broadcast %45 : vector<16x32x1xf32> to vector<16x32x4xf32>
    %48 = arith.addf %46, %47 : vector<16x32x4xf32>
    %cst_38 = arith.constant dense<0xFF800000> : vector<16x4xf32>
    %49 = vector.multi_reduction <maximumf>, %48, %cst_38 [1] : vector<16x32x4xf32> to vector<16x4xf32>
    %c0_39 = arith.constant 0 : index
    %c0_40 = arith.constant 0 : index
    %c0_41 = arith.constant 0 : index
    %50 = vector.load %arg5[%c0_39, %c0_40, %c0_41] : memref<2x32x16xf32, #tpu.memory_space<vmem>>, vector<1x32x16xf32>
    %51 = vector.shape_cast %50 : vector<1x32x16xf32> to vector<32x16xf32>
    %cst_42 = arith.constant dense<0.000000e+00> : vector<32x4xf32>
    %52 = tpu.matmul %51, %49, %cst_42 {dimension_numbers = #tpu.dot_dimension_numbers<[1], [0], [0], [1], [0, 0, 1, 1], [], []>} : vector<32x16xf32>, vector<16x4xf32>, vector<32x4xf32> -> vector<32x4xf32>
    %cst_43 = arith.constant 0.000000e+00 : f32
    %53 = vector.broadcast %cst_43 : f32 to vector<32x1xf32>
    %54 = arith.cmpf ogt, %37, %53 : vector<32x1xf32>
    %55 = arith.subf %35, %52 : vector<32x4xf32>
    %cst_44 = arith.constant -1.000000e+30 : f32
    %56 = vector.shape_cast %54 : vector<32x1xi1> to vector<32x1xi1>
    %57 = vector.broadcast %56 : vector<32x1xi1> to vector<32x4xi1>
    %58 = vector.broadcast %cst_44 : f32 to vector<32x4xf32>
    %59 = arith.select %57, %55, %58 : vector<32x4xi1>, vector<32x4xf32>
    %60 = math.exp %59 : vector<32x4xf32>
    %c0_45 = arith.constant 0 : index
    %c0_46 = arith.constant 0 : index
    %c0_47 = arith.constant 0 : index
    %61 = vector.load %arg7[%c0_45, %c0_46, %c0_47] : memref<2x32x32xf32, #tpu.memory_space<vmem>>, vector<1x32x32xf32>
    %62 = vector.shape_cast %61 : vector<1x32x32xf32> to vector<32x32xf32>
    %cst_48 = arith.constant dense<0.000000e+00> : vector<32x4xf32>
    %63 = tpu.matmul %62, %60, %cst_48 {dimension_numbers = #tpu.dot_dimension_numbers<[1], [0], [0], [1], [0, 0, 1, 1], [], []>} : vector<32x32xf32>, vector<32x4xf32>, vector<32x4xf32> -> vector<32x4xf32>
    %cst_49 = arith.constant 1.000000e+00 : f32
    %64 = vector.broadcast %cst_49 : f32 to vector<32x1xf32>
    %65 = arith.subf %64, %37 : vector<32x1xf32>
    %66 = vector.broadcast %65 : vector<32x1xf32> to vector<32x4xf32>
    %67 = arith.addf %63, %66 : vector<32x4xf32>
    %68 = arith.divf %60, %67 : vector<32x4xf32>
    %cst_50 = arith.constant dense<0.000000e+00> : vector<32x128xf32>
    %69 = tpu.matmul %68, %10, %cst_50 {dimension_numbers = #tpu.dot_dimension_numbers<[1], [0], [0], [1], [0, 0, 1, 1], [], []>} : vector<32x4xf32>, vector<4x128xf32>, vector<32x128xf32> -> vector<32x128xf32>
    %cst_51 = arith.constant dense<0.000000e+00> : vector<32x128xf32>
    %70 = tpu.matmul %27, %11, %cst_51 {dimension_numbers = #tpu.dot_dimension_numbers<[1], [0], [0], [1], [0, 0, 1, 1], [], []>} : vector<32x32xf32>, vector<32x128xf32>, vector<32x128xf32> -> vector<32x128xf32>
    %c0_52 = arith.constant 0 : index
    %c0_53 = arith.constant 0 : index
    %c0_54 = arith.constant 0 : index
    %71 = vector.load %arg8[%c0_52, %c0_53, %c0_54] : memref<2x8x32xf32, #tpu.memory_space<vmem>>, vector<1x8x32xf32>
    %72 = vector.shape_cast %71 : vector<1x8x32xf32> to vector<8x32xf32>
    %73 = arith.mulf %69, %70 : vector<32x128xf32>
    %cst_55 = arith.constant dense<0.000000e+00> : vector<8x128xf32>
    %74 = tpu.matmul %72, %73, %cst_55 {dimension_numbers = #tpu.dot_dimension_numbers<[1], [0], [0], [1], [0, 0, 1, 1], [], []>} : vector<8x32xf32>, vector<32x128xf32>, vector<8x128xf32> -> vector<8x128xf32>
    %cst_56 = arith.constant 0.000000e+00 : f32
    %75 = vector.broadcast %cst_56 : f32 to vector<8x128xf32>
    %76 = arith.cmpf ogt, %74, %75 : vector<8x128xf32>
    %cst_57 = arith.constant 0.000000e+00 : f32
    %77 = vector.broadcast %cst_57 : f32 to vector<8x128xf32>
    %78 = arith.minimumf %74, %77 : vector<8x128xf32>
    %79 = math.exp %78 : vector<8x128xf32>
    %cst_58 = arith.constant 1.000000e+00 : f32
    %80 = vector.broadcast %cst_58 : f32 to vector<8x128xf32>
    %81 = arith.subf %79, %80 : vector<8x128xf32>
    %82 = arith.select %76, %74, %81 : vector<8x128xi1>, vector<8x128xf32>
    %cst_59 = arith.constant 0.000000e+00 : f32
    %83 = vector.broadcast %cst_59 : f32 to vector<32x32xf32>
    %84 = vector.extract_strided_slice %9 {offsets = [128, 0], sizes = [32, 32], strides = [1, 1]} : vector<256x32xf32> to vector<32x32xf32>
    %c1_60 = arith.constant 1 : index
    %c0_61 = arith.constant 0 : index
    %c0_62 = arith.constant 0 : index
    %c0_63 = arith.constant 0 : index
    %85 = vector.load %arg3[%c1_60, %c0_61, %c0_62, %c0_63] : memref<2x4x32x32xf32, #tpu.memory_space<vmem>>, vector<1x1x32x32xf32>
    %86 = vector.shape_cast %85 : vector<1x1x32x32xf32> to vector<32x32xf32>
    %cst_64 = arith.constant dense<0.000000e+00> : vector<32x32xf32>
    %87 = tpu.matmul %84, %86, %cst_64 {dimension_numbers = #tpu.dot_dimension_numbers<[1], [0], [0], [1], [0, 0, 1, 1], [], []>} : vector<32x32xf32>, vector<32x32xf32>, vector<32x32xf32> -> vector<32x32xf32>
    %88 = arith.addf %83, %87 : vector<32x32xf32>
    %89 = vector.extract_strided_slice %9 {offsets = [160, 0], sizes = [32, 32], strides = [1, 1]} : vector<256x32xf32> to vector<32x32xf32>
    %c1_65 = arith.constant 1 : index
    %c1_66 = arith.constant 1 : index
    %c0_67 = arith.constant 0 : index
    %c0_68 = arith.constant 0 : index
    %90 = vector.load %arg3[%c1_65, %c1_66, %c0_67, %c0_68] : memref<2x4x32x32xf32, #tpu.memory_space<vmem>>, vector<1x1x32x32xf32>
    %91 = vector.shape_cast %90 : vector<1x1x32x32xf32> to vector<32x32xf32>
    %cst_69 = arith.constant dense<0.000000e+00> : vector<32x32xf32>
    %92 = tpu.matmul %89, %91, %cst_69 {dimension_numbers = #tpu.dot_dimension_numbers<[1], [0], [0], [1], [0, 0, 1, 1], [], []>} : vector<32x32xf32>, vector<32x32xf32>, vector<32x32xf32> -> vector<32x32xf32>
    %93 = arith.addf %88, %92 : vector<32x32xf32>
    %94 = vector.extract_strided_slice %9 {offsets = [192, 0], sizes = [32, 32], strides = [1, 1]} : vector<256x32xf32> to vector<32x32xf32>
    %c1_70 = arith.constant 1 : index
    %c2_71 = arith.constant 2 : index
    %c0_72 = arith.constant 0 : index
    %c0_73 = arith.constant 0 : index
    %95 = vector.load %arg3[%c1_70, %c2_71, %c0_72, %c0_73] : memref<2x4x32x32xf32, #tpu.memory_space<vmem>>, vector<1x1x32x32xf32>
    %96 = vector.shape_cast %95 : vector<1x1x32x32xf32> to vector<32x32xf32>
    %cst_74 = arith.constant dense<0.000000e+00> : vector<32x32xf32>
    %97 = tpu.matmul %94, %96, %cst_74 {dimension_numbers = #tpu.dot_dimension_numbers<[1], [0], [0], [1], [0, 0, 1, 1], [], []>} : vector<32x32xf32>, vector<32x32xf32>, vector<32x32xf32> -> vector<32x32xf32>
    %98 = arith.addf %93, %97 : vector<32x32xf32>
    %99 = vector.extract_strided_slice %9 {offsets = [224, 0], sizes = [32, 32], strides = [1, 1]} : vector<256x32xf32> to vector<32x32xf32>
    %c1_75 = arith.constant 1 : index
    %c3 = arith.constant 3 : index
    %c0_76 = arith.constant 0 : index
    %c0_77 = arith.constant 0 : index
    %100 = vector.load %arg3[%c1_75, %c3, %c0_76, %c0_77] : memref<2x4x32x32xf32, #tpu.memory_space<vmem>>, vector<1x1x32x32xf32>
    %101 = vector.shape_cast %100 : vector<1x1x32x32xf32> to vector<32x32xf32>
    %cst_78 = arith.constant dense<0.000000e+00> : vector<32x32xf32>
    %102 = tpu.matmul %99, %101, %cst_78 {dimension_numbers = #tpu.dot_dimension_numbers<[1], [0], [0], [1], [0, 0, 1, 1], [], []>} : vector<32x32xf32>, vector<32x32xf32>, vector<32x32xf32> -> vector<32x32xf32>
    %103 = arith.addf %98, %102 : vector<32x32xf32>
    %c1_79 = arith.constant 1 : index
    %c0_80 = arith.constant 0 : index
    %c0_81 = arith.constant 0 : index
    %104 = vector.load %arg4[%c1_79, %c0_80, %c0_81] : memref<2x32x4xf32, #tpu.memory_space<vmem>>, vector<1x32x4xf32>
    %105 = vector.shape_cast %104 : vector<1x32x4xf32> to vector<32x4xf32>
    %cst_82 = arith.constant dense<0.000000e+00> : vector<32x4xf32>
    %106 = tpu.matmul %103, %105, %cst_82 {dimension_numbers = #tpu.dot_dimension_numbers<[1], [0], [0], [1], [0, 0, 1, 1], [], []>} : vector<32x32xf32>, vector<32x4xf32>, vector<32x4xf32> -> vector<32x4xf32>
    %cst_83 = arith.constant 0.000000e+00 : f32
    %107 = vector.broadcast %cst_83 : f32 to vector<32x4xf32>
    %108 = arith.cmpf ogt, %106, %107 : vector<32x4xf32>
    %cst_84 = arith.constant 0.00999999977 : f32
    %109 = vector.broadcast %cst_84 : f32 to vector<32x4xf32>
    %110 = arith.mulf %109, %106 : vector<32x4xf32>
    %111 = arith.select %108, %106, %110 : vector<32x4xi1>, vector<32x4xf32>
    %c1_85 = arith.constant 1 : index
    %c0_86 = arith.constant 0 : index
    %c0_87 = arith.constant 0 : index
    %112 = vector.load %arg9[%c1_85, %c0_86, %c0_87] : memref<2x32x1xf32, #tpu.memory_space<vmem>>, vector<1x32x1xf32>
    %113 = vector.shape_cast %112 : vector<1x32x1xf32> to vector<32x1xf32>
    %c1_88 = arith.constant 1 : index
    %c0_89 = arith.constant 0 : index
    %c0_90 = arith.constant 0 : index
    %114 = vector.load %arg6[%c1_88, %c0_89, %c0_90] : memref<2x16x32xf32, #tpu.memory_space<vmem>>, vector<1x16x32xf32>
    %115 = vector.shape_cast %114 : vector<1x16x32xf32> to vector<16x32xf32>
    %cst_91 = arith.constant 1.000000e+00 : f32
    %116 = vector.broadcast %cst_91 : f32 to vector<16x32xf32>
    %117 = arith.subf %115, %116 : vector<16x32xf32>
    %cst_92 = arith.constant 1.000000e+30 : f32
    %118 = vector.broadcast %cst_92 : f32 to vector<16x32xf32>
    %119 = arith.mulf %117, %118 : vector<16x32xf32>
    %120 = vector.shape_cast %111 : vector<32x4xf32> to vector<1x32x4xf32>
    %121 = vector.shape_cast %119 : vector<16x32xf32> to vector<16x32x1xf32>
    %122 = vector.broadcast %120 : vector<1x32x4xf32> to vector<16x32x4xf32>
    %123 = vector.broadcast %121 : vector<16x32x1xf32> to vector<16x32x4xf32>
    %124 = arith.addf %122, %123 : vector<16x32x4xf32>
    %cst_93 = arith.constant dense<0xFF800000> : vector<16x4xf32>
    %125 = vector.multi_reduction <maximumf>, %124, %cst_93 [1] : vector<16x32x4xf32> to vector<16x4xf32>
    %c1_94 = arith.constant 1 : index
    %c0_95 = arith.constant 0 : index
    %c0_96 = arith.constant 0 : index
    %126 = vector.load %arg5[%c1_94, %c0_95, %c0_96] : memref<2x32x16xf32, #tpu.memory_space<vmem>>, vector<1x32x16xf32>
    %127 = vector.shape_cast %126 : vector<1x32x16xf32> to vector<32x16xf32>
    %cst_97 = arith.constant dense<0.000000e+00> : vector<32x4xf32>
    %128 = tpu.matmul %127, %125, %cst_97 {dimension_numbers = #tpu.dot_dimension_numbers<[1], [0], [0], [1], [0, 0, 1, 1], [], []>} : vector<32x16xf32>, vector<16x4xf32>, vector<32x4xf32> -> vector<32x4xf32>
    %cst_98 = arith.constant 0.000000e+00 : f32
    %129 = vector.broadcast %cst_98 : f32 to vector<32x1xf32>
    %130 = arith.cmpf ogt, %113, %129 : vector<32x1xf32>
    %131 = arith.subf %111, %128 : vector<32x4xf32>
    %cst_99 = arith.constant -1.000000e+30 : f32
    %132 = vector.shape_cast %130 : vector<32x1xi1> to vector<32x1xi1>
    %133 = vector.broadcast %132 : vector<32x1xi1> to vector<32x4xi1>
    %134 = vector.broadcast %cst_99 : f32 to vector<32x4xf32>
    %135 = arith.select %133, %131, %134 : vector<32x4xi1>, vector<32x4xf32>
    %136 = math.exp %135 : vector<32x4xf32>
    %c1_100 = arith.constant 1 : index
    %c0_101 = arith.constant 0 : index
    %c0_102 = arith.constant 0 : index
    %137 = vector.load %arg7[%c1_100, %c0_101, %c0_102] : memref<2x32x32xf32, #tpu.memory_space<vmem>>, vector<1x32x32xf32>
    %138 = vector.shape_cast %137 : vector<1x32x32xf32> to vector<32x32xf32>
    %cst_103 = arith.constant dense<0.000000e+00> : vector<32x4xf32>
    %139 = tpu.matmul %138, %136, %cst_103 {dimension_numbers = #tpu.dot_dimension_numbers<[1], [0], [0], [1], [0, 0, 1, 1], [], []>} : vector<32x32xf32>, vector<32x4xf32>, vector<32x4xf32> -> vector<32x4xf32>
    %cst_104 = arith.constant 1.000000e+00 : f32
    %140 = vector.broadcast %cst_104 : f32 to vector<32x1xf32>
    %141 = arith.subf %140, %113 : vector<32x1xf32>
    %142 = vector.broadcast %141 : vector<32x1xf32> to vector<32x4xf32>
    %143 = arith.addf %139, %142 : vector<32x4xf32>
    %144 = arith.divf %136, %143 : vector<32x4xf32>
    %cst_105 = arith.constant dense<0.000000e+00> : vector<32x128xf32>
    %145 = tpu.matmul %144, %10, %cst_105 {dimension_numbers = #tpu.dot_dimension_numbers<[1], [0], [0], [1], [0, 0, 1, 1], [], []>} : vector<32x4xf32>, vector<4x128xf32>, vector<32x128xf32> -> vector<32x128xf32>
    %cst_106 = arith.constant dense<0.000000e+00> : vector<32x128xf32>
    %146 = tpu.matmul %103, %11, %cst_106 {dimension_numbers = #tpu.dot_dimension_numbers<[1], [0], [0], [1], [0, 0, 1, 1], [], []>} : vector<32x32xf32>, vector<32x128xf32>, vector<32x128xf32> -> vector<32x128xf32>
    %c1_107 = arith.constant 1 : index
    %c0_108 = arith.constant 0 : index
    %c0_109 = arith.constant 0 : index
    %147 = vector.load %arg8[%c1_107, %c0_108, %c0_109] : memref<2x8x32xf32, #tpu.memory_space<vmem>>, vector<1x8x32xf32>
    %148 = vector.shape_cast %147 : vector<1x8x32xf32> to vector<8x32xf32>
    %149 = arith.mulf %145, %146 : vector<32x128xf32>
    %cst_110 = arith.constant dense<0.000000e+00> : vector<8x128xf32>
    %150 = tpu.matmul %148, %149, %cst_110 {dimension_numbers = #tpu.dot_dimension_numbers<[1], [0], [0], [1], [0, 0, 1, 1], [], []>} : vector<8x32xf32>, vector<32x128xf32>, vector<8x128xf32> -> vector<8x128xf32>
    %cst_111 = arith.constant 0.000000e+00 : f32
    %151 = vector.broadcast %cst_111 : f32 to vector<8x128xf32>
    %152 = arith.cmpf ogt, %150, %151 : vector<8x128xf32>
    %cst_112 = arith.constant 0.000000e+00 : f32
    %153 = vector.broadcast %cst_112 : f32 to vector<8x128xf32>
    %154 = arith.minimumf %150, %153 : vector<8x128xf32>
    %155 = math.exp %154 : vector<8x128xf32>
    %cst_113 = arith.constant 1.000000e+00 : f32
    %156 = vector.broadcast %cst_113 : f32 to vector<8x128xf32>
    %157 = arith.subf %155, %156 : vector<8x128xf32>
    %158 = arith.select %152, %150, %157 : vector<8x128xi1>, vector<8x128xf32>
    %c0_114 = arith.constant 0 : index
    %c0_115 = arith.constant 0 : index
    %159 = vector.load %arg12[%c0_114, %c0_115] : memref<128x32xf32, #tpu.memory_space<vmem>>, vector<128x32xf32>
    %c0_116 = arith.constant 0 : index
    %c0_117 = arith.constant 0 : index
    %160 = vector.load %arg13[%c0_116, %c0_117] : memref<1x32xf32, #tpu.memory_space<vmem>>, vector<1x32xf32>
    %c0_118 = arith.constant 0 : index
    %c0_119 = arith.constant 0 : index
    %161 = vector.load %arg14[%c0_118, %c0_119] : memref<1x32xf32, #tpu.memory_space<vmem>>, vector<1x32xf32>
    %cst_120 = arith.constant dense<0.000000e+00> : vector<8x32xf32>
    %162 = tpu.matmul %82, %159, %cst_120 {dimension_numbers = #tpu.dot_dimension_numbers<[1], [0], [0], [1], [0, 0, 1, 1], [], []>} : vector<8x128xf32>, vector<128x32xf32>, vector<8x32xf32> -> vector<8x32xf32>
    %163 = vector.broadcast %160 : vector<1x32xf32> to vector<8x32xf32>
    %164 = arith.addf %162, %163 : vector<8x32xf32>
    %165 = math.tanh %164 : vector<8x32xf32>
    %cst_121 = arith.constant dense<0.000000e+00> : vector<32xf32>
    %166 = vector.multi_reduction <add>, %165, %cst_121 [0] : vector<8x32xf32> to vector<32xf32>
    %167 = vector.shape_cast %166 : vector<32xf32> to vector<1x32xf32>
    %cst_122 = arith.constant 8.000000e+00 : f32
    %168 = vector.broadcast %cst_122 : f32 to vector<1x32xf32>
    %169 = arith.divf %167, %168 : vector<1x32xf32>
    %170 = arith.mulf %169, %161 : vector<1x32xf32>
    %cst_123 = arith.constant dense<0.000000e+00> : vector<1xf32>
    %171 = vector.multi_reduction <add>, %170, %cst_123 [1] : vector<1x32xf32> to vector<1xf32>
    %172 = vector.shape_cast %171 : vector<1xf32> to vector<1x1xf32>
    %cst_124 = arith.constant dense<0.000000e+00> : vector<8x32xf32>
    %173 = tpu.matmul %158, %159, %cst_124 {dimension_numbers = #tpu.dot_dimension_numbers<[1], [0], [0], [1], [0, 0, 1, 1], [], []>} : vector<8x128xf32>, vector<128x32xf32>, vector<8x32xf32> -> vector<8x32xf32>
    %174 = vector.broadcast %160 : vector<1x32xf32> to vector<8x32xf32>
    %175 = arith.addf %173, %174 : vector<8x32xf32>
    %176 = math.tanh %175 : vector<8x32xf32>
    %cst_125 = arith.constant dense<0.000000e+00> : vector<32xf32>
    %177 = vector.multi_reduction <add>, %176, %cst_125 [0] : vector<8x32xf32> to vector<32xf32>
    %178 = vector.shape_cast %177 : vector<32xf32> to vector<1x32xf32>
    %cst_126 = arith.constant 8.000000e+00 : f32
    %179 = vector.broadcast %cst_126 : f32 to vector<1x32xf32>
    %180 = arith.divf %178, %179 : vector<1x32xf32>
    %181 = arith.mulf %180, %161 : vector<1x32xf32>
    %cst_127 = arith.constant dense<0.000000e+00> : vector<1xf32>
    %182 = vector.multi_reduction <add>, %181, %cst_127 [1] : vector<1x32xf32> to vector<1xf32>
    %183 = vector.shape_cast %182 : vector<1xf32> to vector<1x1xf32>
    %184 = arith.maximumf %172, %183 : vector<1x1xf32>
    %185 = arith.subf %172, %184 : vector<1x1xf32>
    %186 = math.exp %185 : vector<1x1xf32>
    %187 = arith.subf %183, %184 : vector<1x1xf32>
    %188 = math.exp %187 : vector<1x1xf32>
    %189 = arith.addf %186, %188 : vector<1x1xf32>
    %cst_128 = arith.constant 0.000000e+00 : f32
    %190 = vector.broadcast %cst_128 : f32 to vector<8x128xf32>
    %191 = arith.divf %186, %189 : vector<1x1xf32>
    %192 = vector.broadcast %191 : vector<1x1xf32> to vector<8x128xf32>
    %193 = arith.mulf %192, %82 : vector<8x128xf32>
    %194 = arith.addf %190, %193 : vector<8x128xf32>
    %195 = arith.divf %188, %189 : vector<1x1xf32>
    %196 = vector.broadcast %195 : vector<1x1xf32> to vector<8x128xf32>
    %197 = arith.mulf %196, %158 : vector<8x128xf32>
    %198 = arith.addf %194, %197 : vector<8x128xf32>
    %c0_129 = arith.constant 0 : index
    %c0_130 = arith.constant 0 : index
    %199 = vector.load %arg17[%c0_129, %c0_130] : memref<8x128xf32, #tpu.memory_space<vmem>>, vector<8x128xf32>
    tpu.vector_store %arg17[%c0_129, %c0_130], %198 {strides = array<i32>} : memref<8x128xf32, #tpu.memory_space<vmem>>, vector<8x128xf32>,
    %c0_131 = arith.constant 0 : index
    %c0_132 = arith.constant 0 : index
    %200 = vector.load %arg15[%c0_131, %c0_132] : memref<128x16xf32, #tpu.memory_space<vmem>>, vector<128x16xf32>
    %cst_133 = arith.constant dense<0.000000e+00> : vector<8x16xf32>
    %201 = tpu.matmul %198, %200, %cst_133 {dimension_numbers = #tpu.dot_dimension_numbers<[1], [0], [0], [1], [0, 0, 1, 1], [], []>} : vector<8x128xf32>, vector<128x16xf32>, vector<8x16xf32> -> vector<8x16xf32>
    %c0_134 = arith.constant 0 : index
    %c0_135 = arith.constant 0 : index
    %202 = vector.load %arg16[%c0_134, %c0_135] : memref<1x16xf32, #tpu.memory_space<vmem>>, vector<1x16xf32>
    %203 = vector.broadcast %202 : vector<1x16xf32> to vector<8x16xf32>
    %204 = arith.addf %201, %203 : vector<8x16xf32>
    %c0_136 = arith.constant 0 : index
    %c0_137 = arith.constant 0 : index
    %205 = vector.load %arg18[%c0_136, %c0_137] : memref<8x16xf32, #tpu.memory_space<vmem>>, vector<8x16xf32>
    tpu.vector_store %arg18[%c0_136, %c0_137], %204 {strides = array<i32>} : memref<8x16xf32, #tpu.memory_space<vmem>>, vector<8x16xf32>,
    return
  }
}

</mosaic_0001>

<llo_original>
// kernel: tpu_custom_call.1
$region0: #{tpu_custom_call.1}
  #allocation0 [shape = 'u32[]', space=smem, size = 0x4, offset = 0x4, fixed_abs, tag = 'smem constant byte address 0x4 - core index']
  #allocation1 [shape = 'u32[72,128]{1,0:T(1,128)}', space=vmem, size = 0x9000, scoped, tag = 'internal scratch']
  %s0 = inlined_call_operand.vmem [shape: f32[48,75], index: 0, kind: input, shape index: {}]
  %s1 = inlined_call_operand.vmem [shape: f32[75,32], index: 1, kind: input, shape index: {}]
  %s2 = inlined_call_operand.vmem [shape: s32[256,1], index: 2, kind: input, shape index: {}]
  %s3 = inlined_call_operand.vmem [shape: f32[2,4,32,32], index: 3, kind: input, shape index: {}]
  %s4 = inlined_call_operand.vmem [shape: f32[2,32,4], index: 4, kind: input, shape index: {}]
  %s5 = inlined_call_operand.vmem [shape: f32[2,32,16], index: 5, kind: input, shape index: {}]
  %s6 = inlined_call_operand.vmem [shape: f32[2,16,32], index: 6, kind: input, shape index: {}]
  %s7 = inlined_call_operand.vmem [shape: f32[2,32,32], index: 7, kind: input, shape index: {}]
  %s8 = inlined_call_operand.vmem [shape: f32[2,8,32], index: 8, kind: input, shape index: {}]
  %s9 = inlined_call_operand.vmem [shape: f32[2,32,1], index: 9, kind: input, shape index: {}]
  %s10 = inlined_call_operand.vmem [shape: f32[4,128], index: 10, kind: input, shape index: {}]
  %s11 = inlined_call_operand.vmem [shape: f32[32,128], index: 11, kind: input, shape index: {}]
  %s12 = inlined_call_operand.vmem [shape: f32[128,32], index: 12, kind: input, shape index: {}]
  %s13 = inlined_call_operand.vmem [shape: f32[1,32], index: 13, kind: input, shape index: {}]
  %s14 = inlined_call_operand.vmem [shape: f32[1,32], index: 14, kind: input, shape index: {}]
  %s15 = inlined_call_operand.vmem [shape: f32[128,16], index: 15, kind: input, shape index: {}]
  %s16 = inlined_call_operand.vmem [shape: f32[1,16], index: 16, kind: input, shape index: {}]
  %s17 = inlined_call_operand.hbm [shape: f32[8,128], index: 17, kind: output, shape index: {0}]
  %s18 = inlined_call_operand.hbm [shape: f32[8,16], index: 18, kind: output, shape index: {1}]
  %19 = xla_tuple %s17, %s18
  %s20 = sld [smem:[#allocation0]]
  $region86: #{tpu_custom_call.1} parent=0
    _
  %s22 = ssub.s32 1, %s20
  %s23 = scalar_select 0, %s22, %s20
  $region1: #{tpu_custom_call.1} parent=0
    #allocation2 [shape = 'u8[4096]{0}', space=vmem, size = 0x1000, scoped, tag = 'output window, operand 0, single buffered']
    #allocation3 [shape = 's32[1]{0}', space=sflag, size = 0x4, scoped, tag = 'scoped memory for tpu_custom_call.1']
    #allocation4 [shape = 'u8[4096]{0}', space=vmem, size = 0x1000, scoped, tag = 'output window, operand 1, single buffered']
    #allocation5 [shape = 's32[1]{0}', space=sflag, size = 0x4, scoped, tag = 'scoped memory for tpu_custom_call.1']
    %24 = vsyncpa [#allocation3], 0
    %25 = vsyncpa [#allocation5], 0
    // Predicated region
    $region2: #{tpu_custom_call.1} parent=1 // pred_check
      _
    $region3: #{tpu_custom_call.1} parent=1 // pred_check_branch
      %27 = sbr.rel (0) target = $region5
    $region4: #{tpu_custom_call.1} parent=1 // pred_region
      _
    $region5: #{tpu_custom_call.1} parent=1 // pred_fallthru
      _
    // Predicated region
    $region6: #{tpu_custom_call.1} parent=1 // pred_check
      _
    $region7: #{tpu_custom_call.1} parent=1 // pred_check_branch
      %29 = sbr.rel (0) target = $region9
    $region8: #{tpu_custom_call.1} parent=1 // pred_region
      _
    $region9: #{tpu_custom_call.1} parent=1 // pred_fallthru
      _
    // Predicated region
    $region10: #{tpu_custom_call.1} parent=1 // pred_check
      _
    $region11: #{tpu_custom_call.1} parent=1 // pred_check_branch
      %31 = sbr.rel (0) target = $region13
    $region12: #{tpu_custom_call.1} parent=1 // pred_region
      _
    $region13: #{tpu_custom_call.1} parent=1 // pred_fallthru
      _
    // Predicated region
    $region14: #{tpu_custom_call.1} parent=1 // pred_check
      _
    $region15: #{tpu_custom_call.1} parent=1 // pred_check_branch
      %33 = sbr.rel (0) target = $region17
    $region16: #{tpu_custom_call.1} parent=1 // pred_region
      _
    $region17: #{tpu_custom_call.1} parent=1 // pred_fallthru
      _
    // Predicated region
    $region18: #{tpu_custom_call.1} parent=1 // pred_check
      _
    $region19: #{tpu_custom_call.1} parent=1 // pred_check_branch
      %35 = sbr.rel (0) target = $region21
    $region20: #{tpu_custom_call.1} parent=1 // pred_region
      _
    $region21: #{tpu_custom_call.1} parent=1 // pred_fallthru
      _
    // Predicated region
    $region22: #{tpu_custom_call.1} parent=1 // pred_check
      _
    $region23: #{tpu_custom_call.1} parent=1 // pred_check_branch
      %37 = sbr.rel (0) target = $region25
    $region24: #{tpu_custom_call.1} parent=1 // pred_region
      _
    $region25: #{tpu_custom_call.1} parent=1 // pred_fallthru
      _
    // Predicated region
    $region26: #{tpu_custom_call.1} parent=1 // pred_check
      _
    $region27: #{tpu_custom_call.1} parent=1 // pred_check_branch
      %39 = sbr.rel (0) target = $region29
    $region28: #{tpu_custom_call.1} parent=1 // pred_region
      _
    $region29: #{tpu_custom_call.1} parent=1 // pred_fallthru
      _
    // Predicated region
    $region30: #{tpu_custom_call.1} parent=1 // pred_check
      _
    $region31: #{tpu_custom_call.1} parent=1 // pred_check_branch
      %41 = sbr.rel (0) target = $region33
    $region32: #{tpu_custom_call.1} parent=1 // pred_region
      _
    $region33: #{tpu_custom_call.1} parent=1 // pred_fallthru
      _
    // Predicated region
    $region34: #{tpu_custom_call.1} parent=1 // pred_check
      _
    $region35: #{tpu_custom_call.1} parent=1 // pred_check_branch
      %43 = sbr.rel (0) target = $region37
    $region36: #{tpu_custom_call.1} parent=1 // pred_region
      _
    $region37: #{tpu_custom_call.1} parent=1 // pred_fallthru
      _
    // Predicated region
    $region38: #{tpu_custom_call.1} parent=1 // pred_check
      _
    $region39: #{tpu_custom_call.1} parent=1 // pred_check_branch
      %45 = sbr.rel (0) target = $region41
    $region40: #{tpu_custom_call.1} parent=1 // pred_region
      _
    $region41: #{tpu_custom_call.1} parent=1 // pred_fallthru
      _
    // Predicated region
    $region42: #{tpu_custom_call.1} parent=1 // pred_check
      _
    $region43: #{tpu_custom_call.1} parent=1 // pred_check_branch
      %47 = sbr.rel (0) target = $region45
    $region44: #{tpu_custom_call.1} parent=1 // pred_region
      _
    $region45: #{tpu_custom_call.1} parent=1 // pred_fallthru
      _
    // Predicated region
    $region46: #{tpu_custom_call.1} parent=1 // pred_check
      _
    $region47: #{tpu_custom_call.1} parent=1 // pred_check_branch
      %49 = sbr.rel (0) target = $region49
    $region48: #{tpu_custom_call.1} parent=1 // pred_region
      _
    $region49: #{tpu_custom_call.1} parent=1 // pred_fallthru
      _
    // Predicated region
    $region50: #{tpu_custom_call.1} parent=1 // pred_check
      _
    $region51: #{tpu_custom_call.1} parent=1 // pred_check_branch
      %51 = sbr.rel (0) target = $region53
    $region52: #{tpu_custom_call.1} parent=1 // pred_region
      _
    $region53: #{tpu_custom_call.1} parent=1 // pred_fallthru
      _
    // Predicated region
    $region54: #{tpu_custom_call.1} parent=1 // pred_check
      _
    $region55: #{tpu_custom_call.1} parent=1 // pred_check_branch
      %53 = sbr.rel (0) target = $region57
    $region56: #{tpu_custom_call.1} parent=1 // pred_region
      _
    $region57: #{tpu_custom_call.1} parent=1 // pred_fallthru
      _
    // Predicated region
    $region58: #{tpu_custom_call.1} parent=1 // pred_check
      _
    $region59: #{tpu_custom_call.1} parent=1 // pred_check_branch
      %55 = sbr.rel (0) target = $region61
    $region60: #{tpu_custom_call.1} parent=1 // pred_region
      _
    $region61: #{tpu_custom_call.1} parent=1 // pred_fallthru
      _
    // Predicated region
    $region62: #{tpu_custom_call.1} parent=1 // pred_check
      _
    $region63: #{tpu_custom_call.1} parent=1 // pred_check_branch
      %57 = sbr.rel (0) target = $region65
    $region64: #{tpu_custom_call.1} parent=1 // pred_region
      _
    $region65: #{tpu_custom_call.1} parent=1 // pred_fallthru
      _
    // Predicated region
    $region66: #{tpu_custom_call.1} parent=1 // pred_check
      _
    $region67: #{tpu_custom_call.1} parent=1 // pred_check_branch
      %59 = sbr.rel (0) target = $region69
    $region68: #{tpu_custom_call.1} parent=1 // pred_region
      _
    $region69: #{tpu_custom_call.1} parent=1 // pred_fallthru
      _
    %v60 = vld [vmem:[%s0] sm:$0xff]
    %v61 = vld [vmem:[%s0 + $0x8] sm:$0xff]
    %v62 = vld [vmem:[%s0 + $0x10] sm:$0xff]
    %v63 = vld [vmem:[%s0 + $0x18] sm:$0xff]
    %v64 = vld [vmem:[%s0 + $0x20] sm:$0xff]
    %v65 = vld [vmem:[%s0 + $0x28] sm:$0xff]
    %v66 = vld [vmem:[%s1] sm:$0xff]
    %v67 = vld [vmem:[%s1 + $0x8] sm:$0xff]
    %v68 = vld [vmem:[%s1 + $0x10] sm:$0xff]
    %v69 = vld [vmem:[%s1 + $0x18] sm:$0xff]
    %v70 = vld [vmem:[%s1 + $0x20] sm:$0xff]
    %v71 = vld [vmem:[%s1 + $0x28] sm:$0xff]
    %v72 = vld [vmem:[%s1 + $0x30] sm:$0xff]
    %v73 = vld [vmem:[%s1 + $0x38] sm:$0xff]
    %v74 = vld [vmem:[%s1 + $0x40] sm:$0xff]
    %v75 = vld [vmem:[%s1 + $0x48] sm:$0x7]
    %vm76 = vcmask 613376
    %v78 = vsel %vm76, %v60, 0
    %v81 = vsel %vm76, %v61, 0
    %v84 = vsel %vm76, %v62, 0
    %v87 = vsel %vm76, %v63, 0
    %v90 = vsel %vm76, %v64, 0
    %v93 = vsel %vm76, %v65, 0
    %vm95 = vcmask 1042432
    %v97 = vsel %vm95, %v75, 0
    %99 = vmatpush.msra.mxu0 0.0
    %100 = vmatpush.msra.mxu0 0.0
    %101 = vmatpush.msra.mxu0 0.0
    %102 = vmatpush.msra.mxu0 0.0
    %103 = vmatpush.msra.mxu0 0.0
    %104 = vmatpush.msra.mxu0 0.0
    %105 = vmatpush.msra.mxu0 %v97
    %106 = vmatpush.msra.mxu0 %v74
    %107 = vmatpush.msra.mxu0 %v73
    %108 = vmatpush.msra.mxu0 %v72
    %109 = vmatpush.msra.mxu0 %v71
    %110 = vmatpush.msra.mxu0 %v70
    %111 = vmatpush.msra.mxu0 %v69
    %112 = vmatpush.msra.mxu0 %v68
    %113 = vmatpush.msra.mxu0 %v67
    %114 = vmatpush.msra.mxu0 %v66
    %115 = vmatmul.f32.gmra.mxu0 %v78
    %v116 = vpop.f32.mrf.mxu0
    %v117 = vadd.f32 0.0, %v116
    %118 = vmatmul.f32.gmra.mxu0 %v81
    %v119 = vpop.f32.mrf.mxu0
    %v120 = vadd.f32 0.0, %v119
    %121 = vmatmul.f32.gmra.mxu0 %v84
    %v122 = vpop.f32.mrf.mxu0
    %v123 = vadd.f32 0.0, %v122
    %124 = vmatmul.f32.gmra.mxu0 %v87
    %v125 = vpop.f32.mrf.mxu0
    %v126 = vadd.f32 0.0, %v125
    %127 = vmatmul.f32.gmra.mxu0 %v90
    %v128 = vpop.f32.mrf.mxu0
    %v129 = vadd.f32 0.0, %v128
    %130 = vmatmul.f32.gmra.mxu0 %v93
    %v131 = vpop.f32.mrf.mxu0
    %v132 = vadd.f32 0.0, %v131
    %133 = vdwg.mxu0
    %v134 = vld [vmem:[%s2] sm:$0xff]
    %v135 = vld [vmem:[%s2 + $0x8] sm:$0xff]
    %v136 = vld [vmem:[%s2 + $0x10] sm:$0xff]
    %v137 = vld [vmem:[%s2 + $0x18] sm:$0xff]
    %v138 = vld [vmem:[%s2 + $0x20] sm:$0xff]
    %v139 = vld [vmem:[%s2 + $0x28] sm:$0xff]
    %v140 = vld [vmem:[%s2 + $0x30] sm:$0xff]
    %v141 = vld [vmem:[%s2 + $0x38] sm:$0xff]
    %v142 = vld [vmem:[%s2 + $0x40] sm:$0xff]
    %v143 = vld [vmem:[%s2 + $0x48] sm:$0xff]
    %v144 = vld [vmem:[%s2 + $0x50] sm:$0xff]
    %v145 = vld [vmem:[%s2 + $0x58] sm:$0xff]
    %v146 = vld [vmem:[%s2 + $0x60] sm:$0xff]
    %v147 = vld [vmem:[%s2 + $0x68] sm:$0xff]
    %v148 = vld [vmem:[%s2 + $0x70] sm:$0xff]
    %v149 = vld [vmem:[%s2 + $0x78] sm:$0xff]
    %v150 = vld [vmem:[%s2 + $0x80] sm:$0xff]
    %v151 = vld [vmem:[%s2 + $0x88] sm:$0xff]
    %v152 = vld [vmem:[%s2 + $0x90] sm:$0xff]
    %v153 = vld [vmem:[%s2 + $0x98] sm:$0xff]
    %v154 = vld [vmem:[%s2 + $0xa0] sm:$0xff]
    %v155 = vld [vmem:[%s2 + $0xa8] sm:$0xff]
    %v156 = vld [vmem:[%s2 + $0xb0] sm:$0xff]
    %v157 = vld [vmem:[%s2 + $0xb8] sm:$0xff]
    %v158 = vld [vmem:[%s2 + $0xc0] sm:$0xff]
    %v159 = vld [vmem:[%s2 + $0xc8] sm:$0xff]
    %v160 = vld [vmem:[%s2 + $0xd0] sm:$0xff]
    %v161 = vld [vmem:[%s2 + $0xd8] sm:$0xff]
    %v162 = vld [vmem:[%s2 + $0xe0] sm:$0xff]
    %v163 = vld [vmem:[%s2 + $0xe8] sm:$0xff]
    %v164 = vld [vmem:[%s2 + $0xf0] sm:$0xff]
    %v165 = vld [vmem:[%s2 + $0xf8] sm:$0xff]
    %v166 = vlaneseq
    %v167 = vand.u32 %v166, 127
    %168 = vset.pattern.permute.xlu0 0
    %169 = vperm.xlu0 %168, %v134
    %v170 = vpop.permute.xlu0 %169
    %171 = vset.pattern.permute.xlu0 0
    %172 = vperm.xlu0 %171, %v135
    %v173 = vpop.permute.xlu0 %172
    %174 = vset.pattern.permute.xlu0 0
    %175 = vperm.xlu0 %174, %v136
    %v176 = vpop.permute.xlu0 %175
    %177 = vset.pattern.permute.xlu0 0
    %178 = vperm.xlu0 %177, %v137
    %v179 = vpop.permute.xlu0 %178
    %180 = vset.pattern.permute.xlu0 0
    %181 = vperm.xlu0 %180, %v138
    %v182 = vpop.permute.xlu0 %181
    %183 = vset.pattern.permute.xlu0 0
    %184 = vperm.xlu0 %183, %v139
    %v185 = vpop.permute.xlu0 %184
    %186 = vset.pattern.permute.xlu0 0
    %187 = vperm.xlu0 %186, %v140
    %v188 = vpop.permute.xlu0 %187
    %189 = vset.pattern.permute.xlu0 0
    %190 = vperm.xlu0 %189, %v141
    %v191 = vpop.permute.xlu0 %190
    %192 = vset.pattern.permute.xlu0 0
    %193 = vperm.xlu0 %192, %v142
    %v194 = vpop.permute.xlu0 %193
    %195 = vset.pattern.permute.xlu0 0
    %196 = vperm.xlu0 %195, %v143
    %v197 = vpop.permute.xlu0 %196
    %198 = vset.pattern.permute.xlu0 0
    %199 = vperm.xlu0 %198, %v144
    %v200 = vpop.permute.xlu0 %199
    %201 = vset.pattern.permute.xlu0 0
    %202 = vperm.xlu0 %201, %v145
    %v203 = vpop.permute.xlu0 %202
    %204 = vset.pattern.permute.xlu0 0
    %205 = vperm.xlu0 %204, %v146
    %v206 = vpop.permute.xlu0 %205
    %207 = vset.pattern.permute.xlu0 0
    %208 = vperm.xlu0 %207, %v147
    %v209 = vpop.permute.xlu0 %208
    %210 = vset.pattern.permute.xlu0 0
    %211 = vperm.xlu0 %210, %v148
    %v212 = vpop.permute.xlu0 %211
    %213 = vset.pattern.permute.xlu0 0
    %214 = vperm.xlu0 %213, %v149
    %v215 = vpop.permute.xlu0 %214
    %216 = vset.pattern.permute.xlu0 0
    %217 = vperm.xlu0 %216, %v150
    %v218 = vpop.permute.xlu0 %217
    %219 = vset.pattern.permute.xlu0 0
    %220 = vperm.xlu0 %219, %v151
    %v221 = vpop.permute.xlu0 %220
    %222 = vset.pattern.permute.xlu0 0
    %223 = vperm.xlu0 %222, %v152
    %v224 = vpop.permute.xlu0 %223
    %225 = vset.pattern.permute.xlu0 0
    %226 = vperm.xlu0 %225, %v153
    %v227 = vpop.permute.xlu0 %226
    %228 = vset.pattern.permute.xlu0 0
    %229 = vperm.xlu0 %228, %v154
    %v230 = vpop.permute.xlu0 %229
    %231 = vset.pattern.permute.xlu0 0
    %232 = vperm.xlu0 %231, %v155
    %v233 = vpop.permute.xlu0 %232
    %234 = vset.pattern.permute.xlu0 0
    %235 = vperm.xlu0 %234, %v156
    %v236 = vpop.permute.xlu0 %235
    %237 = vset.pattern.permute.xlu0 0
    %238 = vperm.xlu0 %237, %v157
    %v239 = vpop.permute.xlu0 %238
    %240 = vset.pattern.permute.xlu0 0
    %241 = vperm.xlu0 %240, %v158
    %v242 = vpop.permute.xlu0 %241
    %243 = vset.pattern.permute.xlu0 0
    %244 = vperm.xlu0 %243, %v159
    %v245 = vpop.permute.xlu0 %244
    %246 = vset.pattern.permute.xlu0 0
    %247 = vperm.xlu0 %246, %v160
    %v248 = vpop.permute.xlu0 %247
    %249 = vset.pattern.permute.xlu0 0
    %250 = vperm.xlu0 %249, %v161
    %v251 = vpop.permute.xlu0 %250
    %252 = vset.pattern.permute.xlu0 0
    %253 = vperm.xlu0 %252, %v162
    %v254 = vpop.permute.xlu0 %253
    %255 = vset.pattern.permute.xlu0 0
    %256 = vperm.xlu0 %255, %v163
    %v257 = vpop.permute.xlu0 %256
    %258 = vset.pattern.permute.xlu0 0
    %259 = vperm.xlu0 %258, %v164
    %v260 = vpop.permute.xlu0 %259
    %261 = vset.pattern.permute.xlu0 0
    %262 = vperm.xlu0 %261, %v165
    %v263 = vpop.permute.xlu0 %262
    %vm264 = vcmp.eq.s32.totalorder %v170, %v167
    %vm265 = vcmp.eq.s32.totalorder %v173, %v167
    %vm266 = vcmp.eq.s32.totalorder %v176, %v167
    %vm267 = vcmp.eq.s32.totalorder %v179, %v167
    %vm268 = vcmp.eq.s32.totalorder %v182, %v167
    %vm269 = vcmp.eq.s32.totalorder %v185, %v167
    %vm270 = vcmp.eq.s32.totalorder %v188, %v167
    %vm271 = vcmp.eq.s32.totalorder %v191, %v167
    %vm272 = vcmp.eq.s32.totalorder %v194, %v167
    %vm273 = vcmp.eq.s32.totalorder %v197, %v167
    %vm274 = vcmp.eq.s32.totalorder %v200, %v167
    %vm275 = vcmp.eq.s32.totalorder %v203, %v167
    %vm276 = vcmp.eq.s32.totalorder %v206, %v167
    %vm277 = vcmp.eq.s32.totalorder %v209, %v167
    %vm278 = vcmp.eq.s32.totalorder %v212, %v167
    %vm279 = vcmp.eq.s32.totalorder %v215, %v167
    %vm280 = vcmp.eq.s32.totalorder %v218, %v167
    %vm281 = vcmp.eq.s32.totalorder %v221, %v167
    %vm282 = vcmp.eq.s32.totalorder %v224, %v167
    %vm283 = vcmp.eq.s32.totalorder %v227, %v167
    %vm284 = vcmp.eq.s32.totalorder %v230, %v167
    %vm285 = vcmp.eq.s32.totalorder %v233, %v167
    %vm286 = vcmp.eq.s32.totalorder %v236, %v167
    %vm287 = vcmp.eq.s32.totalorder %v239, %v167
    %vm288 = vcmp.eq.s32.totalorder %v242, %v167
    %vm289 = vcmp.eq.s32.totalorder %v245, %v167
    %vm290 = vcmp.eq.s32.totalorder %v248, %v167
    %vm291 = vcmp.eq.s32.totalorder %v251, %v167
    %vm292 = vcmp.eq.s32.totalorder %v254, %v167
    %vm293 = vcmp.eq.s32.totalorder %v257, %v167
    %vm294 = vcmp.eq.s32.totalorder %v260, %v167
    %vm295 = vcmp.eq.s32.totalorder %v263, %v167
    %v296 = vsel %vm264, 1, 0
    %v297 = vsel %vm265, 1, 0
    %v298 = vsel %vm266, 1, 0
    %v299 = vsel %vm267, 1, 0
    %v300 = vsel %vm268, 1, 0
    %v301 = vsel %vm269, 1, 0
    %v302 = vsel %vm270, 1, 0
    %v303 = vsel %vm271, 1, 0
    %v304 = vsel %vm272, 1, 0
    %v305 = vsel %vm273, 1, 0
    %v306 = vsel %vm274, 1, 0
    %v307 = vsel %vm275, 1, 0
    %v308 = vsel %vm276, 1, 0
    %v309 = vsel %vm277, 1, 0
    %v310 = vsel %vm278, 1, 0
    %v311 = vsel %vm279, 1, 0
    %v312 = vsel %vm280, 1, 0
    %v313 = vsel %vm281, 1, 0
    %v314 = vsel %vm282, 1, 0
    %v315 = vsel %vm283, 1, 0
    %v316 = vsel %vm284, 1, 0
    %v317 = vsel %vm285, 1, 0
    %v318 = vsel %vm286, 1, 0
    %v319 = vsel %vm287, 1, 0
    %v320 = vsel %vm288, 1, 0
    %v321 = vsel %vm289, 1, 0
    %v322 = vsel %vm290, 1, 0
    %v323 = vsel %vm291, 1, 0
    %v324 = vsel %vm292, 1, 0
    %v325 = vsel %vm293, 1, 0
    %v326 = vsel %vm294, 1, 0
    %v327 = vsel %vm295, 1, 0
    %v328 = vcvt.s32.f32 %v296
    %v329 = vcvt.s32.f32 %v297
    %v330 = vcvt.s32.f32 %v298
    %v331 = vcvt.s32.f32 %v299
    %v332 = vcvt.s32.f32 %v300
    %v333 = vcvt.s32.f32 %v301
    %v334 = vcvt.s32.f32 %v302
    %v335 = vcvt.s32.f32 %v303
    %v336 = vcvt.s32.f32 %v304
    %v337 = vcvt.s32.f32 %v305
    %v338 = vcvt.s32.f32 %v306
    %v339 = vcvt.s32.f32 %v307
    %v340 = vcvt.s32.f32 %v308
    %v341 = vcvt.s32.f32 %v309
    %v342 = vcvt.s32.f32 %v310
    %v343 = vcvt.s32.f32 %v311
    %v344 = vcvt.s32.f32 %v312
    %v345 = vcvt.s32.f32 %v313
    %v346 = vcvt.s32.f32 %v314
    %v347 = vcvt.s32.f32 %v315
    %v348 = vcvt.s32.f32 %v316
    %v349 = vcvt.s32.f32 %v317
    %v350 = vcvt.s32.f32 %v318
    %v351 = vcvt.s32.f32 %v319
    %v352 = vcvt.s32.f32 %v320
    %v353 = vcvt.s32.f32 %v321
    %v354 = vcvt.s32.f32 %v322
    %v355 = vcvt.s32.f32 %v323
    %v356 = vcvt.s32.f32 %v324
    %v357 = vcvt.s32.f32 %v325
    %v358 = vcvt.s32.f32 %v326
    %v359 = vcvt.s32.f32 %v327
    %vm360 = vcmask 392192
    %v362 = vsel %vm360, %v328, 0
    %v365 = vsel %vm360, %v329, 0
    %v368 = vsel %vm360, %v330, 0
    %v371 = vsel %vm360, %v331, 0
    %v374 = vsel %vm360, %v332, 0
    %v377 = vsel %vm360, %v333, 0
    %v380 = vsel %vm360, %v334, 0
    %v383 = vsel %vm360, %v335, 0
    %v386 = vsel %vm360, %v336, 0
    %v389 = vsel %vm360, %v337, 0
    %v392 = vsel %vm360, %v338, 0
    %v395 = vsel %vm360, %v339, 0
    %v398 = vsel %vm360, %v340, 0
    %v401 = vsel %vm360, %v341, 0
    %v404 = vsel %vm360, %v342, 0
    %v407 = vsel %vm360, %v343, 0
    %v410 = vsel %vm360, %v344, 0
    %v413 = vsel %vm360, %v345, 0
    %v416 = vsel %vm360, %v346, 0
    %v419 = vsel %vm360, %v347, 0
    %v422 = vsel %vm360, %v348, 0
    %v425 = vsel %vm360, %v349, 0
    %v428 = vsel %vm360, %v350, 0
    %v431 = vsel %vm360, %v351, 0
    %v434 = vsel %vm360, %v352, 0
    %v437 = vsel %vm360, %v353, 0
    %v440 = vsel %vm360, %v354, 0
    %v443 = vsel %vm360, %v355, 0
    %v446 = vsel %vm360, %v356, 0
    %v449 = vsel %vm360, %v357, 0
    %v452 = vsel %vm360, %v358, 0
    %v455 = vsel %vm360, %v359, 0
    %457 = vmatpush.msra.mxu0 0.0
    %458 = vmatpush.msra.mxu0 0.0
    %459 = vmatpush.msra.mxu0 0.0
    %460 = vmatpush.msra.mxu0 0.0
    %461 = vmatpush.msra.mxu0 0.0
    %462 = vmatpush.msra.mxu0 0.0
    %463 = vmatpush.msra.mxu0 0.0
    %464 = vmatpush.msra.mxu0 0.0
    %465 = vmatpush.msra.mxu0 0.0
    %466 = vmatpush.msra.mxu0 0.0
    %467 = vmatpush.msra.mxu0 %v132
    %468 = vmatpush.msra.mxu0 %v129
    %469 = vmatpush.msra.mxu0 %v126
    %470 = vmatpush.msra.mxu0 %v123
    %471 = vmatpush.msra.mxu0 %v120
    %472 = vmatpush.msra.mxu0 %v117
    %473 = vmatmul.f32.gmra.mxu0 %v362
    %v474 = vpop.f32.mrf.mxu0
    %v475 = vadd.f32 0.0, %v474
    %476 = vmatmul.f32.gmra.mxu0 %v365
    %v477 = vpop.f32.mrf.mxu0
    %v478 = vadd.f32 0.0, %v477
    %479 = vmatmul.f32.gmra.mxu0 %v368
    %v480 = vpop.f32.mrf.mxu0
    %v481 = vadd.f32 0.0, %v480
    %482 = vmatmul.f32.gmra.mxu0 %v371
    %v483 = vpop.f32.mrf.mxu0
    %v484 = vadd.f32 0.0, %v483
    %485 = vmatmul.f32.gmra.mxu0 %v374
    %v486 = vpop.f32.mrf.mxu0
    %v487 = vadd.f32 0.0, %v486
    %488 = vmatmul.f32.gmra.mxu0 %v377
    %v489 = vpop.f32.mrf.mxu0
    %v490 = vadd.f32 0.0, %v489
    %491 = vmatmul.f32.gmra.mxu0 %v380
    %v492 = vpop.f32.mrf.mxu0
    %v493 = vadd.f32 0.0, %v492
    %494 = vmatmul.f32.gmra.mxu0 %v383
    %v495 = vpop.f32.mrf.mxu0
    %v496 = vadd.f32 0.0, %v495
    %497 = vmatmul.f32.gmra.mxu0 %v386
    %v498 = vpop.f32.mrf.mxu0
    %v499 = vadd.f32 0.0, %v498
    %500 = vmatmul.f32.gmra.mxu0 %v389
    %v501 = vpop.f32.mrf.mxu0
    %v502 = vadd.f32 0.0, %v501
    %503 = vmatmul.f32.gmra.mxu0 %v392
    %v504 = vpop.f32.mrf.mxu0
    %v505 = vadd.f32 0.0, %v504
    %506 = vmatmul.f32.gmra.mxu0 %v395
    %v507 = vpop.f32.mrf.mxu0
    %v508 = vadd.f32 0.0, %v507
    %509 = vmatmul.f32.gmra.mxu0 %v398
    %v510 = vpop.f32.mrf.mxu0
    %511 = vmatmul.f32.gmra.mxu0 %v401
    %v512 = vpop.f32.mrf.mxu0
    %513 = vmatmul.f32.gmra.mxu0 %v404
    %v514 = vpop.f32.mrf.mxu0
    %515 = vmatmul.f32.gmra.mxu0 %v407
    %v516 = vpop.f32.mrf.mxu0
    %517 = vmatmul.f32.gmra.mxu0 %v410
    %v518 = vpop.f32.mrf.mxu0
    %v519 = vadd.f32 0.0, %v518
    %520 = vmatmul.f32.gmra.mxu0 %v413
    %v521 = vpop.f32.mrf.mxu0
    %v522 = vadd.f32 0.0, %v521
    %523 = vmatmul.f32.gmra.mxu0 %v416
    %v524 = vpop.f32.mrf.mxu0
    %v525 = vadd.f32 0.0, %v524
    %526 = vmatmul.f32.gmra.mxu0 %v419
    %v527 = vpop.f32.mrf.mxu0
    %v528 = vadd.f32 0.0, %v527
    %529 = vmatmul.f32.gmra.mxu0 %v422
    %v530 = vpop.f32.mrf.mxu0
    %v531 = vadd.f32 0.0, %v530
    %532 = vmatmul.f32.gmra.mxu0 %v425
    %v533 = vpop.f32.mrf.mxu0
    %v534 = vadd.f32 0.0, %v533
    %535 = vmatmul.f32.gmra.mxu0 %v428
    %v536 = vpop.f32.mrf.mxu0
    %v537 = vadd.f32 0.0, %v536
    %538 = vmatmul.f32.gmra.mxu0 %v431
    %v539 = vpop.f32.mrf.mxu0
    %v540 = vadd.f32 0.0, %v539
    %541 = vmatmul.f32.gmra.mxu0 %v434
    %v542 = vpop.f32.mrf.mxu0
    %v543 = vadd.f32 0.0, %v542
    %544 = vmatmul.f32.gmra.mxu0 %v437
    %v545 = vpop.f32.mrf.mxu0
    %v546 = vadd.f32 0.0, %v545
    %547 = vmatmul.f32.gmra.mxu0 %v440
    %v548 = vpop.f32.mrf.mxu0
    %v549 = vadd.f32 0.0, %v548
    %550 = vmatmul.f32.gmra.mxu0 %v443
    %v551 = vpop.f32.mrf.mxu0
    %v552 = vadd.f32 0.0, %v551
    %553 = vmatmul.f32.gmra.mxu0 %v446
    %v554 = vpop.f32.mrf.mxu0
    %v555 = vadd.f32 0.0, %v554
    %556 = vmatmul.f32.gmra.mxu0 %v449
    %v557 = vpop.f32.mrf.mxu0
    %v558 = vadd.f32 0.0, %v557
    %559 = vmatmul.f32.gmra.mxu0 %v452
    %v560 = vpop.f32.mrf.mxu0
    %v561 = vadd.f32 0.0, %v560
    %562 = vmatmul.f32.gmra.mxu0 %v455
    %v563 = vpop.f32.mrf.mxu0
    %v564 = vadd.f32 0.0, %v563
    %565 = vdwg.mxu0
    %v566 = vld [vmem:[%s10] sm:$0xf]
    %v567 = vld [vmem:[%s11] sm:$0xff]
    %v568 = vld [vmem:[%s11 + $0x8] sm:$0xff]
    %v569 = vld [vmem:[%s11 + $0x10] sm:$0xff]
    %v570 = vld [vmem:[%s11 + $0x18] sm:$0xff]
    %v571 = vld [vmem:[%s3] sm:$0xff]
    %v572 = vld [vmem:[%s3 + $0x8] sm:$0xff]
    %v573 = vld [vmem:[%s3 + $0x10] sm:$0xff]
    %v574 = vld [vmem:[%s3 + $0x18] sm:$0xff]
    %s575 = scalar_lea.vmem %s3, 32
    %v576 = vld [vmem:[%s575] sm:$0xff]
    %v577 = vld [vmem:[%s575 + $0x8] sm:$0xff]
    %v578 = vld [vmem:[%s575 + $0x10] sm:$0xff]
    %v579 = vld [vmem:[%s575 + $0x18] sm:$0xff]
    %vm580 = vcmask 261120
    %v582 = vsel %vm580, %v487, 0
    %v585 = vsel %vm580, %v490, 0
    %v588 = vsel %vm580, %v493, 0
    %v591 = vsel %vm580, %v496, 0
    %593 = vmatpush.msra.mxu0 0.0
    %594 = vmatpush.msra.mxu0 0.0
    %595 = vmatpush.msra.mxu0 0.0
    %596 = vmatpush.msra.mxu0 0.0
    %597 = vmatpush.msra.mxu0 0.0
    %598 = vmatpush.msra.mxu0 0.0
    %599 = vmatpush.msra.mxu0 0.0
    %600 = vmatpush.msra.mxu0 0.0
    %601 = vmatpush.msra.mxu0 0.0
    %602 = vmatpush.msra.mxu0 0.0
    %603 = vmatpush.msra.mxu0 0.0
    %604 = vmatpush.msra.mxu0 0.0
    %605 = vmatpush.msra.mxu0 %v579
    %606 = vmatpush.msra.mxu0 %v578
    %607 = vmatpush.msra.mxu0 %v577
    %608 = vmatpush.msra.mxu0 %v576
    %609 = vmatmul.f32.gmra.mxu0 %v582
    %v610 = vpop.f32.mrf.mxu0
    %v611 = vadd.f32 0.0, %v610
    %612 = vmatmul.f32.gmra.mxu0 %v585
    %v613 = vpop.f32.mrf.mxu0
    %v614 = vadd.f32 0.0, %v613
    %615 = vmatmul.f32.gmra.mxu0 %v588
    %v616 = vpop.f32.mrf.mxu0
    %v617 = vadd.f32 0.0, %v616
    %618 = vmatmul.f32.gmra.mxu0 %v591
    %v619 = vpop.f32.mrf.mxu0
    %v620 = vadd.f32 0.0, %v619
    %621 = vdwg.mxu0
    %v623 = vsel %vm580, %v475, 0
    %v626 = vsel %vm580, %v478, 0
    %v629 = vsel %vm580, %v481, 0
    %v632 = vsel %vm580, %v484, 0
    %634 = vmatpush.msra.mxu0 0.0
    %635 = vmatpush.msra.mxu0 0.0
    %636 = vmatpush.msra.mxu0 0.0
    %637 = vmatpush.msra.mxu0 0.0
    %638 = vmatpush.msra.mxu0 0.0
    %639 = vmatpush.msra.mxu0 0.0
    %640 = vmatpush.msra.mxu0 0.0
    %641 = vmatpush.msra.mxu0 0.0
    %642 = vmatpush.msra.mxu0 0.0
    %643 = vmatpush.msra.mxu0 0.0
    %644 = vmatpush.msra.mxu0 0.0
    %645 = vmatpush.msra.mxu0 0.0
    %646 = vmatpush.msra.mxu0 %v574
    %647 = vmatpush.msra.mxu0 %v573
    %648 = vmatpush.msra.mxu0 %v572
    %649 = vmatpush.msra.mxu0 %v571
    %650 = vmatmul.f32.gmra.mxu0 %v623
    %v651 = vpop.f32.mrf.mxu0
    %v652 = vadd.f32 %v611, %v651
    %653 = vmatmul.f32.gmra.mxu0 %v626
    %v654 = vpop.f32.mrf.mxu0
    %v655 = vadd.f32 %v614, %v654
    %656 = vmatmul.f32.gmra.mxu0 %v629
    %v657 = vpop.f32.mrf.mxu0
    %v658 = vadd.f32 %v617, %v657
    %659 = vmatmul.f32.gmra.mxu0 %v632
    %v660 = vpop.f32.mrf.mxu0
    %v661 = vadd.f32 %v620, %v660
    %662 = vdwg.mxu0
    %s663 = scalar_lea.vmem %s3, 64
    %v664 = vld [vmem:[%s663] sm:$0xff]
    %v665 = vld [vmem:[%s663 + $0x8] sm:$0xff]
    %v666 = vld [vmem:[%s663 + $0x10] sm:$0xff]
    %v667 = vld [vmem:[%s663 + $0x18] sm:$0xff]
    %v669 = vsel %vm580, %v499, 0
    %v672 = vsel %vm580, %v502, 0
    %v675 = vsel %vm580, %v505, 0
    %v678 = vsel %vm580, %v508, 0
    %680 = vmatpush.msra.mxu0 0.0
    %681 = vmatpush.msra.mxu0 0.0
    %682 = vmatpush.msra.mxu0 0.0
    %683 = vmatpush.msra.mxu0 0.0
    %684 = vmatpush.msra.mxu0 0.0
    %685 = vmatpush.msra.mxu0 0.0
    %686 = vmatpush.msra.mxu0 0.0
    %687 = vmatpush.msra.mxu0 0.0
    %688 = vmatpush.msra.mxu0 0.0
    %689 = vmatpush.msra.mxu0 0.0
    %690 = vmatpush.msra.mxu0 0.0
    %691 = vmatpush.msra.mxu0 0.0
    %692 = vmatpush.msra.mxu0 %v667
    %693 = vmatpush.msra.mxu0 %v666
    %694 = vmatpush.msra.mxu0 %v665
    %695 = vmatpush.msra.mxu0 %v664
    %696 = vmatmul.f32.gmra.mxu0 %v669
    %v697 = vpop.f32.mrf.mxu0
    %v698 = vadd.f32 0.0, %v697
    %699 = vmatmul.f32.gmra.mxu0 %v672
    %v700 = vpop.f32.mrf.mxu0
    %v701 = vadd.f32 0.0, %v700
    %702 = vmatmul.f32.gmra.mxu0 %v675
    %v703 = vpop.f32.mrf.mxu0
    %v704 = vadd.f32 0.0, %v703
    %705 = vmatmul.f32.gmra.mxu0 %v678
    %v706 = vpop.f32.mrf.mxu0
    %v707 = vadd.f32 0.0, %v706
    %708 = vdwg.mxu0
    %v709 = vadd.f32 %v652, %v698
    %v710 = vadd.f32 %v655, %v701
    %v711 = vadd.f32 %v658, %v704
    %v712 = vadd.f32 %v661, %v707
    %v713 = vld [vmem:[%s4] sm:$0xff]
    %v714 = vld [vmem:[%s4 + $0x8] sm:$0xff]
    %v715 = vld [vmem:[%s4 + $0x10] sm:$0xff]
    %v716 = vld [vmem:[%s4 + $0x18] sm:$0xff]
    %v718 = vsel %vm580, %v709, 0
    %v721 = vsel %vm580, %v710, 0
    %v724 = vsel %vm580, %v711, 0
    %v727 = vsel %vm580, %v712, 0
    %729 = vmatpush.msra.mxu0 0.0
    %730 = vmatpush.msra.mxu0 0.0
    %731 = vmatpush.msra.mxu0 0.0
    %732 = vmatpush.msra.mxu0 0.0
    %733 = vmatpush.msra.mxu0 0.0
    %734 = vmatpush.msra.mxu0 0.0
    %735 = vmatpush.msra.mxu0 0.0
    %736 = vmatpush.msra.mxu0 0.0
    %737 = vmatpush.msra.mxu0 0.0
    %738 = vmatpush.msra.mxu0 0.0
    %739 = vmatpush.msra.mxu0 0.0
    %740 = vmatpush.msra.mxu0 0.0
    %741 = vmatpush.msra.mxu0 %v716
    %742 = vmatpush.msra.mxu0 %v715
    %743 = vmatpush.msra.mxu0 %v714
    %744 = vmatpush.msra.mxu0 %v713
    %745 = vmatmul.f32.gmra.mxu0 %v718
    %v746 = vpop.f32.mrf.mxu0
    %v747 = vadd.f32 0.0, %v746
    %748 = vmatmul.f32.gmra.mxu0 %v721
    %v749 = vpop.f32.mrf.mxu0
    %v750 = vadd.f32 0.0, %v749
    %751 = vmatmul.f32.gmra.mxu0 %v724
    %v752 = vpop.f32.mrf.mxu0
    %v753 = vadd.f32 0.0, %v752
    %754 = vmatmul.f32.gmra.mxu0 %v727
    %v755 = vpop.f32.mrf.mxu0
    %v756 = vadd.f32 0.0, %v755
    %757 = vdwg.mxu0
    %vm758 = vcmp.gt.f32.partialorder %v747, 0.0
    %vm759 = vcmp.gt.f32.partialorder %v750, 0.0
    %vm760 = vcmp.gt.f32.partialorder %v753, 0.0
    %vm761 = vcmp.gt.f32.partialorder %v756, 0.0
    %v762 = vmul.f32 %v747, 0.01
    %v763 = vmul.f32 %v750, 0.01
    %v764 = vmul.f32 %v753, 0.01
    %v765 = vmul.f32 %v756, 0.01
    %v766 = vsel %vm758, %v747, %v762
    %v767 = vsel %vm759, %v750, %v763
    %v768 = vsel %vm760, %v753, %v764
    %v769 = vsel %vm761, %v756, %v765
    %v770 = vld [vmem:[%s9] sm:$0xff]
    %v771 = vld [vmem:[%s9 + $0x8] sm:$0xff]
    %v772 = vld [vmem:[%s9 + $0x10] sm:$0xff]
    %v773 = vld [vmem:[%s9 + $0x18] sm:$0xff]
    %v774 = vld [vmem:[%s6] sm:$0xff]
    %v775 = vld [vmem:[%s6 + $0x8] sm:$0xff]
    %v776 = vsub.f32 %v774, 1.0
    %v777 = vsub.f32 %v775, 1.0
    %v778 = vmul.f32 %v776, 1e+30
    %v779 = vmul.f32 %v777, 1e+30
    %v780 = vperm.slane %v778, 0
    %v781 = vlaneseq
    %v782 = vshrl.u32 %v781, 7
    %784 = vset.pattern.permute.xlu0 %v782
    %785 = vperm.xlu0 %784, %v780
    %v786 = vpop.permute.xlu0 %785
    %v787 = vlaneseq
    %v788 = vshrl.u32 %v787, 7
    %v789 = vadd.s32 %v788, 8
    %790 = vset.pattern.permute.xlu0 %v789
    %791 = vperm.xlu0 %790, %v780
    %v792 = vpop.permute.xlu0 %791
    %v793 = vlaneseq
    %v794 = vshrl.u32 %v793, 7
    %v795 = vadd.s32 %v794, 16
    %796 = vset.pattern.permute.xlu0 %v795
    %797 = vperm.xlu0 %796, %v780
    %v798 = vpop.permute.xlu0 %797
    %v799 = vlaneseq
    %v800 = vshrl.u32 %v799, 7
    %v801 = vadd.s32 %v800, 24
    %802 = vset.pattern.permute.xlu0 %v801
    %803 = vperm.xlu0 %802, %v780
    %v804 = vpop.permute.xlu0 %803
    %v805 = vperm.slane %v778, 1
    %v806 = vlaneseq
    %v807 = vshrl.u32 %v806, 7
    %809 = vset.pattern.permute.xlu0 %v807
    %810 = vperm.xlu0 %809, %v805
    %v811 = vpop.permute.xlu0 %810
    %v812 = vlaneseq
    %v813 = vshrl.u32 %v812, 7
    %v814 = vadd.s32 %v813, 8
    %815 = vset.pattern.permute.xlu0 %v814
    %816 = vperm.xlu0 %815, %v805
    %v817 = vpop.permute.xlu0 %816
    %v818 = vlaneseq
    %v819 = vshrl.u32 %v818, 7
    %v820 = vadd.s32 %v819, 16
    %821 = vset.pattern.permute.xlu0 %v820
    %822 = vperm.xlu0 %821, %v805
    %v823 = vpop.permute.xlu0 %822
    %v824 = vlaneseq
    %v825 = vshrl.u32 %v824, 7
    %v826 = vadd.s32 %v825, 24
    %827 = vset.pattern.permute.xlu0 %v826
    %828 = vperm.xlu0 %827, %v805
    %v829 = vpop.permute.xlu0 %828
    %v830 = vperm.slane %v778, 2
    %v831 = vlaneseq
    %v832 = vshrl.u32 %v831, 7
    %834 = vset.pattern.permute.xlu0 %v832
    %835 = vperm.xlu0 %834, %v830
    %v836 = vpop.permute.xlu0 %835
    %v837 = vlaneseq
    %v838 = vshrl.u32 %v837, 7
    %v839 = vadd.s32 %v838, 8
    %840 = vset.pattern.permute.xlu0 %v839
    %841 = vperm.xlu0 %840, %v830
    %v842 = vpop.permute.xlu0 %841
    %v843 = vlaneseq
    %v844 = vshrl.u32 %v843, 7
    %v845 = vadd.s32 %v844, 16
    %846 = vset.pattern.permute.xlu0 %v845
    %847 = vperm.xlu0 %846, %v830
    %v848 = vpop.permute.xlu0 %847
    %v849 = vlaneseq
    %v850 = vshrl.u32 %v849, 7
    %v851 = vadd.s32 %v850, 24
    %852 = vset.pattern.permute.xlu0 %v851
    %853 = vperm.xlu0 %852, %v830
    %v854 = vpop.permute.xlu0 %853
    %v855 = vperm.slane %v778, 3
    %v856 = vlaneseq
    %v857 = vshrl.u32 %v856, 7
    %859 = vset.pattern.permute.xlu0 %v857
    %860 = vperm.xlu0 %859, %v855
    %v861 = vpop.permute.xlu0 %860
    %v862 = vlaneseq
    %v863 = vshrl.u32 %v862, 7
    %v864 = vadd.s32 %v863, 8
    %865 = vset.pattern.permute.xlu0 %v864
    %866 = vperm.xlu0 %865, %v855
    %v867 = vpop.permute.xlu0 %866
    %v868 = vlaneseq
    %v869 = vshrl.u32 %v868, 7
    %v870 = vadd.s32 %v869, 16
    %871 = vset.pattern.permute.xlu0 %v870
    %872 = vperm.xlu0 %871, %v855
    %v873 = vpop.permute.xlu0 %872
    %v874 = vlaneseq
    %v875 = vshrl.u32 %v874, 7
    %v876 = vadd.s32 %v875, 24
    %877 = vset.pattern.permute.xlu0 %v876
    %878 = vperm.xlu0 %877, %v855
    %v879 = vpop.permute.xlu0 %878
    %v880 = vperm.slane %v778, 4
    %v881 = vlaneseq
    %v882 = vshrl.u32 %v881, 7
    %884 = vset.pattern.permute.xlu0 %v882
    %885 = vperm.xlu0 %884, %v880
    %v886 = vpop.permute.xlu0 %885
    %v887 = vlaneseq
    %v888 = vshrl.u32 %v887, 7
    %v889 = vadd.s32 %v888, 8
    %890 = vset.pattern.permute.xlu0 %v889
    %891 = vperm.xlu0 %890, %v880
    %v892 = vpop.permute.xlu0 %891
    %v893 = vlaneseq
    %v894 = vshrl.u32 %v893, 7
    %v895 = vadd.s32 %v894, 16
    %896 = vset.pattern.permute.xlu0 %v895
    %897 = vperm.xlu0 %896, %v880
    %v898 = vpop.permute.xlu0 %897
    %v899 = vlaneseq
    %v900 = vshrl.u32 %v899, 7
    %v901 = vadd.s32 %v900, 24
    %902 = vset.pattern.permute.xlu0 %v901
    %903 = vperm.xlu0 %902, %v880
    %v904 = vpop.permute.xlu0 %903
    %v905 = vperm.slane %v778, 5
    %v906 = vlaneseq
    %v907 = vshrl.u32 %v906, 7
    %909 = vset.pattern.permute.xlu0 %v907
    %910 = vperm.xlu0 %909, %v905
    %v911 = vpop.permute.xlu0 %910
    %v912 = vlaneseq
    %v913 = vshrl.u32 %v912, 7
    %v914 = vadd.s32 %v913, 8
    %915 = vset.pattern.permute.xlu0 %v914
    %916 = vperm.xlu0 %915, %v905
    %v917 = vpop.permute.xlu0 %916
    %v918 = vlaneseq
    %v919 = vshrl.u32 %v918, 7
    %v920 = vadd.s32 %v919, 16
    %921 = vset.pattern.permute.xlu0 %v920
    %922 = vperm.xlu0 %921, %v905
    %v923 = vpop.permute.xlu0 %922
    %v924 = vlaneseq
    %v925 = vshrl.u32 %v924, 7
    %v926 = vadd.s32 %v925, 24
    %927 = vset.pattern.permute.xlu0 %v926
    %928 = vperm.xlu0 %927, %v905
    %v929 = vpop.permute.xlu0 %928
    %v930 = vperm.slane %v778, 6
    %v931 = vlaneseq
    %v932 = vshrl.u32 %v931, 7
    %934 = vset.pattern.permute.xlu0 %v932
    %935 = vperm.xlu0 %934, %v930
    %v936 = vpop.permute.xlu0 %935
    %v937 = vlaneseq
    %v938 = vshrl.u32 %v937, 7
    %v939 = vadd.s32 %v938, 8
    %940 = vset.pattern.permute.xlu0 %v939
    %941 = vperm.xlu0 %940, %v930
    %v942 = vpop.permute.xlu0 %941
    %v943 = vlaneseq
    %v944 = vshrl.u32 %v943, 7
    %v945 = vadd.s32 %v944, 16
    %946 = vset.pattern.permute.xlu0 %v945
    %947 = vperm.xlu0 %946, %v930
    %v948 = vpop.permute.xlu0 %947
    %v949 = vlaneseq
    %v950 = vshrl.u32 %v949, 7
    %v951 = vadd.s32 %v950, 24
    %952 = vset.pattern.permute.xlu0 %v951
    %953 = vperm.xlu0 %952, %v930
    %v954 = vpop.permute.xlu0 %953
    %v955 = vperm.slane %v778, 7
    %v956 = vlaneseq
    %v957 = vshrl.u32 %v956, 7
    %959 = vset.pattern.permute.xlu0 %v957
    %960 = vperm.xlu0 %959, %v955
    %v961 = vpop.permute.xlu0 %960
    %v962 = vlaneseq
    %v963 = vshrl.u32 %v962, 7
    %v964 = vadd.s32 %v963, 8
    %965 = vset.pattern.permute.xlu0 %v964
    %966 = vperm.xlu0 %965, %v955
    %v967 = vpop.permute.xlu0 %966
    %v968 = vlaneseq
    %v969 = vshrl.u32 %v968, 7
    %v970 = vadd.s32 %v969, 16
    %971 = vset.pattern.permute.xlu0 %v970
    %972 = vperm.xlu0 %971, %v955
    %v973 = vpop.permute.xlu0 %972
    %v974 = vlaneseq
    %v975 = vshrl.u32 %v974, 7
    %v976 = vadd.s32 %v975, 24
    %977 = vset.pattern.permute.xlu0 %v976
    %978 = vperm.xlu0 %977, %v955
    %v979 = vpop.permute.xlu0 %978
    %v980 = vperm.slane %v779, 0
    %v981 = vlaneseq
    %v982 = vshrl.u32 %v981, 7
    %984 = vset.pattern.permute.xlu0 %v982
    %985 = vperm.xlu0 %984, %v980
    %v986 = vpop.permute.xlu0 %985
    %v987 = vlaneseq
    %v988 = vshrl.u32 %v987, 7
    %v989 = vadd.s32 %v988, 8
    %990 = vset.pattern.permute.xlu0 %v989
    %991 = vperm.xlu0 %990, %v980
    %v992 = vpop.permute.xlu0 %991
    %v993 = vlaneseq
    %v994 = vshrl.u32 %v993, 7
    %v995 = vadd.s32 %v994, 16
    %996 = vset.pattern.permute.xlu0 %v995
    %997 = vperm.xlu0 %996, %v980
    %v998 = vpop.permute.xlu0 %997
    %v999 = vlaneseq
    %v1000 = vshrl.u32 %v999, 7
    %v1001 = vadd.s32 %v1000, 24
    %1002 = vset.pattern.permute.xlu0 %v1001
    %1003 = vperm.xlu0 %1002, %v980
    %v1004 = vpop.permute.xlu0 %1003
    %v1005 = vperm.slane %v779, 1
    %v1006 = vlaneseq
    %v1007 = vshrl.u32 %v1006, 7
    %1009 = vset.pattern.permute.xlu0 %v1007
    %1010 = vperm.xlu0 %1009, %v1005
    %v1011 = vpop.permute.xlu0 %1010
    %v1012 = vlaneseq
    %v1013 = vshrl.u32 %v1012, 7
    %v1014 = vadd.s32 %v1013, 8
    %1015 = vset.pattern.permute.xlu0 %v1014
    %1016 = vperm.xlu0 %1015, %v1005
    %v1017 = vpop.permute.xlu0 %1016
    %v1018 = vlaneseq
    %v1019 = vshrl.u32 %v1018, 7
    %v1020 = vadd.s32 %v1019, 16
    %1021 = vset.pattern.permute.xlu0 %v1020
    %1022 = vperm.xlu0 %1021, %v1005
    %v1023 = vpop.permute.xlu0 %1022
    %v1024 = vlaneseq
    %v1025 = vshrl.u32 %v1024, 7
    %v1026 = vadd.s32 %v1025, 24
    %1027 = vset.pattern.permute.xlu0 %v1026
    %1028 = vperm.xlu0 %1027, %v1005
    %v1029 = vpop.permute.xlu0 %1028
    %v1030 = vperm.slane %v779, 2
    %v1031 = vlaneseq
    %v1032 = vshrl.u32 %v1031, 7
    %1034 = vset.pattern.permute.xlu0 %v1032
    %1035 = vperm.xlu0 %1034, %v1030
    %v1036 = vpop.permute.xlu0 %1035
    %v1037 = vlaneseq
    %v1038 = vshrl.u32 %v1037, 7
    %v1039 = vadd.s32 %v1038, 8
    %1040 = vset.pattern.permute.xlu0 %v1039
    %1041 = vperm.xlu0 %1040, %v1030
    %v1042 = vpop.permute.xlu0 %1041
    %v1043 = vlaneseq
    %v1044 = vshrl.u32 %v1043, 7
    %v1045 = vadd.s32 %v1044, 16
    %1046 = vset.pattern.permute.xlu0 %v1045
    %1047 = vperm.xlu0 %1046, %v1030
    %v1048 = vpop.permute.xlu0 %1047
    %v1049 = vlaneseq
    %v1050 = vshrl.u32 %v1049, 7
    %v1051 = vadd.s32 %v1050, 24
    %1052 = vset.pattern.permute.xlu0 %v1051
    %1053 = vperm.xlu0 %1052, %v1030
    %v1054 = vpop.permute.xlu0 %1053
    %v1055 = vperm.slane %v779, 3
    %v1056 = vlaneseq
    %v1057 = vshrl.u32 %v1056, 7
    %1059 = vset.pattern.permute.xlu0 %v1057
    %1060 = vperm.xlu0 %1059, %v1055
    %v1061 = vpop.permute.xlu0 %1060
    %v1062 = vlaneseq
    %v1063 = vshrl.u32 %v1062, 7
    %v1064 = vadd.s32 %v1063, 8
    %1065 = vset.pattern.permute.xlu0 %v1064
    %1066 = vperm.xlu0 %1065, %v1055
    %v1067 = vpop.permute.xlu0 %1066
    %v1068 = vlaneseq
    %v1069 = vshrl.u32 %v1068, 7
    %v1070 = vadd.s32 %v1069, 16
    %1071 = vset.pattern.permute.xlu0 %v1070
    %1072 = vperm.xlu0 %1071, %v1055
    %v1073 = vpop.permute.xlu0 %1072
    %v1074 = vlaneseq
    %v1075 = vshrl.u32 %v1074, 7
    %v1076 = vadd.s32 %v1075, 24
    %1077 = vset.pattern.permute.xlu0 %v1076
    %1078 = vperm.xlu0 %1077, %v1055
    %v1079 = vpop.permute.xlu0 %1078
    %v1080 = vperm.slane %v779, 4
    %v1081 = vlaneseq
    %v1082 = vshrl.u32 %v1081, 7
    %1084 = vset.pattern.permute.xlu0 %v1082
    %1085 = vperm.xlu0 %1084, %v1080
    %v1086 = vpop.permute.xlu0 %1085
    %v1087 = vlaneseq
    %v1088 = vshrl.u32 %v1087, 7
    %v1089 = vadd.s32 %v1088, 8
    %1090 = vset.pattern.permute.xlu0 %v1089
    %1091 = vperm.xlu0 %1090, %v1080
    %v1092 = vpop.permute.xlu0 %1091
    %v1093 = vlaneseq
    %v1094 = vshrl.u32 %v1093, 7
    %v1095 = vadd.s32 %v1094, 16
    %1096 = vset.pattern.permute.xlu0 %v1095
    %1097 = vperm.xlu0 %1096, %v1080
    %v1098 = vpop.permute.xlu0 %1097
    %v1099 = vlaneseq
    %v1100 = vshrl.u32 %v1099, 7
    %v1101 = vadd.s32 %v1100, 24
    %1102 = vset.pattern.permute.xlu0 %v1101
    %1103 = vperm.xlu0 %1102, %v1080
    %v1104 = vpop.permute.xlu0 %1103
    %v1105 = vperm.slane %v779, 5
    %v1106 = vlaneseq
    %v1107 = vshrl.u32 %v1106, 7
    %1109 = vset.pattern.permute.xlu0 %v1107
    %1110 = vperm.xlu0 %1109, %v1105
    %v1111 = vpop.permute.xlu0 %1110
    %v1112 = vlaneseq
    %v1113 = vshrl.u32 %v1112, 7
    %v1114 = vadd.s32 %v1113, 8
    %1115 = vset.pattern.permute.xlu0 %v1114
    %1116 = vperm.xlu0 %1115, %v1105
    %v1117 = vpop.permute.xlu0 %1116
    %v1118 = vlaneseq
    %v1119 = vshrl.u32 %v1118, 7
    %v1120 = vadd.s32 %v1119, 16
    %1121 = vset.pattern.permute.xlu0 %v1120
    %1122 = vperm.xlu0 %1121, %v1105
    %v1123 = vpop.permute.xlu0 %1122
    %v1124 = vlaneseq
    %v1125 = vshrl.u32 %v1124, 7
    %v1126 = vadd.s32 %v1125, 24
    %1127 = vset.pattern.permute.xlu0 %v1126
    %1128 = vperm.xlu0 %1127, %v1105
    %v1129 = vpop.permute.xlu0 %1128
    %v1130 = vperm.slane %v779, 6
    %v1131 = vlaneseq
    %v1132 = vshrl.u32 %v1131, 7
    %1134 = vset.pattern.permute.xlu0 %v1132
    %1135 = vperm.xlu0 %1134, %v1130
    %v1136 = vpop.permute.xlu0 %1135
    %v1137 = vlaneseq
    %v1138 = vshrl.u32 %v1137, 7
    %v1139 = vadd.s32 %v1138, 8
    %1140 = vset.pattern.permute.xlu0 %v1139
    %1141 = vperm.xlu0 %1140, %v1130
    %v1142 = vpop.permute.xlu0 %1141
    %v1143 = vlaneseq
    %v1144 = vshrl.u32 %v1143, 7
    %v1145 = vadd.s32 %v1144, 16
    %1146 = vset.pattern.permute.xlu0 %v1145
    %1147 = vperm.xlu0 %1146, %v1130
    %v1148 = vpop.permute.xlu0 %1147
    %v1149 = vlaneseq
    %v1150 = vshrl.u32 %v1149, 7
    %v1151 = vadd.s32 %v1150, 24
    %1152 = vset.pattern.permute.xlu0 %v1151
    %1153 = vperm.xlu0 %1152, %v1130
    %v1154 = vpop.permute.xlu0 %1153
    %v1155 = vperm.slane %v779, 7
    %v1156 = vlaneseq
    %v1157 = vshrl.u32 %v1156, 7
    %1159 = vset.pattern.permute.xlu0 %v1157
    %1160 = vperm.xlu0 %1159, %v1155
    %v1161 = vpop.permute.xlu0 %1160
    %v1162 = vlaneseq
    %v1163 = vshrl.u32 %v1162, 7
    %v1164 = vadd.s32 %v1163, 8
    %1165 = vset.pattern.permute.xlu0 %v1164
    %1166 = vperm.xlu0 %1165, %v1155
    %v1167 = vpop.permute.xlu0 %1166
    %v1168 = vlaneseq
    %v1169 = vshrl.u32 %v1168, 7
    %v1170 = vadd.s32 %v1169, 16
    %1171 = vset.pattern.permute.xlu0 %v1170
    %1172 = vperm.xlu0 %1171, %v1155
    %v1173 = vpop.permute.xlu0 %1172
    %v1174 = vlaneseq
    %v1175 = vshrl.u32 %v1174, 7
    %v1176 = vadd.s32 %v1175, 24
    %1177 = vset.pattern.permute.xlu0 %v1176
    %1178 = vperm.xlu0 %1177, %v1155
    %v1179 = vpop.permute.xlu0 %1178
    %v1180 = vadd.f32 %v766, %v786
    %v1181 = vadd.f32 %v767, %v792
    %v1182 = vadd.f32 %v768, %v798
    %v1183 = vadd.f32 %v769, %v804
    %v1184 = vadd.f32 %v766, %v811
    %v1185 = vadd.f32 %v767, %v817
    %v1186 = vadd.f32 %v768, %v823
    %v1187 = vadd.f32 %v769, %v829
    %v1188 = vadd.f32 %v766, %v836
    %v1189 = vadd.f32 %v767, %v842
    %v1190 = vadd.f32 %v768, %v848
    %v1191 = vadd.f32 %v769, %v854
    %v1192 = vadd.f32 %v766, %v861
    %v1193 = vadd.f32 %v767, %v867
    %v1194 = vadd.f32 %v768, %v873
    %v1195 = vadd.f32 %v769, %v879
    %v1196 = vadd.f32 %v766, %v886
    %v1197 = vadd.f32 %v767, %v892
    %v1198 = vadd.f32 %v768, %v898
    %v1199 = vadd.f32 %v769, %v904
    %v1200 = vadd.f32 %v766, %v911
    %v1201 = vadd.f32 %v767, %v917
    %v1202 = vadd.f32 %v768, %v923
    %v1203 = vadd.f32 %v769, %v929
    %v1204 = vadd.f32 %v766, %v936
    %v1205 = vadd.f32 %v767, %v942
    %v1206 = vadd.f32 %v768, %v948
    %v1207 = vadd.f32 %v769, %v954
    %v1208 = vadd.f32 %v766, %v961
    %v1209 = vadd.f32 %v767, %v967
    %v1210 = vadd.f32 %v768, %v973
    %v1211 = vadd.f32 %v769, %v979
    %v1212 = vadd.f32 %v766, %v986
    %v1213 = vadd.f32 %v767, %v992
    %v1214 = vadd.f32 %v768, %v998
    %v1215 = vadd.f32 %v769, %v1004
    %v1216 = vadd.f32 %v766, %v1011
    %v1217 = vadd.f32 %v767, %v1017
    %v1218 = vadd.f32 %v768, %v1023
    %v1219 = vadd.f32 %v769, %v1029
    %v1220 = vadd.f32 %v766, %v1036
    %v1221 = vadd.f32 %v767, %v1042
    %v1222 = vadd.f32 %v768, %v1048
    %v1223 = vadd.f32 %v769, %v1054
    %v1224 = vadd.f32 %v766, %v1061
    %v1225 = vadd.f32 %v767, %v1067
    %v1226 = vadd.f32 %v768, %v1073
    %v1227 = vadd.f32 %v769, %v1079
    %v1228 = vadd.f32 %v766, %v1086
    %v1229 = vadd.f32 %v767, %v1092
    %v1230 = vadd.f32 %v768, %v1098
    %v1231 = vadd.f32 %v769, %v1104
    %v1232 = vadd.f32 %v766, %v1111
    %v1233 = vadd.f32 %v767, %v1117
    %v1234 = vadd.f32 %v768, %v1123
    %v1235 = vadd.f32 %v769, %v1129
    %v1236 = vadd.f32 %v766, %v1136
    %v1237 = vadd.f32 %v767, %v1142
    %v1238 = vadd.f32 %v768, %v1148
    %v1239 = vadd.f32 %v769, %v1154
    %v1240 = vadd.f32 %v766, %v1161
    %v1241 = vadd.f32 %v767, %v1167
    %v1242 = vadd.f32 %v768, %v1173
    %v1243 = vadd.f32 %v769, %v1179
    %vm1244 = vcmask 31744
    %v1245 = vsel %vm1244, %v1180, -inf
    %v1246 = vsel %vm1244, %v1181, -inf
    %v1247 = vmax.f32 %v1245, %v1246
    %v1248 = vsel %vm1244, %v1182, -inf
    %v1249 = vmax.f32 %v1247, %v1248
    %v1250 = vsel %vm1244, %v1183, -inf
    %v1251 = vmax.f32 %v1249, %v1250
    %v1252 = vrot.slane %v1251, 4
    %v1253 = vmax.f32 %v1251, %v1252
    %v1254 = vrot.slane %v1253, 2
    %v1255 = vmax.f32 %v1253, %v1254
    %v1256 = vrot.slane %v1255, 1
    %v1257 = vmax.f32 %v1255, %v1256
    %v1258 = vsel %vm1244, %v1184, -inf
    %v1259 = vsel %vm1244, %v1185, -inf
    %v1260 = vmax.f32 %v1258, %v1259
    %v1261 = vsel %vm1244, %v1186, -inf
    %v1262 = vmax.f32 %v1260, %v1261
    %v1263 = vsel %vm1244, %v1187, -inf
    %v1264 = vmax.f32 %v1262, %v1263
    %v1265 = vrot.slane %v1264, 4
    %v1266 = vmax.f32 %v1264, %v1265
    %v1267 = vrot.slane %v1266, 2
    %v1268 = vmax.f32 %v1266, %v1267
    %v1269 = vrot.slane %v1268, 1
    %v1270 = vmax.f32 %v1268, %v1269
    %v1271 = vsel %vm1244, %v1188, -inf
    %v1272 = vsel %vm1244, %v1189, -inf
    %v1273 = vmax.f32 %v1271, %v1272
    %v1274 = vsel %vm1244, %v1190, -inf
    %v1275 = vmax.f32 %v1273, %v1274
    %v1276 = vsel %vm1244, %v1191, -inf
    %v1277 = vmax.f32 %v1275, %v1276
    %v1278 = vrot.slane %v1277, 4
    %v1279 = vmax.f32 %v1277, %v1278
    %v1280 = vrot.slane %v1279, 2
    %v1281 = vmax.f32 %v1279, %v1280
    %v1282 = vrot.slane %v1281, 1
    %v1283 = vmax.f32 %v1281, %v1282
    %v1284 = vsel %vm1244, %v1192, -inf
    %v1285 = vsel %vm1244, %v1193, -inf
    %v1286 = vmax.f32 %v1284, %v1285
    %v1287 = vsel %vm1244, %v1194, -inf
    %v1288 = vmax.f32 %v1286, %v1287
    %v1289 = vsel %vm1244, %v1195, -inf
    %v1290 = vmax.f32 %v1288, %v1289
    %v1291 = vrot.slane %v1290, 4
    %v1292 = vmax.f32 %v1290, %v1291
    %v1293 = vrot.slane %v1292, 2
    %v1294 = vmax.f32 %v1292, %v1293
    %v1295 = vrot.slane %v1294, 1
    %v1296 = vmax.f32 %v1294, %v1295
    %v1297 = vsel %vm1244, %v1196, -inf
    %v1298 = vsel %vm1244, %v1197, -inf
    %v1299 = vmax.f32 %v1297, %v1298
    %v1300 = vsel %vm1244, %v1198, -inf
    %v1301 = vmax.f32 %v1299, %v1300
    %v1302 = vsel %vm1244, %v1199, -inf
    %v1303 = vmax.f32 %v1301, %v1302
    %v1304 = vrot.slane %v1303, 4
    %v1305 = vmax.f32 %v1303, %v1304
    %v1306 = vrot.slane %v1305, 2
    %v1307 = vmax.f32 %v1305, %v1306
    %v1308 = vrot.slane %v1307, 1
    %v1309 = vmax.f32 %v1307, %v1308
    %v1310 = vsel %vm1244, %v1200, -inf
    %v1311 = vsel %vm1244, %v1201, -inf
    %v1312 = vmax.f32 %v1310, %v1311
    %v1313 = vsel %vm1244, %v1202, -inf
    %v1314 = vmax.f32 %v1312, %v1313
    %v1315 = vsel %vm1244, %v1203, -inf
    %v1316 = vmax.f32 %v1314, %v1315
    %v1317 = vrot.slane %v1316, 4
    %v1318 = vmax.f32 %v1316, %v1317
    %v1319 = vrot.slane %v1318, 2
    %v1320 = vmax.f32 %v1318, %v1319
    %v1321 = vrot.slane %v1320, 1
    %v1322 = vmax.f32 %v1320, %v1321
    %v1323 = vsel %vm1244, %v1204, -inf
    %v1324 = vsel %vm1244, %v1205, -inf
    %v1325 = vmax.f32 %v1323, %v1324
    %v1326 = vsel %vm1244, %v1206, -inf
    %v1327 = vmax.f32 %v1325, %v1326
    %v1328 = vsel %vm1244, %v1207, -inf
    %v1329 = vmax.f32 %v1327, %v1328
    %v1330 = vrot.slane %v1329, 4
    %v1331 = vmax.f32 %v1329, %v1330
    %v1332 = vrot.slane %v1331, 2
    %v1333 = vmax.f32 %v1331, %v1332
    %v1334 = vrot.slane %v1333, 1
    %v1335 = vmax.f32 %v1333, %v1334
    %v1336 = vsel %vm1244, %v1208, -inf
    %v1337 = vsel %vm1244, %v1209, -inf
    %v1338 = vmax.f32 %v1336, %v1337
    %v1339 = vsel %vm1244, %v1210, -inf
    %v1340 = vmax.f32 %v1338, %v1339
    %v1341 = vsel %vm1244, %v1211, -inf
    %v1342 = vmax.f32 %v1340, %v1341
    %v1343 = vrot.slane %v1342, 4
    %v1344 = vmax.f32 %v1342, %v1343
    %v1345 = vrot.slane %v1344, 2
    %v1346 = vmax.f32 %v1344, %v1345
    %v1347 = vrot.slane %v1346, 1
    %v1348 = vmax.f32 %v1346, %v1347
    %v1349 = vsel %vm1244, %v1212, -inf
    %v1350 = vsel %vm1244, %v1213, -inf
    %v1351 = vmax.f32 %v1349, %v1350
    %v1352 = vsel %vm1244, %v1214, -inf
    %v1353 = vmax.f32 %v1351, %v1352
    %v1354 = vsel %vm1244, %v1215, -inf
    %v1355 = vmax.f32 %v1353, %v1354
    %v1356 = vrot.slane %v1355, 4
    %v1357 = vmax.f32 %v1355, %v1356
    %v1358 = vrot.slane %v1357, 2
    %v1359 = vmax.f32 %v1357, %v1358
    %v1360 = vrot.slane %v1359, 1
    %v1361 = vmax.f32 %v1359, %v1360
    %v1362 = vsel %vm1244, %v1216, -inf
    %v1363 = vsel %vm1244, %v1217, -inf
    %v1364 = vmax.f32 %v1362, %v1363
    %v1365 = vsel %vm1244, %v1218, -inf
    %v1366 = vmax.f32 %v1364, %v1365
    %v1367 = vsel %vm1244, %v1219, -inf
    %v1368 = vmax.f32 %v1366, %v1367
    %v1369 = vrot.slane %v1368, 4
    %v1370 = vmax.f32 %v1368, %v1369
    %v1371 = vrot.slane %v1370, 2
    %v1372 = vmax.f32 %v1370, %v1371
    %v1373 = vrot.slane %v1372, 1
    %v1374 = vmax.f32 %v1372, %v1373
    %v1375 = vsel %vm1244, %v1220, -inf
    %v1376 = vsel %vm1244, %v1221, -inf
    %v1377 = vmax.f32 %v1375, %v1376
    %v1378 = vsel %vm1244, %v1222, -inf
    %v1379 = vmax.f32 %v1377, %v1378
    %v1380 = vsel %vm1244, %v1223, -inf
    %v1381 = vmax.f32 %v1379, %v1380
    %v1382 = vrot.slane %v1381, 4
    %v1383 = vmax.f32 %v1381, %v1382
    %v1384 = vrot.slane %v1383, 2
    %v1385 = vmax.f32 %v1383, %v1384
    %v1386 = vrot.slane %v1385, 1
    %v1387 = vmax.f32 %v1385, %v1386
    %v1388 = vsel %vm1244, %v1224, -inf
    %v1389 = vsel %vm1244, %v1225, -inf
    %v1390 = vmax.f32 %v1388, %v1389
    %v1391 = vsel %vm1244, %v1226, -inf
    %v1392 = vmax.f32 %v1390, %v1391
    %v1393 = vsel %vm1244, %v1227, -inf
    %v1394 = vmax.f32 %v1392, %v1393
    %v1395 = vrot.slane %v1394, 4
    %v1396 = vmax.f32 %v1394, %v1395
    %v1397 = vrot.slane %v1396, 2
    %v1398 = vmax.f32 %v1396, %v1397
    %v1399 = vrot.slane %v1398, 1
    %v1400 = vmax.f32 %v1398, %v1399
    %v1401 = vsel %vm1244, %v1228, -inf
    %v1402 = vsel %vm1244, %v1229, -inf
    %v1403 = vmax.f32 %v1401, %v1402
    %v1404 = vsel %vm1244, %v1230, -inf
    %v1405 = vmax.f32 %v1403, %v1404
    %v1406 = vsel %vm1244, %v1231, -inf
    %v1407 = vmax.f32 %v1405, %v1406
    %v1408 = vrot.slane %v1407, 4
    %v1409 = vmax.f32 %v1407, %v1408
    %v1410 = vrot.slane %v1409, 2
    %v1411 = vmax.f32 %v1409, %v1410
    %v1412 = vrot.slane %v1411, 1
    %v1413 = vmax.f32 %v1411, %v1412
    %v1414 = vsel %vm1244, %v1232, -inf
    %v1415 = vsel %vm1244, %v1233, -inf
    %v1416 = vmax.f32 %v1414, %v1415
    %v1417 = vsel %vm1244, %v1234, -inf
    %v1418 = vmax.f32 %v1416, %v1417
    %v1419 = vsel %vm1244, %v1235, -inf
    %v1420 = vmax.f32 %v1418, %v1419
    %v1421 = vrot.slane %v1420, 4
    %v1422 = vmax.f32 %v1420, %v1421
    %v1423 = vrot.slane %v1422, 2
    %v1424 = vmax.f32 %v1422, %v1423
    %v1425 = vrot.slane %v1424, 1
    %v1426 = vmax.f32 %v1424, %v1425
    %v1427 = vsel %vm1244, %v1236, -inf
    %v1428 = vsel %vm1244, %v1237, -inf
    %v1429 = vmax.f32 %v1427, %v1428
    %v1430 = vsel %vm1244, %v1238, -inf
    %v1431 = vmax.f32 %v1429, %v1430
    %v1432 = vsel %vm1244, %v1239, -inf
    %v1433 = vmax.f32 %v1431, %v1432
    %v1434 = vrot.slane %v1433, 4
    %v1435 = vmax.f32 %v1433, %v1434
    %v1436 = vrot.slane %v1435, 2
    %v1437 = vmax.f32 %v1435, %v1436
    %v1438 = vrot.slane %v1437, 1
    %v1439 = vmax.f32 %v1437, %v1438
    %v1440 = vsel %vm1244, %v1240, -inf
    %v1441 = vsel %vm1244, %v1241, -inf
    %v1442 = vmax.f32 %v1440, %v1441
    %v1443 = vsel %vm1244, %v1242, -inf
    %v1444 = vmax.f32 %v1442, %v1443
    %v1445 = vsel %vm1244, %v1243, -inf
    %v1446 = vmax.f32 %v1444, %v1445
    %v1447 = vrot.slane %v1446, 4
    %v1448 = vmax.f32 %v1446, %v1447
    %v1449 = vrot.slane %v1448, 2
    %v1450 = vmax.f32 %v1448, %v1449
    %v1451 = vrot.slane %v1450, 1
    %v1452 = vmax.f32 %v1450, %v1451
    %v1453 = vld [vmem:[%s5] sm:$0xff]
    %v1454 = vld [vmem:[%s5 + $0x8] sm:$0xff]
    %v1455 = vld [vmem:[%s5 + $0x10] sm:$0xff]
    %v1456 = vld [vmem:[%s5 + $0x18] sm:$0xff]
    %vm1473 = vcmask 1041409
    %v1474 = vsel %vm1473, %v1270, %v1257
    %vm1475 = vcmask 1042434
    %v1476 = vsel %vm1475, %v1283, %v1474
    %vm1477 = vcmask 1043459
    %v1478 = vsel %vm1477, %v1296, %v1476
    %vm1479 = vcmask 1044484
    %v1480 = vsel %vm1479, %v1309, %v1478
    %vm1481 = vcmask 1045509
    %v1482 = vsel %vm1481, %v1322, %v1480
    %vm1483 = vcmask 1046534
    %v1484 = vsel %vm1483, %v1335, %v1482
    %vm1485 = vcmask 1047559
    %v1486 = vsel %vm1485, %v1348, %v1484
    %v1487 = vsel %vm1473, %v1374, %v1361
    %v1488 = vsel %vm1475, %v1387, %v1487
    %v1489 = vsel %vm1477, %v1400, %v1488
    %v1490 = vsel %vm1479, %v1413, %v1489
    %v1491 = vsel %vm1481, %v1426, %v1490
    %v1492 = vsel %vm1483, %v1439, %v1491
    %v1493 = vsel %vm1485, %v1452, %v1492
    %vm1496 = vcmask 130048
    %v1498 = vsel %vm1496, %v1453, 0
    %v1501 = vsel %vm1496, %v1454, 0
    %v1504 = vsel %vm1496, %v1455, 0
    %v1507 = vsel %vm1496, %v1456, 0
    %1509 = vmatpush.msra.mxu0 0.0
    %1510 = vmatpush.msra.mxu0 0.0
    %1511 = vmatpush.msra.mxu0 0.0
    %1512 = vmatpush.msra.mxu0 0.0
    %1513 = vmatpush.msra.mxu0 0.0
    %1514 = vmatpush.msra.mxu0 0.0
    %1515 = vmatpush.msra.mxu0 0.0
    %1516 = vmatpush.msra.mxu0 0.0
    %1517 = vmatpush.msra.mxu0 0.0
    %1518 = vmatpush.msra.mxu0 0.0
    %1519 = vmatpush.msra.mxu0 0.0
    %1520 = vmatpush.msra.mxu0 0.0
    %1521 = vmatpush.msra.mxu0 0.0
    %1522 = vmatpush.msra.mxu0 0.0
    %1523 = vmatpush.msra.mxu0 %v1493
    %1524 = vmatpush.msra.mxu0 %v1486
    %1525 = vmatmul.f32.gmra.mxu0 %v1498
    %v1526 = vpop.f32.mrf.mxu0
    %v1527 = vadd.f32 0.0, %v1526
    %1528 = vmatmul.f32.gmra.mxu0 %v1501
    %v1529 = vpop.f32.mrf.mxu0
    %v1530 = vadd.f32 0.0, %v1529
    %1531 = vmatmul.f32.gmra.mxu0 %v1504
    %v1532 = vpop.f32.mrf.mxu0
    %v1533 = vadd.f32 0.0, %v1532
    %1534 = vmatmul.f32.gmra.mxu0 %v1507
    %v1535 = vpop.f32.mrf.mxu0
    %v1536 = vadd.f32 0.0, %v1535
    %1537 = vdwg.mxu0
    %vm1538 = vcmp.gt.f32.partialorder %v770, 0.0
    %vm1539 = vcmp.gt.f32.partialorder %v771, 0.0
    %vm1540 = vcmp.gt.f32.partialorder %v772, 0.0
    %vm1541 = vcmp.gt.f32.partialorder %v773, 0.0
    %v1542 = vsub.f32 %v766, %v1527
    %v1543 = vsub.f32 %v767, %v1530
    %v1544 = vsub.f32 %v768, %v1533
    %v1545 = vsub.f32 %v769, %v1536
    %v1546 = vsel %vm1538, 1, 0
    %v1547 = vsel %vm1539, 1, 0
    %v1548 = vsel %vm1540, 1, 0
    %v1549 = vsel %vm1541, 1, 0
    %1550 = vset.pattern.permute.xlu0 0
    %1551 = vperm.xlu0 %1550, %v1546
    %v1552 = vpop.permute.xlu0 %1551
    %1553 = vset.pattern.permute.xlu0 0
    %1554 = vperm.xlu0 %1553, %v1547
    %v1555 = vpop.permute.xlu0 %1554
    %1556 = vset.pattern.permute.xlu0 0
    %1557 = vperm.xlu0 %1556, %v1548
    %v1558 = vpop.permute.xlu0 %1557
    %1559 = vset.pattern.permute.xlu0 0
    %1560 = vperm.xlu0 %1559, %v1549
    %v1561 = vpop.permute.xlu0 %1560
    %vm1562 = vcmp.eq.s32.totalorder %v1552, 1
    %vm1563 = vcmp.eq.s32.totalorder %v1555, 1
    %vm1564 = vcmp.eq.s32.totalorder %v1558, 1
    %vm1565 = vcmp.eq.s32.totalorder %v1561, 1
    %v1566 = vsel %vm1562, %v1542, -1e+30
    %v1567 = vsel %vm1563, %v1543, -1e+30
    %v1568 = vsel %vm1564, %v1544, -1e+30
    %v1569 = vsel %vm1565, %v1545, -1e+30
    %v1570 = vmul.f32 %v1566, 1.442695
    %v1571 = vpow.pop %v1570
    %v1572 = vmul.f32 %v1567, 1.442695
    %v1573 = vpow.pop %v1572
    %v1574 = vmul.f32 %v1568, 1.442695
    %v1575 = vpow.pop %v1574
    %v1576 = vmul.f32 %v1569, 1.442695
    %v1577 = vpow.pop %v1576
    %v1578 = vld [vmem:[%s7] sm:$0xff]
    %v1579 = vld [vmem:[%s7 + $0x8] sm:$0xff]
    %v1580 = vld [vmem:[%s7 + $0x10] sm:$0xff]
    %v1581 = vld [vmem:[%s7 + $0x18] sm:$0xff]
    %v1582 = vsub.f32 1.0, %v770
    %v1583 = vsub.f32 1.0, %v771
    %v1584 = vsub.f32 1.0, %v772
    %v1585 = vsub.f32 1.0, %v773
    %1587 = vset.pattern.permute.xlu0 0
    %1588 = vperm.xlu0 %1587, %v1582
    %v1589 = vpop.permute.xlu0 %1588
    %1592 = vset.pattern.permute.xlu0 0
    %1593 = vperm.xlu0 %1592, %v1583
    %v1594 = vpop.permute.xlu0 %1593
    %1597 = vset.pattern.permute.xlu0 0
    %1598 = vperm.xlu0 %1597, %v1584
    %v1599 = vpop.permute.xlu0 %1598
    %1602 = vset.pattern.permute.xlu0 0
    %1603 = vperm.xlu0 %1602, %v1585
    %v1604 = vpop.permute.xlu0 %1603
    %v1607 = vsel %vm580, %v1578, 0
    %v1610 = vsel %vm580, %v1579, 0
    %v1613 = vsel %vm580, %v1580, 0
    %v1616 = vsel %vm580, %v1581, 0
    %1618 = vmatpush.msra.mxu0 0.0
    %1619 = vmatpush.msra.mxu0 0.0
    %1620 = vmatpush.msra.mxu0 0.0
    %1621 = vmatpush.msra.mxu0 0.0
    %1622 = vmatpush.msra.mxu0 0.0
    %1623 = vmatpush.msra.mxu0 0.0
    %1624 = vmatpush.msra.mxu0 0.0
    %1625 = vmatpush.msra.mxu0 0.0
    %1626 = vmatpush.msra.mxu0 0.0
    %1627 = vmatpush.msra.mxu0 0.0
    %1628 = vmatpush.msra.mxu0 0.0
    %1629 = vmatpush.msra.mxu0 0.0
    %1630 = vmatpush.msra.mxu0 %v1577
    %1631 = vmatpush.msra.mxu0 %v1575
    %1632 = vmatpush.msra.mxu0 %v1573
    %1633 = vmatpush.msra.mxu0 %v1571
    %1634 = vmatmul.f32.gmra.mxu0 %v1607
    %v1635 = vpop.f32.mrf.mxu0
    %v1636 = vadd.f32 %v1589, %v1635
    %1637 = vmatmul.f32.gmra.mxu0 %v1610
    %v1638 = vpop.f32.mrf.mxu0
    %v1639 = vadd.f32 %v1594, %v1638
    %1640 = vmatmul.f32.gmra.mxu0 %v1613
    %v1641 = vpop.f32.mrf.mxu0
    %v1642 = vadd.f32 %v1599, %v1641
    %1643 = vmatmul.f32.gmra.mxu0 %v1616
    %v1644 = vpop.f32.mrf.mxu0
    %v1645 = vadd.f32 %v1604, %v1644
    %1646 = vdwg.mxu0
    %v1647 = vrcp.pop %v1636
    %v1648 = vmul.f32 %v1636, %v1647
    %v1649 = vsub.f32 1.0, %v1648
    %v1650 = vmul.f32 %v1647, %v1649
    %v1651 = vadd.f32 %v1647, %v1650
    %vm1652 = vweird.f32 %v1636
    %vm1653 = vweird.f32 %v1647
    %vm1654 = vmor %vm1652, %vm1653
    %v1655 = vsel %vm1654, %v1647, %v1651
    %v1656 = vand.u32 2147483647, %v1636
    %vm1657 = vcmp.eq.f32.partialorder %v1656, 8.507059e+37
    %v1658 = vand.u32 %v1636, 2147483648
    %v1659 = vor.u32 1.1754944e-38, %v1658
    %v1660 = vsel %vm1657, %v1659, %v1655
    %v1661 = vmul.f32 %v1571, %v1660
    %v1662 = vrcp.pop %v1639
    %v1663 = vmul.f32 %v1639, %v1662
    %v1664 = vsub.f32 1.0, %v1663
    %v1665 = vmul.f32 %v1662, %v1664
    %v1666 = vadd.f32 %v1662, %v1665
    %vm1667 = vweird.f32 %v1639
    %vm1668 = vweird.f32 %v1662
    %vm1669 = vmor %vm1667, %vm1668
    %v1670 = vsel %vm1669, %v1662, %v1666
    %v1671 = vand.u32 2147483647, %v1639
    %vm1672 = vcmp.eq.f32.partialorder %v1671, 8.507059e+37
    %v1673 = vand.u32 %v1639, 2147483648
    %v1674 = vor.u32 1.1754944e-38, %v1673
    %v1675 = vsel %vm1672, %v1674, %v1670
    %v1676 = vmul.f32 %v1573, %v1675
    %v1677 = vrcp.pop %v1642
    %v1678 = vmul.f32 %v1642, %v1677
    %v1679 = vsub.f32 1.0, %v1678
    %v1680 = vmul.f32 %v1677, %v1679
    %v1681 = vadd.f32 %v1677, %v1680
    %vm1682 = vweird.f32 %v1642
    %vm1683 = vweird.f32 %v1677
    %vm1684 = vmor %vm1682, %vm1683
    %v1685 = vsel %vm1684, %v1677, %v1681
    %v1686 = vand.u32 2147483647, %v1642
    %vm1687 = vcmp.eq.f32.partialorder %v1686, 8.507059e+37
    %v1688 = vand.u32 %v1642, 2147483648
    %v1689 = vor.u32 1.1754944e-38, %v1688
    %v1690 = vsel %vm1687, %v1689, %v1685
    %v1691 = vmul.f32 %v1575, %v1690
    %v1692 = vrcp.pop %v1645
    %v1693 = vmul.f32 %v1645, %v1692
    %v1694 = vsub.f32 1.0, %v1693
    %v1695 = vmul.f32 %v1692, %v1694
    %v1696 = vadd.f32 %v1692, %v1695
    %vm1697 = vweird.f32 %v1645
    %vm1698 = vweird.f32 %v1692
    %vm1699 = vmor %vm1697, %vm1698
    %v1700 = vsel %vm1699, %v1692, %v1696
    %v1701 = vand.u32 2147483647, %v1645
    %vm1702 = vcmp.eq.f32.partialorder %v1701, 8.507059e+37
    %v1703 = vand.u32 %v1645, 2147483648
    %v1704 = vor.u32 1.1754944e-38, %v1703
    %v1705 = vsel %vm1702, %v1704, %v1700
    %v1706 = vmul.f32 %v1577, %v1705
    %v1708 = vsel %vm1244, %v1661, 0
    %v1711 = vsel %vm1244, %v1676, 0
    %v1714 = vsel %vm1244, %v1691, 0
    %v1717 = vsel %vm1244, %v1706, 0
    %vm1719 = vcmask 1043456
    %v1721 = vsel %vm1719, %v566, 0
    %1723 = vmatpush.msra.mxu0 0.0
    %1724 = vmatpush.msra.mxu0 0.0
    %1725 = vmatpush.msra.mxu0 0.0
    %1726 = vmatpush.msra.mxu0 0.0
    %1727 = vmatpush.msra.mxu0 0.0
    %1728 = vmatpush.msra.mxu0 0.0
    %1729 = vmatpush.msra.mxu0 0.0
    %1730 = vmatpush.msra.mxu0 0.0
    %1731 = vmatpush.msra.mxu0 0.0
    %1732 = vmatpush.msra.mxu0 0.0
    %1733 = vmatpush.msra.mxu0 0.0
    %1734 = vmatpush.msra.mxu0 0.0
    %1735 = vmatpush.msra.mxu0 0.0
    %1736 = vmatpush.msra.mxu0 0.0
    %1737 = vmatpush.msra.mxu0 0.0
    %1738 = vmatpush.msra.mxu0 %v1721
    %1739 = vmatmul.f32.gmra.mxu0 %v1708
    %v1740 = vpop.f32.mrf.mxu0
    %v1741 = vadd.f32 0.0, %v1740
    %1742 = vmatmul.f32.gmra.mxu0 %v1711
    %v1743 = vpop.f32.mrf.mxu0
    %v1744 = vadd.f32 0.0, %v1743
    %1745 = vmatmul.f32.gmra.mxu0 %v1714
    %v1746 = vpop.f32.mrf.mxu0
    %v1747 = vadd.f32 0.0, %v1746
    %1748 = vmatmul.f32.gmra.mxu0 %v1717
    %v1749 = vpop.f32.mrf.mxu0
    %v1750 = vadd.f32 0.0, %v1749
    %1751 = vdwg.mxu0
    %1752 = vmatpush.msra.mxu0 0.0
    %1753 = vmatpush.msra.mxu0 0.0
    %1754 = vmatpush.msra.mxu0 0.0
    %1755 = vmatpush.msra.mxu0 0.0
    %1756 = vmatpush.msra.mxu0 0.0
    %1757 = vmatpush.msra.mxu0 0.0
    %1758 = vmatpush.msra.mxu0 0.0
    %1759 = vmatpush.msra.mxu0 0.0
    %1760 = vmatpush.msra.mxu0 0.0
    %1761 = vmatpush.msra.mxu0 0.0
    %1762 = vmatpush.msra.mxu0 0.0
    %1763 = vmatpush.msra.mxu0 0.0
    %1764 = vmatpush.msra.mxu0 %v570
    %1765 = vmatpush.msra.mxu0 %v569
    %1766 = vmatpush.msra.mxu0 %v568
    %1767 = vmatpush.msra.mxu0 %v567
    %1768 = vmatmul.f32.gmra.mxu0 %v718
    %v1769 = vpop.f32.mrf.mxu0
    %v1770 = vadd.f32 0.0, %v1769
    %1771 = vmatmul.f32.gmra.mxu0 %v721
    %v1772 = vpop.f32.mrf.mxu0
    %v1773 = vadd.f32 0.0, %v1772
    %1774 = vmatmul.f32.gmra.mxu0 %v724
    %v1775 = vpop.f32.mrf.mxu0
    %v1776 = vadd.f32 0.0, %v1775
    %1777 = vmatmul.f32.gmra.mxu0 %v727
    %v1778 = vpop.f32.mrf.mxu0
    %v1779 = vadd.f32 0.0, %v1778
    %1780 = vdwg.mxu0
    %v1781 = vld [vmem:[%s8] sm:$0xff]
    %v1782 = vmul.f32 %v1741, %v1770
    %v1783 = vmul.f32 %v1744, %v1773
    %v1784 = vmul.f32 %v1747, %v1776
    %v1785 = vmul.f32 %v1750, %v1779
    %v1787 = vsel %vm580, %v1781, 0
    %1789 = vmatpush.msra.mxu0 0.0
    %1790 = vmatpush.msra.mxu0 0.0
    %1791 = vmatpush.msra.mxu0 0.0
    %1792 = vmatpush.msra.mxu0 0.0
    %1793 = vmatpush.msra.mxu0 0.0
    %1794 = vmatpush.msra.mxu0 0.0
    %1795 = vmatpush.msra.mxu0 0.0
    %1796 = vmatpush.msra.mxu0 0.0
    %1797 = vmatpush.msra.mxu0 0.0
    %1798 = vmatpush.msra.mxu0 0.0
    %1799 = vmatpush.msra.mxu0 0.0
    %1800 = vmatpush.msra.mxu0 0.0
    %1801 = vmatpush.msra.mxu0 %v1785
    %1802 = vmatpush.msra.mxu0 %v1784
    %1803 = vmatpush.msra.mxu0 %v1783
    %1804 = vmatpush.msra.mxu0 %v1782
    %1805 = vmatmul.f32.gmra.mxu0 %v1787
    %v1806 = vpop.f32.mrf.mxu0
    %v1807 = vadd.f32 0.0, %v1806
    %1808 = vdwg.mxu0
    %vm1809 = vcmp.gt.f32.partialorder %v1807, 0.0
    %v1810 = vmin.f32 %v1807, 0.0
    %v1811 = vmul.f32 %v1810, 1.442695
    %v1812 = vpow.pop %v1811
    %v1813 = vsub.f32 %v1812, 1.0
    %v1814 = vsel %vm1809, %v1807, %v1813
    %s1815 = scalar_lea.vmem %s3, 128
    %v1816 = vld [vmem:[%s1815] sm:$0xff]
    %v1817 = vld [vmem:[%s1815 + $0x8] sm:$0xff]
    %v1818 = vld [vmem:[%s1815 + $0x10] sm:$0xff]
    %v1819 = vld [vmem:[%s1815 + $0x18] sm:$0xff]
    %s1820 = scalar_lea.vmem %s3, 160
    %v1821 = vld [vmem:[%s1820] sm:$0xff]
    %v1822 = vld [vmem:[%s1820 + $0x8] sm:$0xff]
    %v1823 = vld [vmem:[%s1820 + $0x10] sm:$0xff]
    %v1824 = vld [vmem:[%s1820 + $0x18] sm:$0xff]
    %v1826 = vsel %vm580, %v531, 0
    %v1829 = vsel %vm580, %v534, 0
    %v1832 = vsel %vm580, %v537, 0
    %v1835 = vsel %vm580, %v540, 0
    %1837 = vmatpush.msra.mxu0 0.0
    %1838 = vmatpush.msra.mxu0 0.0
    %1839 = vmatpush.msra.mxu0 0.0
    %1840 = vmatpush.msra.mxu0 0.0
    %1841 = vmatpush.msra.mxu0 0.0
    %1842 = vmatpush.msra.mxu0 0.0
    %1843 = vmatpush.msra.mxu0 0.0
    %1844 = vmatpush.msra.mxu0 0.0
    %1845 = vmatpush.msra.mxu0 0.0
    %1846 = vmatpush.msra.mxu0 0.0
    %1847 = vmatpush.msra.mxu0 0.0
    %1848 = vmatpush.msra.mxu0 0.0
    %1849 = vmatpush.msra.mxu0 %v1824
    %1850 = vmatpush.msra.mxu0 %v1823
    %1851 = vmatpush.msra.mxu0 %v1822
    %1852 = vmatpush.msra.mxu0 %v1821
    %1853 = vmatmul.f32.gmra.mxu0 %v1826
    %v1854 = vpop.f32.mrf.mxu0
    %v1855 = vadd.f32 0.0, %v1854
    %1856 = vmatmul.f32.gmra.mxu0 %v1829
    %v1857 = vpop.f32.mrf.mxu0
    %v1858 = vadd.f32 0.0, %v1857
    %1859 = vmatmul.f32.gmra.mxu0 %v1832
    %v1860 = vpop.f32.mrf.mxu0
    %v1861 = vadd.f32 0.0, %v1860
    %1862 = vmatmul.f32.gmra.mxu0 %v1835
    %v1863 = vpop.f32.mrf.mxu0
    %v1864 = vadd.f32 0.0, %v1863
    %1865 = vdwg.mxu0
    %v1867 = vsel %vm580, %v519, 0
    %v1870 = vsel %vm580, %v522, 0
    %v1873 = vsel %vm580, %v525, 0
    %v1876 = vsel %vm580, %v528, 0
    %1878 = vmatpush.msra.mxu0 0.0
    %1879 = vmatpush.msra.mxu0 0.0
    %1880 = vmatpush.msra.mxu0 0.0
    %1881 = vmatpush.msra.mxu0 0.0
    %1882 = vmatpush.msra.mxu0 0.0
    %1883 = vmatpush.msra.mxu0 0.0
    %1884 = vmatpush.msra.mxu0 0.0
    %1885 = vmatpush.msra.mxu0 0.0
    %1886 = vmatpush.msra.mxu0 0.0
    %1887 = vmatpush.msra.mxu0 0.0
    %1888 = vmatpush.msra.mxu0 0.0
    %1889 = vmatpush.msra.mxu0 0.0
    %1890 = vmatpush.msra.mxu0 %v1819
    %1891 = vmatpush.msra.mxu0 %v1818
    %1892 = vmatpush.msra.mxu0 %v1817
    %1893 = vmatpush.msra.mxu0 %v1816
    %1894 = vmatmul.f32.gmra.mxu0 %v1867
    %v1895 = vpop.f32.mrf.mxu0
    %v1896 = vadd.f32 %v1855, %v1895
    %1897 = vmatmul.f32.gmra.mxu0 %v1870
    %v1898 = vpop.f32.mrf.mxu0
    %v1899 = vadd.f32 %v1858, %v1898
    %1900 = vmatmul.f32.gmra.mxu0 %v1873
    %v1901 = vpop.f32.mrf.mxu0
    %v1902 = vadd.f32 %v1861, %v1901
    %1903 = vmatmul.f32.gmra.mxu0 %v1876
    %v1904 = vpop.f32.mrf.mxu0
    %v1905 = vadd.f32 %v1864, %v1904
    %1906 = vdwg.mxu0
    %s1907 = scalar_lea.vmem %s3, 192
    %v1908 = vld [vmem:[%s1907] sm:$0xff]
    %v1909 = vld [vmem:[%s1907 + $0x8] sm:$0xff]
    %v1910 = vld [vmem:[%s1907 + $0x10] sm:$0xff]
    %v1911 = vld [vmem:[%s1907 + $0x18] sm:$0xff]
    %v1913 = vsel %vm580, %v543, 0
    %v1916 = vsel %vm580, %v546, 0
    %v1919 = vsel %vm580, %v549, 0
    %v1922 = vsel %vm580, %v552, 0
    %1924 = vmatpush.msra.mxu0 0.0
    %1925 = vmatpush.msra.mxu0 0.0
    %1926 = vmatpush.msra.mxu0 0.0
    %1927 = vmatpush.msra.mxu0 0.0
    %1928 = vmatpush.msra.mxu0 0.0
    %1929 = vmatpush.msra.mxu0 0.0
    %1930 = vmatpush.msra.mxu0 0.0
    %1931 = vmatpush.msra.mxu0 0.0
    %1932 = vmatpush.msra.mxu0 0.0
    %1933 = vmatpush.msra.mxu0 0.0
    %1934 = vmatpush.msra.mxu0 0.0
    %1935 = vmatpush.msra.mxu0 0.0
    %1936 = vmatpush.msra.mxu0 %v1911
    %1937 = vmatpush.msra.mxu0 %v1910
    %1938 = vmatpush.msra.mxu0 %v1909
    %1939 = vmatpush.msra.mxu0 %v1908
    %1940 = vmatmul.f32.gmra.mxu0 %v1913
    %v1941 = vpop.f32.mrf.mxu0
    %v1942 = vadd.f32 0.0, %v1941
    %1943 = vmatmul.f32.gmra.mxu0 %v1916
    %v1944 = vpop.f32.mrf.mxu0
    %v1945 = vadd.f32 0.0, %v1944
    %1946 = vmatmul.f32.gmra.mxu0 %v1919
    %v1947 = vpop.f32.mrf.mxu0
    %v1948 = vadd.f32 0.0, %v1947
    %1949 = vmatmul.f32.gmra.mxu0 %v1922
    %v1950 = vpop.f32.mrf.mxu0
    %v1951 = vadd.f32 0.0, %v1950
    %1952 = vdwg.mxu0
    %v1953 = vadd.f32 %v1896, %v1942
    %v1954 = vadd.f32 %v1899, %v1945
    %v1955 = vadd.f32 %v1902, %v1948
    %v1956 = vadd.f32 %v1905, %v1951
    %s1957 = scalar_lea.vmem %s3, 224
    %v1958 = vld [vmem:[%s1957] sm:$0xff]
    %v1959 = vld [vmem:[%s1957 + $0x8] sm:$0xff]
    %v1960 = vld [vmem:[%s1957 + $0x10] sm:$0xff]
    %v1961 = vld [vmem:[%s1957 + $0x18] sm:$0xff]
    %v1963 = vsel %vm580, %v555, 0
    %v1966 = vsel %vm580, %v558, 0
    %v1969 = vsel %vm580, %v561, 0
    %v1972 = vsel %vm580, %v564, 0
    %1974 = vmatpush.msra.mxu0 0.0
    %1975 = vmatpush.msra.mxu0 0.0
    %1976 = vmatpush.msra.mxu0 0.0
    %1977 = vmatpush.msra.mxu0 0.0
    %1978 = vmatpush.msra.mxu0 0.0
    %1979 = vmatpush.msra.mxu0 0.0
    %1980 = vmatpush.msra.mxu0 0.0
    %1981 = vmatpush.msra.mxu0 0.0
    %1982 = vmatpush.msra.mxu0 0.0
    %1983 = vmatpush.msra.mxu0 0.0
    %1984 = vmatpush.msra.mxu0 0.0
    %1985 = vmatpush.msra.mxu0 0.0
    %1986 = vmatpush.msra.mxu0 %v1961
    %1987 = vmatpush.msra.mxu0 %v1960
    %1988 = vmatpush.msra.mxu0 %v1959
    %1989 = vmatpush.msra.mxu0 %v1958
    %1990 = vmatmul.f32.gmra.mxu0 %v1963
    %v1991 = vpop.f32.mrf.mxu0
    %v1992 = vadd.f32 0.0, %v1991
    %1993 = vmatmul.f32.gmra.mxu0 %v1966
    %v1994 = vpop.f32.mrf.mxu0
    %v1995 = vadd.f32 0.0, %v1994
    %1996 = vmatmul.f32.gmra.mxu0 %v1969
    %v1997 = vpop.f32.mrf.mxu0
    %v1998 = vadd.f32 0.0, %v1997
    %1999 = vmatmul.f32.gmra.mxu0 %v1972
    %v2000 = vpop.f32.mrf.mxu0
    %v2001 = vadd.f32 0.0, %v2000
    %2002 = vdwg.mxu0
    %v2003 = vadd.f32 %v1953, %v1992
    %v2004 = vadd.f32 %v1954, %v1995
    %v2005 = vadd.f32 %v1955, %v1998
    %v2006 = vadd.f32 %v1956, %v2001
    %s2007 = scalar_lea.vmem %s4, 32
    %v2008 = vld [vmem:[%s2007] sm:$0xff]
    %v2009 = vld [vmem:[%s2007 + $0x8] sm:$0xff]
    %v2010 = vld [vmem:[%s2007 + $0x10] sm:$0xff]
    %v2011 = vld [vmem:[%s2007 + $0x18] sm:$0xff]
    %v2013 = vsel %vm580, %v2003, 0
    %v2016 = vsel %vm580, %v2004, 0
    %v2019 = vsel %vm580, %v2005, 0
    %v2022 = vsel %vm580, %v2006, 0
    %2024 = vmatpush.msra.mxu0 0.0
    %2025 = vmatpush.msra.mxu0 0.0
    %2026 = vmatpush.msra.mxu0 0.0
    %2027 = vmatpush.msra.mxu0 0.0
    %2028 = vmatpush.msra.mxu0 0.0
    %2029 = vmatpush.msra.mxu0 0.0
    %2030 = vmatpush.msra.mxu0 0.0
    %2031 = vmatpush.msra.mxu0 0.0
    %2032 = vmatpush.msra.mxu0 0.0
    %2033 = vmatpush.msra.mxu0 0.0
    %2034 = vmatpush.msra.mxu0 0.0
    %2035 = vmatpush.msra.mxu0 0.0
    %2036 = vmatpush.msra.mxu0 %v2011
    %2037 = vmatpush.msra.mxu0 %v2010
    %2038 = vmatpush.msra.mxu0 %v2009
    %2039 = vmatpush.msra.mxu0 %v2008
    %2040 = vmatmul.f32.gmra.mxu0 %v2013
    %v2041 = vpop.f32.mrf.mxu0
    %v2042 = vadd.f32 0.0, %v2041
    %2043 = vmatmul.f32.gmra.mxu0 %v2016
    %v2044 = vpop.f32.mrf.mxu0
    %v2045 = vadd.f32 0.0, %v2044
    %2046 = vmatmul.f32.gmra.mxu0 %v2019
    %v2047 = vpop.f32.mrf.mxu0
    %v2048 = vadd.f32 0.0, %v2047
    %2049 = vmatmul.f32.gmra.mxu0 %v2022
    %v2050 = vpop.f32.mrf.mxu0
    %v2051 = vadd.f32 0.0, %v2050
    %2052 = vdwg.mxu0
    %vm2053 = vcmp.gt.f32.partialorder %v2042, 0.0
    %vm2054 = vcmp.gt.f32.partialorder %v2045, 0.0
    %vm2055 = vcmp.gt.f32.partialorder %v2048, 0.0
    %vm2056 = vcmp.gt.f32.partialorder %v2051, 0.0
    %v2057 = vmul.f32 %v2042, 0.01
    %v2058 = vmul.f32 %v2045, 0.01
    %v2059 = vmul.f32 %v2048, 0.01
    %v2060 = vmul.f32 %v2051, 0.01
    %v2061 = vsel %vm2053, %v2042, %v2057
    %v2062 = vsel %vm2054, %v2045, %v2058
    %v2063 = vsel %vm2055, %v2048, %v2059
    %v2064 = vsel %vm2056, %v2051, %v2060
    %s2065 = scalar_lea.vmem %s9, 32
    %v2066 = vld [vmem:[%s2065] sm:$0xff]
    %v2067 = vld [vmem:[%s2065 + $0x8] sm:$0xff]
    %v2068 = vld [vmem:[%s2065 + $0x10] sm:$0xff]
    %v2069 = vld [vmem:[%s2065 + $0x18] sm:$0xff]
    %s2070 = scalar_lea.vmem %s6, 16
    %v2071 = vld [vmem:[%s2070] sm:$0xff]
    %v2072 = vld [vmem:[%s2070 + $0x8] sm:$0xff]
    %v2073 = vsub.f32 %v2071, 1.0
    %v2074 = vsub.f32 %v2072, 1.0
    %v2075 = vmul.f32 %v2073, 1e+30
    %v2076 = vmul.f32 %v2074, 1e+30
    %v2077 = vperm.slane %v2075, 0
    %v2078 = vlaneseq
    %v2079 = vshrl.u32 %v2078, 7
    %2081 = vset.pattern.permute.xlu0 %v2079
    %2082 = vperm.xlu0 %2081, %v2077
    %v2083 = vpop.permute.xlu0 %2082
    %v2084 = vlaneseq
    %v2085 = vshrl.u32 %v2084, 7
    %v2086 = vadd.s32 %v2085, 8
    %2087 = vset.pattern.permute.xlu0 %v2086
    %2088 = vperm.xlu0 %2087, %v2077
    %v2089 = vpop.permute.xlu0 %2088
    %v2090 = vlaneseq
    %v2091 = vshrl.u32 %v2090, 7
    %v2092 = vadd.s32 %v2091, 16
    %2093 = vset.pattern.permute.xlu0 %v2092
    %2094 = vperm.xlu0 %2093, %v2077
    %v2095 = vpop.permute.xlu0 %2094
    %v2096 = vlaneseq
    %v2097 = vshrl.u32 %v2096, 7
    %v2098 = vadd.s32 %v2097, 24
    %2099 = vset.pattern.permute.xlu0 %v2098
    %2100 = vperm.xlu0 %2099, %v2077
    %v2101 = vpop.permute.xlu0 %2100
    %v2102 = vperm.slane %v2075, 1
    %v2103 = vlaneseq
    %v2104 = vshrl.u32 %v2103, 7
    %2106 = vset.pattern.permute.xlu0 %v2104
    %2107 = vperm.xlu0 %2106, %v2102
    %v2108 = vpop.permute.xlu0 %2107
    %v2109 = vlaneseq
    %v2110 = vshrl.u32 %v2109, 7
    %v2111 = vadd.s32 %v2110, 8
    %2112 = vset.pattern.permute.xlu0 %v2111
    %2113 = vperm.xlu0 %2112, %v2102
    %v2114 = vpop.permute.xlu0 %2113
    %v2115 = vlaneseq
    %v2116 = vshrl.u32 %v2115, 7
    %v2117 = vadd.s32 %v2116, 16
    %2118 = vset.pattern.permute.xlu0 %v2117
    %2119 = vperm.xlu0 %2118, %v2102
    %v2120 = vpop.permute.xlu0 %2119
    %v2121 = vlaneseq
    %v2122 = vshrl.u32 %v2121, 7
    %v2123 = vadd.s32 %v2122, 24
    %2124 = vset.pattern.permute.xlu0 %v2123
    %2125 = vperm.xlu0 %2124, %v2102
    %v2126 = vpop.permute.xlu0 %2125
    %v2127 = vperm.slane %v2075, 2
    %v2128 = vlaneseq
    %v2129 = vshrl.u32 %v2128, 7
    %2131 = vset.pattern.permute.xlu0 %v2129
    %2132 = vperm.xlu0 %2131, %v2127
    %v2133 = vpop.permute.xlu0 %2132
    %v2134 = vlaneseq
    %v2135 = vshrl.u32 %v2134, 7
    %v2136 = vadd.s32 %v2135, 8
    %2137 = vset.pattern.permute.xlu0 %v2136
    %2138 = vperm.xlu0 %2137, %v2127
    %v2139 = vpop.permute.xlu0 %2138
    %v2140 = vlaneseq
    %v2141 = vshrl.u32 %v2140, 7
    %v2142 = vadd.s32 %v2141, 16
    %2143 = vset.pattern.permute.xlu0 %v2142
    %2144 = vperm.xlu0 %2143, %v2127
    %v2145 = vpop.permute.xlu0 %2144
    %v2146 = vlaneseq
    %v2147 = vshrl.u32 %v2146, 7
    %v2148 = vadd.s32 %v2147, 24
    %2149 = vset.pattern.permute.xlu0 %v2148
    %2150 = vperm.xlu0 %2149, %v2127
    %v2151 = vpop.permute.xlu0 %2150
    %v2152 = vperm.slane %v2075, 3
    %v2153 = vlaneseq
    %v2154 = vshrl.u32 %v2153, 7
    %2156 = vset.pattern.permute.xlu0 %v2154
    %2157 = vperm.xlu0 %2156, %v2152
    %v2158 = vpop.permute.xlu0 %2157
    %v2159 = vlaneseq
    %v2160 = vshrl.u32 %v2159, 7
    %v2161 = vadd.s32 %v2160, 8
    %2162 = vset.pattern.permute.xlu0 %v2161
    %2163 = vperm.xlu0 %2162, %v2152
    %v2164 = vpop.permute.xlu0 %2163
    %v2165 = vlaneseq
    %v2166 = vshrl.u32 %v2165, 7
    %v2167 = vadd.s32 %v2166, 16
    %2168 = vset.pattern.permute.xlu0 %v2167
    %2169 = vperm.xlu0 %2168, %v2152
    %v2170 = vpop.permute.xlu0 %2169
    %v2171 = vlaneseq
    %v2172 = vshrl.u32 %v2171, 7
    %v2173 = vadd.s32 %v2172, 24
    %2174 = vset.pattern.permute.xlu0 %v2173
    %2175 = vperm.xlu0 %2174, %v2152
    %v2176 = vpop.permute.xlu0 %2175
    %v2177 = vperm.slane %v2075, 4
    %v2178 = vlaneseq
    %v2179 = vshrl.u32 %v2178, 7
    %2181 = vset.pattern.permute.xlu0 %v2179
    %2182 = vperm.xlu0 %2181, %v2177
    %v2183 = vpop.permute.xlu0 %2182
    %v2184 = vlaneseq
    %v2185 = vshrl.u32 %v2184, 7
    %v2186 = vadd.s32 %v2185, 8
    %2187 = vset.pattern.permute.xlu0 %v2186
    %2188 = vperm.xlu0 %2187, %v2177
    %v2189 = vpop.permute.xlu0 %2188
    %v2190 = vlaneseq
    %v2191 = vshrl.u32 %v2190, 7
    %v2192 = vadd.s32 %v2191, 16
    %2193 = vset.pattern.permute.xlu0 %v2192
    %2194 = vperm.xlu0 %2193, %v2177
    %v2195 = vpop.permute.xlu0 %2194
    %v2196 = vlaneseq
    %v2197 = vshrl.u32 %v2196, 7
    %v2198 = vadd.s32 %v2197, 24
    %2199 = vset.pattern.permute.xlu0 %v2198
    %2200 = vperm.xlu0 %2199, %v2177
    %v2201 = vpop.permute.xlu0 %2200
    %v2202 = vperm.slane %v2075, 5
    %v2203 = vlaneseq
    %v2204 = vshrl.u32 %v2203, 7
    %2206 = vset.pattern.permute.xlu0 %v2204
    %2207 = vperm.xlu0 %2206, %v2202
    %v2208 = vpop.permute.xlu0 %2207
    %v2209 = vlaneseq
    %v2210 = vshrl.u32 %v2209, 7
    %v2211 = vadd.s32 %v2210, 8
    %2212 = vset.pattern.permute.xlu0 %v2211
    %2213 = vperm.xlu0 %2212, %v2202
    %v2214 = vpop.permute.xlu0 %2213
    %v2215 = vlaneseq
    %v2216 = vshrl.u32 %v2215, 7
    %v2217 = vadd.s32 %v2216, 16
    %2218 = vset.pattern.permute.xlu0 %v2217
    %2219 = vperm.xlu0 %2218, %v2202
    %v2220 = vpop.permute.xlu0 %2219
    %v2221 = vlaneseq
    %v2222 = vshrl.u32 %v2221, 7
    %v2223 = vadd.s32 %v2222, 24
    %2224 = vset.pattern.permute.xlu0 %v2223
    %2225 = vperm.xlu0 %2224, %v2202
    %v2226 = vpop.permute.xlu0 %2225
    %v2227 = vperm.slane %v2075, 6
    %v2228 = vlaneseq
    %v2229 = vshrl.u32 %v2228, 7
    %2231 = vset.pattern.permute.xlu0 %v2229
    %2232 = vperm.xlu0 %2231, %v2227
    %v2233 = vpop.permute.xlu0 %2232
    %v2234 = vlaneseq
    %v2235 = vshrl.u32 %v2234, 7
    %v2236 = vadd.s32 %v2235, 8
    %2237 = vset.pattern.permute.xlu0 %v2236
    %2238 = vperm.xlu0 %2237, %v2227
    %v2239 = vpop.permute.xlu0 %2238
    %v2240 = vlaneseq
    %v2241 = vshrl.u32 %v2240, 7
    %v2242 = vadd.s32 %v2241, 16
    %2243 = vset.pattern.permute.xlu0 %v2242
    %2244 = vperm.xlu0 %2243, %v2227
    %v2245 = vpop.permute.xlu0 %2244
    %v2246 = vlaneseq
    %v2247 = vshrl.u32 %v2246, 7
    %v2248 = vadd.s32 %v2247, 24
    %2249 = vset.pattern.permute.xlu0 %v2248
    %2250 = vperm.xlu0 %2249, %v2227
    %v2251 = vpop.permute.xlu0 %2250
    %v2252 = vperm.slane %v2075, 7
    %v2253 = vlaneseq
    %v2254 = vshrl.u32 %v2253, 7
    %2256 = vset.pattern.permute.xlu0 %v2254
    %2257 = vperm.xlu0 %2256, %v2252
    %v2258 = vpop.permute.xlu0 %2257
    %v2259 = vlaneseq
    %v2260 = vshrl.u32 %v2259, 7
    %v2261 = vadd.s32 %v2260, 8
    %2262 = vset.pattern.permute.xlu0 %v2261
    %2263 = vperm.xlu0 %2262, %v2252
    %v2264 = vpop.permute.xlu0 %2263
    %v2265 = vlaneseq
    %v2266 = vshrl.u32 %v2265, 7
    %v2267 = vadd.s32 %v2266, 16
    %2268 = vset.pattern.permute.xlu0 %v2267
    %2269 = vperm.xlu0 %2268, %v2252
    %v2270 = vpop.permute.xlu0 %2269
    %v2271 = vlaneseq
    %v2272 = vshrl.u32 %v2271, 7
    %v2273 = vadd.s32 %v2272, 24
    %2274 = vset.pattern.permute.xlu0 %v2273
    %2275 = vperm.xlu0 %2274, %v2252
    %v2276 = vpop.permute.xlu0 %2275
    %v2277 = vperm.slane %v2076, 0
    %v2278 = vlaneseq
    %v2279 = vshrl.u32 %v2278, 7
    %2281 = vset.pattern.permute.xlu0 %v2279
    %2282 = vperm.xlu0 %2281, %v2277
    %v2283 = vpop.permute.xlu0 %2282
    %v2284 = vlaneseq
    %v2285 = vshrl.u32 %v2284, 7
    %v2286 = vadd.s32 %v2285, 8
    %2287 = vset.pattern.permute.xlu0 %v2286
    %2288 = vperm.xlu0 %2287, %v2277
    %v2289 = vpop.permute.xlu0 %2288
    %v2290 = vlaneseq
    %v2291 = vshrl.u32 %v2290, 7
    %v2292 = vadd.s32 %v2291, 16
    %2293 = vset.pattern.permute.xlu0 %v2292
    %2294 = vperm.xlu0 %2293, %v2277
    %v2295 = vpop.permute.xlu0 %2294
    %v2296 = vlaneseq
    %v2297 = vshrl.u32 %v2296, 7
    %v2298 = vadd.s32 %v2297, 24
    %2299 = vset.pattern.permute.xlu0 %v2298
    %2300 = vperm.xlu0 %2299, %v2277
    %v2301 = vpop.permute.xlu0 %2300
    %v2302 = vperm.slane %v2076, 1
    %v2303 = vlaneseq
    %v2304 = vshrl.u32 %v2303, 7
    %2306 = vset.pattern.permute.xlu0 %v2304
    %2307 = vperm.xlu0 %2306, %v2302
    %v2308 = vpop.permute.xlu0 %2307
    %v2309 = vlaneseq
    %v2310 = vshrl.u32 %v2309, 7
    %v2311 = vadd.s32 %v2310, 8
    %2312 = vset.pattern.permute.xlu0 %v2311
    %2313 = vperm.xlu0 %2312, %v2302
    %v2314 = vpop.permute.xlu0 %2313
    %v2315 = vlaneseq
    %v2316 = vshrl.u32 %v2315, 7
    %v2317 = vadd.s32 %v2316, 16
    %2318 = vset.pattern.permute.xlu0 %v2317
    %2319 = vperm.xlu0 %2318, %v2302
    %v2320 = vpop.permute.xlu0 %2319
    %v2321 = vlaneseq
    %v2322 = vshrl.u32 %v2321, 7
    %v2323 = vadd.s32 %v2322, 24
    %2324 = vset.pattern.permute.xlu0 %v2323
    %2325 = vperm.xlu0 %2324, %v2302
    %v2326 = vpop.permute.xlu0 %2325
    %v2327 = vperm.slane %v2076, 2
    %v2328 = vlaneseq
    %v2329 = vshrl.u32 %v2328, 7
    %2331 = vset.pattern.permute.xlu0 %v2329
    %2332 = vperm.xlu0 %2331, %v2327
    %v2333 = vpop.permute.xlu0 %2332
    %v2334 = vlaneseq
    %v2335 = vshrl.u32 %v2334, 7
    %v2336 = vadd.s32 %v2335, 8
    %2337 = vset.pattern.permute.xlu0 %v2336
    %2338 = vperm.xlu0 %2337, %v2327
    %v2339 = vpop.permute.xlu0 %2338
    %v2340 = vlaneseq
    %v2341 = vshrl.u32 %v2340, 7
    %v2342 = vadd.s32 %v2341, 16
    %2343 = vset.pattern.permute.xlu0 %v2342
    %2344 = vperm.xlu0 %2343, %v2327
    %v2345 = vpop.permute.xlu0 %2344
    %v2346 = vlaneseq
    %v2347 = vshrl.u32 %v2346, 7
    %v2348 = vadd.s32 %v2347, 24
    %2349 = vset.pattern.permute.xlu0 %v2348
    %2350 = vperm.xlu0 %2349, %v2327
    %v2351 = vpop.permute.xlu0 %2350
    %v2352 = vperm.slane %v2076, 3
    %v2353 = vlaneseq
    %v2354 = vshrl.u32 %v2353, 7
    %2356 = vset.pattern.permute.xlu0 %v2354
    %2357 = vperm.xlu0 %2356, %v2352
    %v2358 = vpop.permute.xlu0 %2357
    %v2359 = vlaneseq
    %v2360 = vshrl.u32 %v2359, 7
    %v2361 = vadd.s32 %v2360, 8
    %2362 = vset.pattern.permute.xlu0 %v2361
    %2363 = vperm.xlu0 %2362, %v2352
    %v2364 = vpop.permute.xlu0 %2363
    %v2365 = vlaneseq
    %v2366 = vshrl.u32 %v2365, 7
    %v2367 = vadd.s32 %v2366, 16
    %2368 = vset.pattern.permute.xlu0 %v2367
    %2369 = vperm.xlu0 %2368, %v2352
    %v2370 = vpop.permute.xlu0 %2369
    %v2371 = vlaneseq
    %v2372 = vshrl.u32 %v2371, 7
    %v2373 = vadd.s32 %v2372, 24
    %2374 = vset.pattern.permute.xlu0 %v2373
    %2375 = vperm.xlu0 %2374, %v2352
    %v2376 = vpop.permute.xlu0 %2375
    %v2377 = vperm.slane %v2076, 4
    %v2378 = vlaneseq
    %v2379 = vshrl.u32 %v2378, 7
    %2381 = vset.pattern.permute.xlu0 %v2379
    %2382 = vperm.xlu0 %2381, %v2377
    %v2383 = vpop.permute.xlu0 %2382
    %v2384 = vlaneseq
    %v2385 = vshrl.u32 %v2384, 7
    %v2386 = vadd.s32 %v2385, 8
    %2387 = vset.pattern.permute.xlu0 %v2386
    %2388 = vperm.xlu0 %2387, %v2377
    %v2389 = vpop.permute.xlu0 %2388
    %v2390 = vlaneseq
    %v2391 = vshrl.u32 %v2390, 7
    %v2392 = vadd.s32 %v2391, 16
    %2393 = vset.pattern.permute.xlu0 %v2392
    %2394 = vperm.xlu0 %2393, %v2377
    %v2395 = vpop.permute.xlu0 %2394
    %v2396 = vlaneseq
    %v2397 = vshrl.u32 %v2396, 7
    %v2398 = vadd.s32 %v2397, 24
    %2399 = vset.pattern.permute.xlu0 %v2398
    %2400 = vperm.xlu0 %2399, %v2377
    %v2401 = vpop.permute.xlu0 %2400
    %v2402 = vperm.slane %v2076, 5
    %v2403 = vlaneseq
    %v2404 = vshrl.u32 %v2403, 7
    %2406 = vset.pattern.permute.xlu0 %v2404
    %2407 = vperm.xlu0 %2406, %v2402
    %v2408 = vpop.permute.xlu0 %2407
    %v2409 = vlaneseq
    %v2410 = vshrl.u32 %v2409, 7
    %v2411 = vadd.s32 %v2410, 8
    %2412 = vset.pattern.permute.xlu0 %v2411
    %2413 = vperm.xlu0 %2412, %v2402
    %v2414 = vpop.permute.xlu0 %2413
    %v2415 = vlaneseq
    %v2416 = vshrl.u32 %v2415, 7
    %v2417 = vadd.s32 %v2416, 16
    %2418 = vset.pattern.permute.xlu0 %v2417
    %2419 = vperm.xlu0 %2418, %v2402
    %v2420 = vpop.permute.xlu0 %2419
    %v2421 = vlaneseq
    %v2422 = vshrl.u32 %v2421, 7
    %v2423 = vadd.s32 %v2422, 24
    %2424 = vset.pattern.permute.xlu0 %v2423
    %2425 = vperm.xlu0 %2424, %v2402
    %v2426 = vpop.permute.xlu0 %2425
    %v2427 = vperm.slane %v2076, 6
    %v2428 = vlaneseq
    %v2429 = vshrl.u32 %v2428, 7
    %2431 = vset.pattern.permute.xlu0 %v2429
    %2432 = vperm.xlu0 %2431, %v2427
    %v2433 = vpop.permute.xlu0 %2432
    %v2434 = vlaneseq
    %v2435 = vshrl.u32 %v2434, 7
    %v2436 = vadd.s32 %v2435, 8
    %2437 = vset.pattern.permute.xlu0 %v2436
    %2438 = vperm.xlu0 %2437, %v2427
    %v2439 = vpop.permute.xlu0 %2438
    %v2440 = vlaneseq
    %v2441 = vshrl.u32 %v2440, 7
    %v2442 = vadd.s32 %v2441, 16
    %2443 = vset.pattern.permute.xlu0 %v2442
    %2444 = vperm.xlu0 %2443, %v2427
    %v2445 = vpop.permute.xlu0 %2444
    %v2446 = vlaneseq
    %v2447 = vshrl.u32 %v2446, 7
    %v2448 = vadd.s32 %v2447, 24
    %2449 = vset.pattern.permute.xlu0 %v2448
    %2450 = vperm.xlu0 %2449, %v2427
    %v2451 = vpop.permute.xlu0 %2450
    %v2452 = vperm.slane %v2076, 7
    %v2453 = vlaneseq
    %v2454 = vshrl.u32 %v2453, 7
    %2456 = vset.pattern.permute.xlu0 %v2454
    %2457 = vperm.xlu0 %2456, %v2452
    %v2458 = vpop.permute.xlu0 %2457
    %v2459 = vlaneseq
    %v2460 = vshrl.u32 %v2459, 7
    %v2461 = vadd.s32 %v2460, 8
    %2462 = vset.pattern.permute.xlu0 %v2461
    %2463 = vperm.xlu0 %2462, %v2452
    %v2464 = vpop.permute.xlu0 %2463
    %v2465 = vlaneseq
    %v2466 = vshrl.u32 %v2465, 7
    %v2467 = vadd.s32 %v2466, 16
    %2468 = vset.pattern.permute.xlu0 %v2467
    %2469 = vperm.xlu0 %2468, %v2452
    %v2470 = vpop.permute.xlu0 %2469
    %v2471 = vlaneseq
    %v2472 = vshrl.u32 %v2471, 7
    %v2473 = vadd.s32 %v2472, 24
    %2474 = vset.pattern.permute.xlu0 %v2473
    %2475 = vperm.xlu0 %2474, %v2452
    %v2476 = vpop.permute.xlu0 %2475
    %v2477 = vadd.f32 %v2061, %v2083
    %v2478 = vadd.f32 %v2062, %v2089
    %v2479 = vadd.f32 %v2063, %v2095
    %v2480 = vadd.f32 %v2064, %v2101
    %v2481 = vadd.f32 %v2061, %v2108
    %v2482 = vadd.f32 %v2062, %v2114
    %v2483 = vadd.f32 %v2063, %v2120
    %v2484 = vadd.f32 %v2064, %v2126
    %v2485 = vadd.f32 %v2061, %v2133
    %v2486 = vadd.f32 %v2062, %v2139
    %v2487 = vadd.f32 %v2063, %v2145
    %v2488 = vadd.f32 %v2064, %v2151
    %v2489 = vadd.f32 %v2061, %v2158
    %v2490 = vadd.f32 %v2062, %v2164
    %v2491 = vadd.f32 %v2063, %v2170
    %v2492 = vadd.f32 %v2064, %v2176
    %v2493 = vadd.f32 %v2061, %v2183
    %v2494 = vadd.f32 %v2062, %v2189
    %v2495 = vadd.f32 %v2063, %v2195
    %v2496 = vadd.f32 %v2064, %v2201
    %v2497 = vadd.f32 %v2061, %v2208
    %v2498 = vadd.f32 %v2062, %v2214
    %v2499 = vadd.f32 %v2063, %v2220
    %v2500 = vadd.f32 %v2064, %v2226
    %v2501 = vadd.f32 %v2061, %v2233
    %v2502 = vadd.f32 %v2062, %v2239
    %v2503 = vadd.f32 %v2063, %v2245
    %v2504 = vadd.f32 %v2064, %v2251
    %v2505 = vadd.f32 %v2061, %v2258
    %v2506 = vadd.f32 %v2062, %v2264
    %v2507 = vadd.f32 %v2063, %v2270
    %v2508 = vadd.f32 %v2064, %v2276
    %v2509 = vadd.f32 %v2061, %v2283
    %v2510 = vadd.f32 %v2062, %v2289
    %v2511 = vadd.f32 %v2063, %v2295
    %v2512 = vadd.f32 %v2064, %v2301
    %v2513 = vadd.f32 %v2061, %v2308
    %v2514 = vadd.f32 %v2062, %v2314
    %v2515 = vadd.f32 %v2063, %v2320
    %v2516 = vadd.f32 %v2064, %v2326
    %v2517 = vadd.f32 %v2061, %v2333
    %v2518 = vadd.f32 %v2062, %v2339
    %v2519 = vadd.f32 %v2063, %v2345
    %v2520 = vadd.f32 %v2064, %v2351
    %v2521 = vadd.f32 %v2061, %v2358
    %v2522 = vadd.f32 %v2062, %v2364
    %v2523 = vadd.f32 %v2063, %v2370
    %v2524 = vadd.f32 %v2064, %v2376
    %v2525 = vadd.f32 %v2061, %v2383
    %v2526 = vadd.f32 %v2062, %v2389
    %v2527 = vadd.f32 %v2063, %v2395
    %v2528 = vadd.f32 %v2064, %v2401
    %v2529 = vadd.f32 %v2061, %v2408
    %v2530 = vadd.f32 %v2062, %v2414
    %v2531 = vadd.f32 %v2063, %v2420
    %v2532 = vadd.f32 %v2064, %v2426
    %v2533 = vadd.f32 %v2061, %v2433
    %v2534 = vadd.f32 %v2062, %v2439
    %v2535 = vadd.f32 %v2063, %v2445
    %v2536 = vadd.f32 %v2064, %v2451
    %v2537 = vadd.f32 %v2061, %v2458
    %v2538 = vadd.f32 %v2062, %v2464
    %v2539 = vadd.f32 %v2063, %v2470
    %v2540 = vadd.f32 %v2064, %v2476
    %v2541 = vsel %vm1244, %v2477, -inf
    %v2542 = vsel %vm1244, %v2478, -inf
    %v2543 = vmax.f32 %v2541, %v2542
    %v2544 = vsel %vm1244, %v2479, -inf
    %v2545 = vmax.f32 %v2543, %v2544
    %v2546 = vsel %vm1244, %v2480, -inf
    %v2547 = vmax.f32 %v2545, %v2546
    %v2548 = vrot.slane %v2547, 4
    %v2549 = vmax.f32 %v2547, %v2548
    %v2550 = vrot.slane %v2549, 2
    %v2551 = vmax.f32 %v2549, %v2550
    %v2552 = vrot.slane %v2551, 1
    %v2553 = vmax.f32 %v2551, %v2552
    %v2554 = vsel %vm1244, %v2481, -inf
    %v2555 = vsel %vm1244, %v2482, -inf
    %v2556 = vmax.f32 %v2554, %v2555
    %v2557 = vsel %vm1244, %v2483, -inf
    %v2558 = vmax.f32 %v2556, %v2557
    %v2559 = vsel %vm1244, %v2484, -inf
    %v2560 = vmax.f32 %v2558, %v2559
    %v2561 = vrot.slane %v2560, 4
    %v2562 = vmax.f32 %v2560, %v2561
    %v2563 = vrot.slane %v2562, 2
    %v2564 = vmax.f32 %v2562, %v2563
    %v2565 = vrot.slane %v2564, 1
    %v2566 = vmax.f32 %v2564, %v2565
    %v2567 = vsel %vm1244, %v2485, -inf
    %v2568 = vsel %vm1244, %v2486, -inf
    %v2569 = vmax.f32 %v2567, %v2568
    %v2570 = vsel %vm1244, %v2487, -inf
    %v2571 = vmax.f32 %v2569, %v2570
    %v2572 = vsel %vm1244, %v2488, -inf
    %v2573 = vmax.f32 %v2571, %v2572
    %v2574 = vrot.slane %v2573, 4
    %v2575 = vmax.f32 %v2573, %v2574
    %v2576 = vrot.slane %v2575, 2
    %v2577 = vmax.f32 %v2575, %v2576
    %v2578 = vrot.slane %v2577, 1
    %v2579 = vmax.f32 %v2577, %v2578
    %v2580 = vsel %vm1244, %v2489, -inf
    %v2581 = vsel %vm1244, %v2490, -inf
    %v2582 = vmax.f32 %v2580, %v2581
    %v2583 = vsel %vm1244, %v2491, -inf
    %v2584 = vmax.f32 %v2582, %v2583
    %v2585 = vsel %vm1244, %v2492, -inf
    %v2586 = vmax.f32 %v2584, %v2585
    %v2587 = vrot.slane %v2586, 4
    %v2588 = vmax.f32 %v2586, %v2587
    %v2589 = vrot.slane %v2588, 2
    %v2590 = vmax.f32 %v2588, %v2589
    %v2591 = vrot.slane %v2590, 1
    %v2592 = vmax.f32 %v2590, %v2591
    %v2593 = vsel %vm1244, %v2493, -inf
    %v2594 = vsel %vm1244, %v2494, -inf
    %v2595 = vmax.f32 %v2593, %v2594
    %v2596 = vsel %vm1244, %v2495, -inf
    %v2597 = vmax.f32 %v2595, %v2596
    %v2598 = vsel %vm1244, %v2496, -inf
    %v2599 = vmax.f32 %v2597, %v2598
    %v2600 = vrot.slane %v2599, 4
    %v2601 = vmax.f32 %v2599, %v2600
    %v2602 = vrot.slane %v2601, 2
    %v2603 = vmax.f32 %v2601, %v2602
    %v2604 = vrot.slane %v2603, 1
    %v2605 = vmax.f32 %v2603, %v2604
    %v2606 = vsel %vm1244, %v2497, -inf
    %v2607 = vsel %vm1244, %v2498, -inf
    %v2608 = vmax.f32 %v2606, %v2607
    %v2609 = vsel %vm1244, %v2499, -inf
    %v2610 = vmax.f32 %v2608, %v2609
    %v2611 = vsel %vm1244, %v2500, -inf
    %v2612 = vmax.f32 %v2610, %v2611
    %v2613 = vrot.slane %v2612, 4
    %v2614 = vmax.f32 %v2612, %v2613
    %v2615 = vrot.slane %v2614, 2
    %v2616 = vmax.f32 %v2614, %v2615
    %v2617 = vrot.slane %v2616, 1
    %v2618 = vmax.f32 %v2616, %v2617
    %v2619 = vsel %vm1244, %v2501, -inf
    %v2620 = vsel %vm1244, %v2502, -inf
    %v2621 = vmax.f32 %v2619, %v2620
    %v2622 = vsel %vm1244, %v2503, -inf
    %v2623 = vmax.f32 %v2621, %v2622
    %v2624 = vsel %vm1244, %v2504, -inf
    %v2625 = vmax.f32 %v2623, %v2624
    %v2626 = vrot.slane %v2625, 4
    %v2627 = vmax.f32 %v2625, %v2626
    %v2628 = vrot.slane %v2627, 2
    %v2629 = vmax.f32 %v2627, %v2628
    %v2630 = vrot.slane %v2629, 1
    %v2631 = vmax.f32 %v2629, %v2630
    %v2632 = vsel %vm1244, %v2505, -inf
    %v2633 = vsel %vm1244, %v2506, -inf
    %v2634 = vmax.f32 %v2632, %v2633
    %v2635 = vsel %vm1244, %v2507, -inf
    %v2636 = vmax.f32 %v2634, %v2635
    %v2637 = vsel %vm1244, %v2508, -inf
    %v2638 = vmax.f32 %v2636, %v2637
    %v2639 = vrot.slane %v2638, 4
    %v2640 = vmax.f32 %v2638, %v2639
    %v2641 = vrot.slane %v2640, 2
    %v2642 = vmax.f32 %v2640, %v2641
    %v2643 = vrot.slane %v2642, 1
    %v2644 = vmax.f32 %v2642, %v2643
    %v2645 = vsel %vm1244, %v2509, -inf
    %v2646 = vsel %vm1244, %v2510, -inf
    %v2647 = vmax.f32 %v2645, %v2646
    %v2648 = vsel %vm1244, %v2511, -inf
    %v2649 = vmax.f32 %v2647, %v2648
    %v2650 = vsel %vm1244, %v2512, -inf
    %v2651 = vmax.f32 %v2649, %v2650
    %v2652 = vrot.slane %v2651, 4
    %v2653 = vmax.f32 %v2651, %v2652
    %v2654 = vrot.slane %v2653, 2
    %v2655 = vmax.f32 %v2653, %v2654
    %v2656 = vrot.slane %v2655, 1
    %v2657 = vmax.f32 %v2655, %v2656
    %v2658 = vsel %vm1244, %v2513, -inf
    %v2659 = vsel %vm1244, %v2514, -inf
    %v2660 = vmax.f32 %v2658, %v2659
    %v2661 = vsel %vm1244, %v2515, -inf
    %v2662 = vmax.f32 %v2660, %v2661
    %v2663 = vsel %vm1244, %v2516, -inf
    %v2664 = vmax.f32 %v2662, %v2663
    %v2665 = vrot.slane %v2664, 4
    %v2666 = vmax.f32 %v2664, %v2665
    %v2667 = vrot.slane %v2666, 2
    %v2668 = vmax.f32 %v2666, %v2667
    %v2669 = vrot.slane %v2668, 1
    %v2670 = vmax.f32 %v2668, %v2669
    %v2671 = vsel %vm1244, %v2517, -inf
    %v2672 = vsel %vm1244, %v2518, -inf
    %v2673 = vmax.f32 %v2671, %v2672
    %v2674 = vsel %vm1244, %v2519, -inf
    %v2675 = vmax.f32 %v2673, %v2674
    %v2676 = vsel %vm1244, %v2520, -inf
    %v2677 = vmax.f32 %v2675, %v2676
    %v2678 = vrot.slane %v2677, 4
    %v2679 = vmax.f32 %v2677, %v2678
    %v2680 = vrot.slane %v2679, 2
    %v2681 = vmax.f32 %v2679, %v2680
    %v2682 = vrot.slane %v2681, 1
    %v2683 = vmax.f32 %v2681, %v2682
    %v2684 = vsel %vm1244, %v2521, -inf
    %v2685 = vsel %vm1244, %v2522, -inf
    %v2686 = vmax.f32 %v2684, %v2685
    %v2687 = vsel %vm1244, %v2523, -inf
    %v2688 = vmax.f32 %v2686, %v2687
    %v2689 = vsel %vm1244, %v2524, -inf
    %v2690 = vmax.f32 %v2688, %v2689
    %v2691 = vrot.slane %v2690, 4
    %v2692 = vmax.f32 %v2690, %v2691
    %v2693 = vrot.slane %v2692, 2
    %v2694 = vmax.f32 %v2692, %v2693
    %v2695 = vrot.slane %v2694, 1
    %v2696 = vmax.f32 %v2694, %v2695
    %v2697 = vsel %vm1244, %v2525, -inf
    %v2698 = vsel %vm1244, %v2526, -inf
    %v2699 = vmax.f32 %v2697, %v2698
    %v2700 = vsel %vm1244, %v2527, -inf
    %v2701 = vmax.f32 %v2699, %v2700
    %v2702 = vsel %vm1244, %v2528, -inf
    %v2703 = vmax.f32 %v2701, %v2702
    %v2704 = vrot.slane %v2703, 4
    %v2705 = vmax.f32 %v2703, %v2704
    %v2706 = vrot.slane %v2705, 2
    %v2707 = vmax.f32 %v2705, %v2706
    %v2708 = vrot.slane %v2707, 1
    %v2709 = vmax.f32 %v2707, %v2708
    %v2710 = vsel %vm1244, %v2529, -inf
    %v2711 = vsel %vm1244, %v2530, -inf
    %v2712 = vmax.f32 %v2710, %v2711
    %v2713 = vsel %vm1244, %v2531, -inf
    %v2714 = vmax.f32 %v2712, %v2713
    %v2715 = vsel %vm1244, %v2532, -inf
    %v2716 = vmax.f32 %v2714, %v2715
    %v2717 = vrot.slane %v2716, 4
    %v2718 = vmax.f32 %v2716, %v2717
    %v2719 = vrot.slane %v2718, 2
    %v2720 = vmax.f32 %v2718, %v2719
    %v2721 = vrot.slane %v2720, 1
    %v2722 = vmax.f32 %v2720, %v2721
    %v2723 = vsel %vm1244, %v2533, -inf
    %v2724 = vsel %vm1244, %v2534, -inf
    %v2725 = vmax.f32 %v2723, %v2724
    %v2726 = vsel %vm1244, %v2535, -inf
    %v2727 = vmax.f32 %v2725, %v2726
    %v2728 = vsel %vm1244, %v2536, -inf
    %v2729 = vmax.f32 %v2727, %v2728
    %v2730 = vrot.slane %v2729, 4
    %v2731 = vmax.f32 %v2729, %v2730
    %v2732 = vrot.slane %v2731, 2
    %v2733 = vmax.f32 %v2731, %v2732
    %v2734 = vrot.slane %v2733, 1
    %v2735 = vmax.f32 %v2733, %v2734
    %v2736 = vsel %vm1244, %v2537, -inf
    %v2737 = vsel %vm1244, %v2538, -inf
    %v2738 = vmax.f32 %v2736, %v2737
    %v2739 = vsel %vm1244, %v2539, -inf
    %v2740 = vmax.f32 %v2738, %v2739
    %v2741 = vsel %vm1244, %v2540, -inf
    %v2742 = vmax.f32 %v2740, %v2741
    %v2743 = vrot.slane %v2742, 4
    %v2744 = vmax.f32 %v2742, %v2743
    %v2745 = vrot.slane %v2744, 2
    %v2746 = vmax.f32 %v2744, %v2745
    %v2747 = vrot.slane %v2746, 1
    %v2748 = vmax.f32 %v2746, %v2747
    %s2749 = scalar_lea.vmem %s5, 32
    %v2750 = vld [vmem:[%s2749] sm:$0xff]
    %v2751 = vld [vmem:[%s2749 + $0x8] sm:$0xff]
    %v2752 = vld [vmem:[%s2749 + $0x10] sm:$0xff]
    %v2753 = vld [vmem:[%s2749 + $0x18] sm:$0xff]
    %v2770 = vsel %vm1473, %v2566, %v2553
    %v2771 = vsel %vm1475, %v2579, %v2770
    %v2772 = vsel %vm1477, %v2592, %v2771
    %v2773 = vsel %vm1479, %v2605, %v2772
    %v2774 = vsel %vm1481, %v2618, %v2773
    %v2775 = vsel %vm1483, %v2631, %v2774
    %v2776 = vsel %vm1485, %v2644, %v2775
    %v2777 = vsel %vm1473, %v2670, %v2657
    %v2778 = vsel %vm1475, %v2683, %v2777
    %v2779 = vsel %vm1477, %v2696, %v2778
    %v2780 = vsel %vm1479, %v2709, %v2779
    %v2781 = vsel %vm1481, %v2722, %v2780
    %v2782 = vsel %vm1483, %v2735, %v2781
    %v2783 = vsel %vm1485, %v2748, %v2782
    %v2787 = vsel %vm1496, %v2750, 0
    %v2790 = vsel %vm1496, %v2751, 0
    %v2793 = vsel %vm1496, %v2752, 0
    %v2796 = vsel %vm1496, %v2753, 0
    %2798 = vmatpush.msra.mxu0 0.0
    %2799 = vmatpush.msra.mxu0 0.0
    %2800 = vmatpush.msra.mxu0 0.0
    %2801 = vmatpush.msra.mxu0 0.0
    %2802 = vmatpush.msra.mxu0 0.0
    %2803 = vmatpush.msra.mxu0 0.0
    %2804 = vmatpush.msra.mxu0 0.0
    %2805 = vmatpush.msra.mxu0 0.0
    %2806 = vmatpush.msra.mxu0 0.0
    %2807 = vmatpush.msra.mxu0 0.0
    %2808 = vmatpush.msra.mxu0 0.0
    %2809 = vmatpush.msra.mxu0 0.0
    %2810 = vmatpush.msra.mxu0 0.0
    %2811 = vmatpush.msra.mxu0 0.0
    %2812 = vmatpush.msra.mxu0 %v2783
    %2813 = vmatpush.msra.mxu0 %v2776
    %2814 = vmatmul.f32.gmra.mxu0 %v2787
    %v2815 = vpop.f32.mrf.mxu0
    %v2816 = vadd.f32 0.0, %v2815
    %2817 = vmatmul.f32.gmra.mxu0 %v2790
    %v2818 = vpop.f32.mrf.mxu0
    %v2819 = vadd.f32 0.0, %v2818
    %2820 = vmatmul.f32.gmra.mxu0 %v2793
    %v2821 = vpop.f32.mrf.mxu0
    %v2822 = vadd.f32 0.0, %v2821
    %2823 = vmatmul.f32.gmra.mxu0 %v2796
    %v2824 = vpop.f32.mrf.mxu0
    %v2825 = vadd.f32 0.0, %v2824
    %2826 = vdwg.mxu0
    %vm2827 = vcmp.gt.f32.partialorder %v2066, 0.0
    %vm2828 = vcmp.gt.f32.partialorder %v2067, 0.0
    %vm2829 = vcmp.gt.f32.partialorder %v2068, 0.0
    %vm2830 = vcmp.gt.f32.partialorder %v2069, 0.0
    %v2831 = vsub.f32 %v2061, %v2816
    %v2832 = vsub.f32 %v2062, %v2819
    %v2833 = vsub.f32 %v2063, %v2822
    %v2834 = vsub.f32 %v2064, %v2825
    %v2835 = vsel %vm2827, 1, 0
    %v2836 = vsel %vm2828, 1, 0
    %v2837 = vsel %vm2829, 1, 0
    %v2838 = vsel %vm2830, 1, 0
    %2839 = vset.pattern.permute.xlu0 0
    %2840 = vperm.xlu0 %2839, %v2835
    %v2841 = vpop.permute.xlu0 %2840
    %2842 = vset.pattern.permute.xlu0 0
    %2843 = vperm.xlu0 %2842, %v2836
    %v2844 = vpop.permute.xlu0 %2843
    %2845 = vset.pattern.permute.xlu0 0
    %2846 = vperm.xlu0 %2845, %v2837
    %v2847 = vpop.permute.xlu0 %2846
    %2848 = vset.pattern.permute.xlu0 0
    %2849 = vperm.xlu0 %2848, %v2838
    %v2850 = vpop.permute.xlu0 %2849
    %vm2851 = vcmp.eq.s32.totalorder %v2841, 1
    %vm2852 = vcmp.eq.s32.totalorder %v2844, 1
    %vm2853 = vcmp.eq.s32.totalorder %v2847, 1
    %vm2854 = vcmp.eq.s32.totalorder %v2850, 1
    %v2855 = vsel %vm2851, %v2831, -1e+30
    %v2856 = vsel %vm2852, %v2832, -1e+30
    %v2857 = vsel %vm2853, %v2833, -1e+30
    %v2858 = vsel %vm2854, %v2834, -1e+30
    %v2859 = vmul.f32 %v2855, 1.442695
    %v2860 = vpow.pop %v2859
    %v2861 = vmul.f32 %v2856, 1.442695
    %v2862 = vpow.pop %v2861
    %v2863 = vmul.f32 %v2857, 1.442695
    %v2864 = vpow.pop %v2863
    %v2865 = vmul.f32 %v2858, 1.442695
    %v2866 = vpow.pop %v2865
    %s2867 = scalar_lea.vmem %s7, 32
    %v2868 = vld [vmem:[%s2867] sm:$0xff]
    %v2869 = vld [vmem:[%s2867 + $0x8] sm:$0xff]
    %v2870 = vld [vmem:[%s2867 + $0x10] sm:$0xff]
    %v2871 = vld [vmem:[%s2867 + $0x18] sm:$0xff]
    %v2872 = vsub.f32 1.0, %v2066
    %v2873 = vsub.f32 1.0, %v2067
    %v2874 = vsub.f32 1.0, %v2068
    %v2875 = vsub.f32 1.0, %v2069
    %2877 = vset.pattern.permute.xlu0 0
    %2878 = vperm.xlu0 %2877, %v2872
    %v2879 = vpop.permute.xlu0 %2878
    %2882 = vset.pattern.permute.xlu0 0
    %2883 = vperm.xlu0 %2882, %v2873
    %v2884 = vpop.permute.xlu0 %2883
    %2887 = vset.pattern.permute.xlu0 0
    %2888 = vperm.xlu0 %2887, %v2874
    %v2889 = vpop.permute.xlu0 %2888
    %2892 = vset.pattern.permute.xlu0 0
    %2893 = vperm.xlu0 %2892, %v2875
    %v2894 = vpop.permute.xlu0 %2893
    %v2897 = vsel %vm580, %v2868, 0
    %v2900 = vsel %vm580, %v2869, 0
    %v2903 = vsel %vm580, %v2870, 0
    %v2906 = vsel %vm580, %v2871, 0
    %2908 = vmatpush.msra.mxu0 0.0
    %2909 = vmatpush.msra.mxu0 0.0
    %2910 = vmatpush.msra.mxu0 0.0
    %2911 = vmatpush.msra.mxu0 0.0
    %2912 = vmatpush.msra.mxu0 0.0
    %2913 = vmatpush.msra.mxu0 0.0
    %2914 = vmatpush.msra.mxu0 0.0
    %2915 = vmatpush.msra.mxu0 0.0
    %2916 = vmatpush.msra.mxu0 0.0
    %2917 = vmatpush.msra.mxu0 0.0
    %2918 = vmatpush.msra.mxu0 0.0
    %2919 = vmatpush.msra.mxu0 0.0
    %2920 = vmatpush.msra.mxu0 %v2866
    %2921 = vmatpush.msra.mxu0 %v2864
    %2922 = vmatpush.msra.mxu0 %v2862
    %2923 = vmatpush.msra.mxu0 %v2860
    %2924 = vmatmul.f32.gmra.mxu0 %v2897
    %v2925 = vpop.f32.mrf.mxu0
    %v2926 = vadd.f32 %v2879, %v2925
    %2927 = vmatmul.f32.gmra.mxu0 %v2900
    %v2928 = vpop.f32.mrf.mxu0
    %v2929 = vadd.f32 %v2884, %v2928
    %2930 = vmatmul.f32.gmra.mxu0 %v2903
    %v2931 = vpop.f32.mrf.mxu0
    %v2932 = vadd.f32 %v2889, %v2931
    %2933 = vmatmul.f32.gmra.mxu0 %v2906
    %v2934 = vpop.f32.mrf.mxu0
    %v2935 = vadd.f32 %v2894, %v2934
    %2936 = vdwg.mxu0
    %v2937 = vrcp.pop %v2926
    %v2938 = vmul.f32 %v2926, %v2937
    %v2939 = vsub.f32 1.0, %v2938
    %v2940 = vmul.f32 %v2937, %v2939
    %v2941 = vadd.f32 %v2937, %v2940
    %vm2942 = vweird.f32 %v2926
    %vm2943 = vweird.f32 %v2937
    %vm2944 = vmor %vm2942, %vm2943
    %v2945 = vsel %vm2944, %v2937, %v2941
    %v2946 = vand.u32 2147483647, %v2926
    %vm2947 = vcmp.eq.f32.partialorder %v2946, 8.507059e+37
    %v2948 = vand.u32 %v2926, 2147483648
    %v2949 = vor.u32 1.1754944e-38, %v2948
    %v2950 = vsel %vm2947, %v2949, %v2945
    %v2951 = vmul.f32 %v2860, %v2950
    %v2952 = vrcp.pop %v2929
    %v2953 = vmul.f32 %v2929, %v2952
    %v2954 = vsub.f32 1.0, %v2953
    %v2955 = vmul.f32 %v2952, %v2954
    %v2956 = vadd.f32 %v2952, %v2955
    %vm2957 = vweird.f32 %v2929
    %vm2958 = vweird.f32 %v2952
    %vm2959 = vmor %vm2957, %vm2958
    %v2960 = vsel %vm2959, %v2952, %v2956
    %v2961 = vand.u32 2147483647, %v2929
    %vm2962 = vcmp.eq.f32.partialorder %v2961, 8.507059e+37
    %v2963 = vand.u32 %v2929, 2147483648
    %v2964 = vor.u32 1.1754944e-38, %v2963
    %v2965 = vsel %vm2962, %v2964, %v2960
    %v2966 = vmul.f32 %v2862, %v2965
    %v2967 = vrcp.pop %v2932
    %v2968 = vmul.f32 %v2932, %v2967
    %v2969 = vsub.f32 1.0, %v2968
    %v2970 = vmul.f32 %v2967, %v2969
    %v2971 = vadd.f32 %v2967, %v2970
    %vm2972 = vweird.f32 %v2932
    %vm2973 = vweird.f32 %v2967
    %vm2974 = vmor %vm2972, %vm2973
    %v2975 = vsel %vm2974, %v2967, %v2971
    %v2976 = vand.u32 2147483647, %v2932
    %vm2977 = vcmp.eq.f32.partialorder %v2976, 8.507059e+37
    %v2978 = vand.u32 %v2932, 2147483648
    %v2979 = vor.u32 1.1754944e-38, %v2978
    %v2980 = vsel %vm2977, %v2979, %v2975
    %v2981 = vmul.f32 %v2864, %v2980
    %v2982 = vrcp.pop %v2935
    %v2983 = vmul.f32 %v2935, %v2982
    %v2984 = vsub.f32 1.0, %v2983
    %v2985 = vmul.f32 %v2982, %v2984
    %v2986 = vadd.f32 %v2982, %v2985
    %vm2987 = vweird.f32 %v2935
    %vm2988 = vweird.f32 %v2982
    %vm2989 = vmor %vm2987, %vm2988
    %v2990 = vsel %vm2989, %v2982, %v2986
    %v2991 = vand.u32 2147483647, %v2935
    %vm2992 = vcmp.eq.f32.partialorder %v2991, 8.507059e+37
    %v2993 = vand.u32 %v2935, 2147483648
    %v2994 = vor.u32 1.1754944e-38, %v2993
    %v2995 = vsel %vm2992, %v2994, %v2990
    %v2996 = vmul.f32 %v2866, %v2995
    %v2998 = vsel %vm1244, %v2951, 0
    %v3001 = vsel %vm1244, %v2966, 0
    %v3004 = vsel %vm1244, %v2981, 0
    %v3007 = vsel %vm1244, %v2996, 0
    %3009 = vmatpush.msra.mxu0 0.0
    %3010 = vmatpush.msra.mxu0 0.0
    %3011 = vmatpush.msra.mxu0 0.0
    %3012 = vmatpush.msra.mxu0 0.0
    %3013 = vmatpush.msra.mxu0 0.0
    %3014 = vmatpush.msra.mxu0 0.0
    %3015 = vmatpush.msra.mxu0 0.0
    %3016 = vmatpush.msra.mxu0 0.0
    %3017 = vmatpush.msra.mxu0 0.0
    %3018 = vmatpush.msra.mxu0 0.0
    %3019 = vmatpush.msra.mxu0 0.0
    %3020 = vmatpush.msra.mxu0 0.0
    %3021 = vmatpush.msra.mxu0 0.0
    %3022 = vmatpush.msra.mxu0 0.0
    %3023 = vmatpush.msra.mxu0 0.0
    %3024 = vmatpush.msra.mxu0 %v1721
    %3025 = vmatmul.f32.gmra.mxu0 %v2998
    %v3026 = vpop.f32.mrf.mxu0
    %v3027 = vadd.f32 0.0, %v3026
    %3028 = vmatmul.f32.gmra.mxu0 %v3001
    %v3029 = vpop.f32.mrf.mxu0
    %v3030 = vadd.f32 0.0, %v3029
    %3031 = vmatmul.f32.gmra.mxu0 %v3004
    %v3032 = vpop.f32.mrf.mxu0
    %v3033 = vadd.f32 0.0, %v3032
    %3034 = vmatmul.f32.gmra.mxu0 %v3007
    %v3035 = vpop.f32.mrf.mxu0
    %v3036 = vadd.f32 0.0, %v3035
    %3037 = vdwg.mxu0
    %3038 = vmatpush.msra.mxu0 0.0
    %3039 = vmatpush.msra.mxu0 0.0
    %3040 = vmatpush.msra.mxu0 0.0
    %3041 = vmatpush.msra.mxu0 0.0
    %3042 = vmatpush.msra.mxu0 0.0
    %3043 = vmatpush.msra.mxu0 0.0
    %3044 = vmatpush.msra.mxu0 0.0
    %3045 = vmatpush.msra.mxu0 0.0
    %3046 = vmatpush.msra.mxu0 0.0
    %3047 = vmatpush.msra.mxu0 0.0
    %3048 = vmatpush.msra.mxu0 0.0
    %3049 = vmatpush.msra.mxu0 0.0
    %3050 = vmatpush.msra.mxu0 %v570
    %3051 = vmatpush.msra.mxu0 %v569
    %3052 = vmatpush.msra.mxu0 %v568
    %3053 = vmatpush.msra.mxu0 %v567
    %3054 = vmatmul.f32.gmra.mxu0 %v2013
    %v3055 = vpop.f32.mrf.mxu0
    %v3056 = vadd.f32 0.0, %v3055
    %3057 = vmatmul.f32.gmra.mxu0 %v2016
    %v3058 = vpop.f32.mrf.mxu0
    %v3059 = vadd.f32 0.0, %v3058
    %3060 = vmatmul.f32.gmra.mxu0 %v2019
    %v3061 = vpop.f32.mrf.mxu0
    %v3062 = vadd.f32 0.0, %v3061
    %3063 = vmatmul.f32.gmra.mxu0 %v2022
    %v3064 = vpop.f32.mrf.mxu0
    %v3065 = vadd.f32 0.0, %v3064
    %3066 = vdwg.mxu0
    %s3067 = scalar_lea.vmem %s8, 8
    %v3068 = vld [vmem:[%s3067] sm:$0xff]
    %v3069 = vmul.f32 %v3027, %v3056
    %v3070 = vmul.f32 %v3030, %v3059
    %v3071 = vmul.f32 %v3033, %v3062
    %v3072 = vmul.f32 %v3036, %v3065
    %v3074 = vsel %vm580, %v3068, 0
    %3076 = vmatpush.msra.mxu0 0.0
    %3077 = vmatpush.msra.mxu0 0.0
    %3078 = vmatpush.msra.mxu0 0.0
    %3079 = vmatpush.msra.mxu0 0.0
    %3080 = vmatpush.msra.mxu0 0.0
    %3081 = vmatpush.msra.mxu0 0.0
    %3082 = vmatpush.msra.mxu0 0.0
    %3083 = vmatpush.msra.mxu0 0.0
    %3084 = vmatpush.msra.mxu0 0.0
    %3085 = vmatpush.msra.mxu0 0.0
    %3086 = vmatpush.msra.mxu0 0.0
    %3087 = vmatpush.msra.mxu0 0.0
    %3088 = vmatpush.msra.mxu0 %v3072
    %3089 = vmatpush.msra.mxu0 %v3071
    %3090 = vmatpush.msra.mxu0 %v3070
    %3091 = vmatpush.msra.mxu0 %v3069
    %3092 = vmatmul.f32.gmra.mxu0 %v3074
    %v3093 = vpop.f32.mrf.mxu0
    %v3094 = vadd.f32 0.0, %v3093
    %3095 = vdwg.mxu0
    %vm3096 = vcmp.gt.f32.partialorder %v3094, 0.0
    %v3097 = vmin.f32 %v3094, 0.0
    %v3098 = vmul.f32 %v3097, 1.442695
    %v3099 = vpow.pop %v3098
    %v3100 = vsub.f32 %v3099, 1.0
    %v3101 = vsel %vm3096, %v3094, %v3100
    %v3102 = vld [vmem:[%s12] sm:$0xff]
    %v3103 = vld [vmem:[%s12 + $0x8] sm:$0xff]
    %v3104 = vld [vmem:[%s12 + $0x10] sm:$0xff]
    %v3105 = vld [vmem:[%s12 + $0x18] sm:$0xff]
    %v3106 = vld [vmem:[%s12 + $0x20] sm:$0xff]
    %v3107 = vld [vmem:[%s12 + $0x28] sm:$0xff]
    %v3108 = vld [vmem:[%s12 + $0x30] sm:$0xff]
    %v3109 = vld [vmem:[%s12 + $0x38] sm:$0xff]
    %v3110 = vld [vmem:[%s12 + $0x40] sm:$0xff]
    %v3111 = vld [vmem:[%s12 + $0x48] sm:$0xff]
    %v3112 = vld [vmem:[%s12 + $0x50] sm:$0xff]
    %v3113 = vld [vmem:[%s12 + $0x58] sm:$0xff]
    %v3114 = vld [vmem:[%s12 + $0x60] sm:$0xff]
    %v3115 = vld [vmem:[%s12 + $0x68] sm:$0xff]
    %v3116 = vld [vmem:[%s12 + $0x70] sm:$0xff]
    %v3117 = vld [vmem:[%s12 + $0x78] sm:$0xff]
    %v3118 = vld [vmem:[%s13] sm:$0x1]
    %v3119 = vld [vmem:[%s14] sm:$0x1]
    %v3121 = vperm.slane %v3118, 0
    %3123 = vmatpush.msra.mxu0 %v3117
    %3124 = vmatpush.msra.mxu0 %v3116
    %3125 = vmatpush.msra.mxu0 %v3115
    %3126 = vmatpush.msra.mxu0 %v3114
    %3127 = vmatpush.msra.mxu0 %v3113
    %3128 = vmatpush.msra.mxu0 %v3112
    %3129 = vmatpush.msra.mxu0 %v3111
    %3130 = vmatpush.msra.mxu0 %v3110
    %3131 = vmatpush.msra.mxu0 %v3109
    %3132 = vmatpush.msra.mxu0 %v3108
    %3133 = vmatpush.msra.mxu0 %v3107
    %3134 = vmatpush.msra.mxu0 %v3106
    %3135 = vmatpush.msra.mxu0 %v3105
    %3136 = vmatpush.msra.mxu0 %v3104
    %3137 = vmatpush.msra.mxu0 %v3103
    %3138 = vmatpush.msra.mxu0 %v3102
    %3139 = vmatmul.f32.gmra.mxu0 %v1814
    %v3140 = vpop.f32.mrf.mxu0
    %v3141 = vadd.f32 %v3121, %v3140
    %3142 = vdwg.mxu0
    %v3143 = vtanh.pop %v3141
    %v3144 = vsel %vm580, %v3143, 0.0
    %v3145 = vrot.slane %v3144, 4
    %v3146 = vadd.f32 %v3144, %v3145
    %v3147 = vrot.slane %v3146, 2
    %v3148 = vadd.f32 %v3146, %v3147
    %v3149 = vrot.slane %v3148, 1
    %v3150 = vadd.f32 %v3148, %v3149
    %v3151 = vrcp.pop 8.0
    %v3152 = vmul.f32 8.0, %v3151
    %v3153 = vsub.f32 1.0, %v3152
    %v3154 = vmul.f32 %v3151, %v3153
    %v3155 = vadd.f32 %v3151, %v3154
    %vm3156 = vweird.f32 %v3151
    %v3157 = vsel %vm3156, %v3151, %v3155
    %v3158 = vmul.f32 %v3150, %v3157
    %v3159 = vmul.f32 %v3158, %v3119
    %vm3160 = vcmask 253952
    %v3161 = vsel %vm3160, %v3159, 0.0
    %3162 = vadd.xlane.f32.xlu0 %v3161
    %v3163 = vpop.xlane.xlu0 %3162
    %3164 = vmatpush.msra.mxu0 %v3117
    %3165 = vmatpush.msra.mxu0 %v3116
    %3166 = vmatpush.msra.mxu0 %v3115
    %3167 = vmatpush.msra.mxu0 %v3114
    %3168 = vmatpush.msra.mxu0 %v3113
    %3169 = vmatpush.msra.mxu0 %v3112
    %3170 = vmatpush.msra.mxu0 %v3111
    %3171 = vmatpush.msra.mxu0 %v3110
    %3172 = vmatpush.msra.mxu0 %v3109
    %3173 = vmatpush.msra.mxu0 %v3108
    %3174 = vmatpush.msra.mxu0 %v3107
    %3175 = vmatpush.msra.mxu0 %v3106
    %3176 = vmatpush.msra.mxu0 %v3105
    %3177 = vmatpush.msra.mxu0 %v3104
    %3178 = vmatpush.msra.mxu0 %v3103
    %3179 = vmatpush.msra.mxu0 %v3102
    %3180 = vmatmul.f32.gmra.mxu0 %v3101
    %v3181 = vpop.f32.mrf.mxu0
    %v3182 = vadd.f32 %v3121, %v3181
    %3183 = vdwg.mxu0
    %v3184 = vtanh.pop %v3182
    %v3185 = vsel %vm580, %v3184, 0.0
    %v3186 = vrot.slane %v3185, 4
    %v3187 = vadd.f32 %v3185, %v3186
    %v3188 = vrot.slane %v3187, 2
    %v3189 = vadd.f32 %v3187, %v3188
    %v3190 = vrot.slane %v3189, 1
    %v3191 = vadd.f32 %v3189, %v3190
    %v3192 = vmul.f32 %v3191, %v3157
    %v3193 = vmul.f32 %v3192, %v3119
    %v3194 = vsel %vm3160, %v3193, 0.0
    %3195 = vadd.xlane.f32.xlu0 %v3194
    %v3196 = vpop.xlane.xlu0 %3195
    %v3197 = vmax.f32 %v3163, %v3196
    %v3198 = vsub.f32 %v3163, %v3197
    %v3199 = vmul.f32 %v3198, 1.442695
    %v3200 = vpow.pop %v3199
    %v3201 = vsub.f32 %v3196, %v3197
    %v3202 = vmul.f32 %v3201, 1.442695
    %v3203 = vpow.pop %v3202
    %v3204 = vadd.f32 %v3200, %v3203
    %v3205 = vrcp.pop %v3204
    %v3206 = vmul.f32 %v3204, %v3205
    %v3207 = vsub.f32 1.0, %v3206
    %v3208 = vmul.f32 %v3205, %v3207
    %v3209 = vadd.f32 %v3205, %v3208
    %vm3210 = vweird.f32 %v3204
    %vm3211 = vweird.f32 %v3205
    %vm3212 = vmor %vm3210, %vm3211
    %v3213 = vsel %vm3212, %v3205, %v3209
    %v3214 = vand.u32 2147483647, %v3204
    %vm3215 = vcmp.eq.f32.partialorder %v3214, 8.507059e+37
    %v3216 = vand.u32 %v3204, 2147483648
    %v3217 = vor.u32 1.1754944e-38, %v3216
    %v3218 = vsel %vm3215, %v3217, %v3213
    %v3219 = vmul.f32 %v3200, %v3218
    %v3220 = vperm.slane %v3219, 0
    %v3221 = vmul.f32 %v3220, %v1814
    %v3222 = vadd.f32 %v3221, 0.0
    %v3223 = vmul.f32 %v3203, %v3218
    %v3224 = vperm.slane %v3223, 0
    %v3225 = vmul.f32 %v3224, %v3101
    %v3226 = vadd.f32 %v3222, %v3225
    %3227 = vst [vmem:[#allocation2] sm:$0xff] %v3226
    %v3228 = vld [vmem:[%s15] sm:$0xff]
    %v3229 = vld [vmem:[%s15 + $0x8] sm:$0xff]
    %v3230 = vld [vmem:[%s15 + $0x10] sm:$0xff]
    %v3231 = vld [vmem:[%s15 + $0x18] sm:$0xff]
    %v3232 = vld [vmem:[%s15 + $0x20] sm:$0xff]
    %v3233 = vld [vmem:[%s15 + $0x28] sm:$0xff]
    %v3234 = vld [vmem:[%s15 + $0x30] sm:$0xff]
    %v3235 = vld [vmem:[%s15 + $0x38] sm:$0xff]
    %v3236 = vld [vmem:[%s15 + $0x40] sm:$0xff]
    %v3237 = vld [vmem:[%s15 + $0x48] sm:$0xff]
    %v3238 = vld [vmem:[%s15 + $0x50] sm:$0xff]
    %v3239 = vld [vmem:[%s15 + $0x58] sm:$0xff]
    %v3240 = vld [vmem:[%s15 + $0x60] sm:$0xff]
    %v3241 = vld [vmem:[%s15 + $0x68] sm:$0xff]
    %v3242 = vld [vmem:[%s15 + $0x70] sm:$0xff]
    %v3243 = vld [vmem:[%s15 + $0x78] sm:$0xff]
    %v3244 = vld [vmem:[%s16] sm:$0x1]
    %v3246 = vperm.slane %v3244, 0
    %3248 = vmatpush.msra.mxu0 %v3243
    %3249 = vmatpush.msra.mxu0 %v3242
    %3250 = vmatpush.msra.mxu0 %v3241
    %3251 = vmatpush.msra.mxu0 %v3240
    %3252 = vmatpush.msra.mxu0 %v3239
    %3253 = vmatpush.msra.mxu0 %v3238
    %3254 = vmatpush.msra.mxu0 %v3237
    %3255 = vmatpush.msra.mxu0 %v3236
    %3256 = vmatpush.msra.mxu0 %v3235
    %3257 = vmatpush.msra.mxu0 %v3234
    %3258 = vmatpush.msra.mxu0 %v3233
    %3259 = vmatpush.msra.mxu0 %v3232
    %3260 = vmatpush.msra.mxu0 %v3231
    %3261 = vmatpush.msra.mxu0 %v3230
    %3262 = vmatpush.msra.mxu0 %v3229
    %3263 = vmatpush.msra.mxu0 %v3228
    %3264 = vmatmul.f32.gmra.mxu0 %v3226
    %v3265 = vpop.f32.mrf.mxu0
    %v3266 = vadd.f32 %v3246, %v3265
    %3267 = vdwg.mxu0
    %3268 = vst.msk [vmem:[#allocation4] sm:$0xff] %vm1496, %v3266
    // Predicated region
    $region70: #{tpu_custom_call.1} parent=1 // pred_check
      _
    $region71: #{tpu_custom_call.1} parent=1 // pred_check_branch
      %3270 = sbr.rel (0) target = $region73
    $region72: #{tpu_custom_call.1} parent=1 // pred_region
      %3272 = vsyncadd [#allocation3], 0
      %s3274 = sshll.u32 [#allocation2], 4
      %s3275 = int_to_ptr.vmem [resolvable:$true] %s3274
      %s3276 = sshll.u32 %s17, 4
      %s3277 = int_to_ptr.hbm [resolvable:$true] %s3276
      %3279 = dma.vmem_to_hbm [thread:$0]  %s3275, 128, %s3277, [#allocation3]
    $region73: #{tpu_custom_call.1} parent=1 // pred_fallthru
      _
    // Predicated region
    $region74: #{tpu_custom_call.1} parent=1 // pred_check
      _
    $region75: #{tpu_custom_call.1} parent=1 // pred_check_branch
      %3281 = sbr.rel (0) target = $region77
    $region76: #{tpu_custom_call.1} parent=1 // pred_region
      %3283 = vsyncadd [#allocation5], 0
      %s3285 = sshll.u32 [#allocation4], 4
      %s3286 = int_to_ptr.vmem [resolvable:$true] %s3285
      %s3287 = sshll.u32 %s18, 4
      %s3288 = int_to_ptr.hbm [resolvable:$true] %s3287
      %3290 = dma.vmem_to_hbm [thread:$0]  %s3286, 128, %s3288, [#allocation5]
    $region77: #{tpu_custom_call.1} parent=1 // pred_fallthru
      _
    // Predicated region
    $region78: #{tpu_custom_call.1} parent=1 // pred_check
      _
    $region79: #{tpu_custom_call.1} parent=1 // pred_check_branch
      %3292 = sbr.rel (0) target = $region81
    $region80: #{tpu_custom_call.1} parent=1 // pred_region
      %3294 = dma.done [#allocation3], 128
    $region81: #{tpu_custom_call.1} parent=1 // pred_fallthru
      _
    // Predicated region
    $region82: #{tpu_custom_call.1} parent=1 // pred_check
      _
    $region83: #{tpu_custom_call.1} parent=1 // pred_check_branch
      %3296 = sbr.rel (0) target = $region85
    $region84: #{tpu_custom_call.1} parent=1 // pred_region
      %3298 = dma.done [#allocation5], 128
    $region85: #{tpu_custom_call.1} parent=1 // pred_fallthru
      _
    %3299 = vsyncpa [#allocation3], 1
    %3300 = vsyncpa [#allocation5], 1

</llo_original>
